<compile_context>
chip_gen: v5e
topology: v5e:2x2
jax: 0.10.0
libtpu: 0.0.40
codegen_flags: <defaults>
</compile_context>

<pallas_src>
import functools

import jax
import jax.numpy as jnp
import numpy as np
from jax import lax
from jax.experimental import pallas as pl
from jax.experimental.pallas import tpu as pltpu


def _round_up(v, m):
    return ((v + m - 1) // m) * m


def _pick_od_tile(od, rows_per_od, target_rows=256):
    """Largest divisor of `od` keeping the M tile at <= target_rows rows."""
    best = 1
    for cand in range(1, od + 1):
        if od % cand:
            continue
        if cand * rows_per_od > target_rows:
            break
        best = cand
    return best


# ----------------------------------------------------------------------------
# Conv3d(k=3, s=2, right-pad 1): in-kernel im2col into a VMEM patch scratch,
# then ONE MXU matmul with K = 27 * C_in.
# ----------------------------------------------------------------------------
def _conv_kernel(x_ref, w_ref, b_ref, o_ref, p_ref, *, od_tile, oh, ow_pad,
                 odp, c_in):
    # x_ref: (8*odp, OHp, OWpp, C)   phase-split padded input, one batch elem
    #        row = phase * odp + q   with phase = 4*(kd%2) + 2*(kh%2) + (kw%2)
    # w_ref: (27*C, C_out)           tap-major stacked weights (row = tap*C + c)
    # b_ref: (1, C_out)
    # o_ref: (1, mt, C_out)          mt = od_tile * oh * ow_pad
    # p_ref: (mt, 27*C)              VMEM patch scratch (im2col for this tile)
    d0 = pl.program_id(1) * od_tile
    mt = od_tile * oh * ow_pad
    for kd in range(3):
        for kh in range(3):
            for kw in range(3):
                t = kd * 9 + kh * 3 + kw
                phase = (kd % 2) * 4 + (kh % 2) * 2 + (kw % 2)
                qd, qh, qw = kd // 2, kh // 2, kw // 2
                slab = x_ref[pl.ds(phase * odp + d0 + qd, od_tile),
                             qh:qh + oh, qw:qw + ow_pad, :]
                # ow_pad is a multiple of 8, so this collapse is layout-free.
                p_ref[:, t * c_in:(t + 1) * c_in] = slab.reshape(mt, c_in)
    # Single MXU pass over the whole K = 27*C contraction, f32 accumulation.
    acc = jnp.dot(p_ref[...], w_ref[...], preferred_element_type=jnp.float32)
    o_ref[0] = (acc + b_ref[...]).astype(o_ref.dtype)


def _conv3d_downsample(x, weight, bias):
    """x: (N, C, D, H, W) -> F.pad(x, (0,1)*3) then Conv3d(k=3, stride=2)."""
    N, C, D, H, W = x.shape
    C_out = weight.shape[0]

    OD = (D - 2) // 2 + 1
    OH = (H - 2) // 2 + 1
    OW = (W - 2) // 2 + 1

    OW_pad = _round_up(OW, 8)          # sublane-aligned compute width
    ODp, OHp, OWpp = OD + 1, OH + 1, OW_pad + 1

    # Right-pad D/H/W so the stride-2 phase decomposition covers every
    # (2*o + k) read.  The first pad column is the conv's zero padding; extra
    # columns only feed the ow >= OW garbage outputs that are sliced off.
    xp = jnp.pad(x, ((0, 0), (0, 0),
                     (0, 2 * ODp - D), (0, 2 * OHp - H), (0, 2 * OWpp - W)))
    # Phase split (the only wrapper-side pass over the input, ~1x input bytes):
    # xps[n, 4r+2s+t, q, qh, qw, c] = xp[n, c, 2q+r, 2qh+s, 2qw+t]
    xps = xp.reshape(N, C, ODp, 2, OHp, 2, OWpp, 2)
    xps = jnp.transpose(xps, (0, 3, 5, 7, 2, 4, 6, 1))
    xps = xps.reshape(N * 8 * ODp, OHp, OWpp, C)
    # TODO(synk): cast xps / w_all to bf16 (keep the f32 accumulator) for
    # production activations; kept f32 here to verify tightly vs the reference.

    # Tap-major stacked weights: row index = (kd*9 + kh*3 + kw) * C + c_in.
    w_all = jnp.transpose(weight, (2, 3, 4, 1, 0)).reshape(27 * C, C_out)
    w_all = w_all.astype(x.dtype)
    b_row = bias.reshape(1, C_out).astype(jnp.float32)

    od_tile = _pick_od_tile(OD, OH * OW_pad)     # M tile capped at 256 rows
    mt = od_tile * OH * OW_pad
    n_tiles = OD // od_tile
    M_pad = OD * OH * OW_pad
    Kc = 27 * C

    out = pl.pallas_call(
        functools.partial(_conv_kernel, od_tile=od_tile, oh=OH,
                          ow_pad=OW_pad, odp=ODp, c_in=C),
        out_shape=jax.ShapeDtypeStruct((N, M_pad, C_out), x.dtype),
        grid=(N, n_tiles),
        in_specs=[
            # Full per-batch phase block, VMEM-resident across od tiles.
            # TODO(synk): halo-tile OD/OH here for production-size volumes so
            # the working set stays inside v7x's 64 MiB VMEM.
            pl.BlockSpec((8 * ODp, OHp, OWpp, C), lambda n, t: (n, 0, 0, 0)),
            # Weights / bias: constant index map -> loaded once, stay resident.
            pl.BlockSpec((Kc, C_out), lambda n, t: (0, 0)),
            pl.BlockSpec((1, C_out), lambda n, t: (0, 0)),
        ],
        # Exact C_out (no 128-lane padding) -> true-sized HBM output.
        out_specs=pl.BlockSpec((1, mt, C_out), lambda n, t: (n, t, 0)),
        scratch_shapes=[pltpu.VMEM((mt, Kc), x.dtype)],
        compiler_params=pltpu.CompilerParams(
            dimension_semantics=("parallel", "parallel"),
            vmem_limit_bytes=32 * 1024 * 1024),
    )(xps, w_all, b_row)

    # Small-tensor cleanup (output is ~8x smaller than the input): drop the
    # padded ow columns and go back to NCDHW.
    out = out.reshape(N, OD, OH, OW_pad, C_out)[:, :, :, :OW, :]
    return jnp.transpose(out, (0, 4, 1, 2, 3))


# ----------------------------------------------------------------------------
# avg_pool3d(kernel=2, stride=2): one block-diagonal fold matmul per grid step
# (lane-dense input and output rows, no per-row loops).
# ----------------------------------------------------------------------------
def _pool_kernel(x_ref, f_ref, o_ref):
    # x_ref: (rows, G*2*He*We)    G depth-pair slabs packed per row
    # f_ref: (G*2*He*We, G*Hh*Wh) block-diagonal fold matrix (includes 1/8)
    # o_ref: (rows, G*Hh*Wh)
    o_ref[...] = jnp.dot(x_ref[...], f_ref[...],
                         preferred_element_type=jnp.float32).astype(o_ref.dtype)


def _pick_pool_group(r, l_in, l_out, lane_target=128, fmat_cap=4 << 20):
    """Smallest divisor of r whose packed output lane width reaches
    lane_target, capped by the dense fold-matrix footprint."""
    best = 1
    for g in range(1, r + 1):
        if r % g:
            continue
        if (g * l_in) * (g * l_out) * 4 > fmat_cap:
            break
        best = g
        if g * l_out >= lane_target:
            break
    return best


def _pick_rows_block(total, target=256):
    """Largest divisor of `total` that is a multiple of 8 and <= target."""
    if total <= target:
        return total
    best = None
    for cand in range(8, target + 1, 8):
        if total % cand == 0:
            best = cand
    return best if best is not None else total


def _avgpool3d_downsample(x):
    """x: (N, C, D, H, W) -> avg_pool3d(kernel=2, stride=2)."""
    N, C, D, H, W = x.shape
    Dh, Hh, Wh = D // 2, H // 2, W // 2
    He, We = 2 * Hh, 2 * Wh
    if (D, H, W) != (2 * Dh, He, We):          # floor behaviour for odd dims
        x = x[:, :, :2 * Dh, :He, :We]

    R = N * C * Dh                     # one pooling row per (n, c, d_out)
    L_in = 2 * He * We                 # a full 2-slice depth pair
    L_out = Hh * Wh

    G = _pick_pool_group(R, L_in, L_out)
    Rg = R // G

    # Fold matrix: sums the 2x2x2 window and applies the exact 1/8 average,
    # block-diagonal over the G packed groups so the output lanes stay dense.
    # TODO(synk): switch to a two-stage fold (W matmul + D/H adds) when H*W is
    # large enough that this dense matrix would not fit comfortably in VMEM.
    f_np = np.zeros((G * L_in, G * L_out), np.float32)
    for d2 in range(2):
        for h in range(He):
            for w in range(We):
                src = d2 * He * We + h * We + w
                dst = (h // 2) * Wh + (w // 2)
                for g in range(G):
                    f_np[g * L_in + src, g * L_out + dst] = 0.125
    f_mat = jnp.asarray(f_np)

    xg = x.reshape(Rg, G * L_in)       # free, contiguous reshape
    rows = _pick_rows_block(Rg)
    grid = (Rg // rows,)

    out = pl.pallas_call(
        _pool_kernel,
        out_shape=jax.ShapeDtypeStruct((Rg, G * L_out), x.dtype),
        grid=grid,
        in_specs=[
            pl.BlockSpec((rows, G * L_in), lambda i: (i, 0)),
            pl.BlockSpec((G * L_in, G * L_out), lambda i: (0, 0)),
        ],
        out_specs=pl.BlockSpec((rows, G * L_out), lambda i: (i, 0)),
        compiler_params=pltpu.CompilerParams(
            dimension_semantics=("parallel",),
            vmem_limit_bytes=32 * 1024 * 1024),
    )(xg, f_mat)

    return out.reshape(N, C, Dh, Hh, Wh)   # free, contiguous reshape


# ----------------------------------------------------------------------------
# Module wrapper
# ----------------------------------------------------------------------------
class Downsample:
    """JAX/Pallas port of the PyTorch Downsample module (dim=3 variant)."""

    def __init__(self, in_channels, with_conv, dim=3, key=None):
        if dim != 3:
            # TODO(synk): dim=2 (Conv2d/avg_pool2d) and dim=4 (Conv4d) variants
            # are not implemented in this synthetic kernel.
            raise NotImplementedError("only dim=3 is implemented")
        self.with_conv = with_conv
        self.dim = dim
        if self.with_conv:
            key = jax.random.PRNGKey(0) if key is None else key
            kw_, kb_ = jax.random.split(key)
            fan_in = in_channels * 3 * 3 * 3
            bound = 1.0 / np.sqrt(fan_in)
            self.weight = jax.random.uniform(
                kw_, (in_channels, in_channels, 3, 3, 3),
                minval=-bound, maxval=bound, dtype=jnp.float32)
            self.bias = jax.random.uniform(
                kb_, (in_channels,), minval=-bound, maxval=bound,
                dtype=jnp.float32)

    def __call__(self, x):
        if self.with_conv:
            return _conv3d_downsample(x, self.weight, self.bias)
        return _avgpool3d_downsample(x)


# ----------------------------------------------------------------------------
# Pure-JAX references for verification
# ----------------------------------------------------------------------------
def _conv_ref(x, w, b):
    xp = jnp.pad(x, ((0, 0), (0, 0), (0, 1), (0, 1), (0, 1)))
    y = lax.conv_general_dilated(
        xp, w, window_strides=(2, 2, 2), padding="VALID",
        dimension_numbers=("NCDHW", "OIDHW", "NCDHW"))
    return y + b[None, :, None, None, None]


def _pool_ref(x):
    N, C, D, H, W = x.shape
    xr = x.astype(jnp.float32).reshape(N, C, D // 2, 2, H // 2, 2, W // 2, 2)
    return xr.mean(axis=(3, 5, 7)).astype(x.dtype)


if __name__ == "__main__":
    key = jax.random.PRNGKey(0)
    x = jax.random.normal(key, (2, 4, 8, 8, 8), dtype=jnp.float32)

    # with_conv=True path (Conv3d k=3 s=2 after asymmetric right-pad)
    ds_conv = Downsample(in_channels=4, with_conv=True, dim=3)
    y_conv = jax.block_until_ready(ds_conv(x))
    ref_conv = _conv_ref(x, ds_conv.weight, ds_conv.bias)
    assert y_conv.shape == (2, 4, 4, 4, 4), y_conv.shape
    np.testing.assert_allclose(np.asarray(y_conv), np.asarray(ref_conv),
                               rtol=1e-4, atol=2e-5)

    # with_conv=False path (avg_pool3d k=2 s=2)
    ds_pool = Downsample(in_channels=4, with_conv=False, dim=3)
    y_pool = jax.block_until_ready(ds_pool(x))
    ref_pool = _pool_ref(x)
    assert y_pool.shape == (2, 4, 4, 4, 4), y_pool.shape
    np.testing.assert_allclose(np.asarray(y_pool), np.asarray(ref_pool),
                               rtol=1e-4, atol=1e-5)

    print("KERNEL_OK")
</pallas_src>

<mosaic_0001>
module attributes {stable_mosaic.version = 11 : i64} {
  func.func @_conv_kernel(%arg0: i32, %arg1: i32, %arg2: memref<40x5x9x4xf32, #tpu.memory_space<vmem>>, %arg3: memref<108x4xf32, #tpu.memory_space<vmem>>, %arg4: memref<1x4xf32, #tpu.memory_space<vmem>>, %arg5: memref<1x128x4xf32, #tpu.memory_space<vmem>>, %arg6: memref<128x108xf32, #tpu.memory_space<vmem>>) attributes {dimension_semantics = [#tpu.dimension_semantics<parallel>, #tpu.dimension_semantics<parallel>], iteration_bounds = array<i64: 2, 1>, scalar_prefetch = 0 : i64, scratch_operands = 1 : i64, tpu.core_type = #tpu.core_type<tc>, window_params = [{transform_indices = @transform_0, window_bounds = array<i64: 40, 5, 9, 4>}, {pipeline_mode = #tpu.pipeline_mode<synchronous>, transform_indices = @transform_1, window_bounds = array<i64: 108, 4>}, {pipeline_mode = #tpu.pipeline_mode<synchronous>, transform_indices = @transform_2, window_bounds = array<i64: 1, 4>}, {transform_indices = @transform_3, window_bounds = array<i64: 1, 128, 4>}]} {
    %c4_i32 = arith.constant 4 : i32
    %0 = arith.muli %arg1, %c4_i32 : i32
    %c0_i32 = arith.constant 0 : i32
    %1 = arith.addi %c0_i32, %0 : i32
    %c0_i32_0 = arith.constant 0 : i32
    %2 = arith.addi %1, %c0_i32_0 : i32
    %3 = arith.index_cast %2 : i32 to index
    %c0 = arith.constant 0 : index
    %c0_1 = arith.constant 0 : index
    %c0_2 = arith.constant 0 : index
    %4 = vector.load %arg2[%3, %c0, %c0_1, %c0_2] : memref<40x5x9x4xf32, #tpu.memory_space<vmem>>, vector<4x4x8x4xf32>
    %5 = vector.shape_cast %4 : vector<4x4x8x4xf32> to vector<128x4xf32>
    %c0_3 = arith.constant 0 : index
    %c0_4 = arith.constant 0 : index
    %6 = vector.load %arg6[%c0_3, %c0_4] : memref<128x108xf32, #tpu.memory_space<vmem>>, vector<128x4xf32>
    tpu.vector_store %arg6[%c0_3, %c0_4], %5 {strides = array<i32>} : memref<128x108xf32, #tpu.memory_space<vmem>>, vector<128x4xf32>,
    %c5_i32 = arith.constant 5 : i32
    %7 = arith.addi %c5_i32, %0 : i32
    %c0_i32_5 = arith.constant 0 : i32
    %8 = arith.addi %7, %c0_i32_5 : i32
    %9 = arith.index_cast %8 : i32 to index
    %c0_6 = arith.constant 0 : index
    %c0_7 = arith.constant 0 : index
    %c0_8 = arith.constant 0 : index
    %10 = vector.load %arg2[%9, %c0_6, %c0_7, %c0_8] : memref<40x5x9x4xf32, #tpu.memory_space<vmem>>, vector<4x4x8x4xf32>
    %11 = vector.shape_cast %10 : vector<4x4x8x4xf32> to vector<128x4xf32>
    %c0_9 = arith.constant 0 : index
    %c4 = arith.constant 4 : index
    %12 = vector.load %arg6[%c0_9, %c4] : memref<128x108xf32, #tpu.memory_space<vmem>>, vector<128x4xf32>
    tpu.vector_store %arg6[%c0_9, %c4], %11 {strides = array<i32>} : memref<128x108xf32, #tpu.memory_space<vmem>>, vector<128x4xf32>,
    %c0_i32_10 = arith.constant 0 : i32
    %13 = arith.addi %c0_i32_10, %0 : i32
    %c0_i32_11 = arith.constant 0 : i32
    %14 = arith.addi %13, %c0_i32_11 : i32
    %15 = arith.index_cast %14 : i32 to index
    %c0_12 = arith.constant 0 : index
    %c1 = arith.constant 1 : index
    %c0_13 = arith.constant 0 : index
    %16 = vector.load %arg2[%15, %c0_12, %c1, %c0_13] : memref<40x5x9x4xf32, #tpu.memory_space<vmem>>, vector<4x4x8x4xf32>
    %17 = vector.shape_cast %16 : vector<4x4x8x4xf32> to vector<128x4xf32>
    %c0_14 = arith.constant 0 : index
    %c8 = arith.constant 8 : index
    %18 = vector.load %arg6[%c0_14, %c8] : memref<128x108xf32, #tpu.memory_space<vmem>>, vector<128x4xf32>
    tpu.vector_store %arg6[%c0_14, %c8], %17 {strides = array<i32>} : memref<128x108xf32, #tpu.memory_space<vmem>>, vector<128x4xf32>,
    %c10_i32 = arith.constant 10 : i32
    %19 = arith.addi %c10_i32, %0 : i32
    %c0_i32_15 = arith.constant 0 : i32
    %20 = arith.addi %19, %c0_i32_15 : i32
    %21 = arith.index_cast %20 : i32 to index
    %c0_16 = arith.constant 0 : index
    %c0_17 = arith.constant 0 : index
    %c0_18 = arith.constant 0 : index
    %22 = vector.load %arg2[%21, %c0_16, %c0_17, %c0_18] : memref<40x5x9x4xf32, #tpu.memory_space<vmem>>, vector<4x4x8x4xf32>
    %23 = vector.shape_cast %22 : vector<4x4x8x4xf32> to vector<128x4xf32>
    %c0_19 = arith.constant 0 : index
    %c12 = arith.constant 12 : index
    %24 = vector.load %arg6[%c0_19, %c12] : memref<128x108xf32, #tpu.memory_space<vmem>>, vector<128x4xf32>
    tpu.vector_store %arg6[%c0_19, %c12], %23 {strides = array<i32>} : memref<128x108xf32, #tpu.memory_space<vmem>>, vector<128x4xf32>,
    %c15_i32 = arith.constant 15 : i32
    %25 = arith.addi %c15_i32, %0 : i32
    %c0_i32_20 = arith.constant 0 : i32
    %26 = arith.addi %25, %c0_i32_20 : i32
    %27 = arith.index_cast %26 : i32 to index
    %c0_21 = arith.constant 0 : index
    %c0_22 = arith.constant 0 : index
    %c0_23 = arith.constant 0 : index
    %28 = vector.load %arg2[%27, %c0_21, %c0_22, %c0_23] : memref<40x5x9x4xf32, #tpu.memory_space<vmem>>, vector<4x4x8x4xf32>
    %29 = vector.shape_cast %28 : vector<4x4x8x4xf32> to vector<128x4xf32>
    %c0_24 = arith.constant 0 : index
    %c16 = arith.constant 16 : index
    %30 = vector.load %arg6[%c0_24, %c16] : memref<128x108xf32, #tpu.memory_space<vmem>>, vector<128x4xf32>
    tpu.vector_store %arg6[%c0_24, %c16], %29 {strides = array<i32>} : memref<128x108xf32, #tpu.memory_space<vmem>>, vector<128x4xf32>,
    %c10_i32_25 = arith.constant 10 : i32
    %31 = arith.addi %c10_i32_25, %0 : i32
    %c0_i32_26 = arith.constant 0 : i32
    %32 = arith.addi %31, %c0_i32_26 : i32
    %33 = arith.index_cast %32 : i32 to index
    %c0_27 = arith.constant 0 : index
    %c1_28 = arith.constant 1 : index
    %c0_29 = arith.constant 0 : index
    %34 = vector.load %arg2[%33, %c0_27, %c1_28, %c0_29] : memref<40x5x9x4xf32, #tpu.memory_space<vmem>>, vector<4x4x8x4xf32>
    %35 = vector.shape_cast %34 : vector<4x4x8x4xf32> to vector<128x4xf32>
    %c0_30 = arith.constant 0 : index
    %c20 = arith.constant 20 : index
    %36 = vector.load %arg6[%c0_30, %c20] : memref<128x108xf32, #tpu.memory_space<vmem>>, vector<128x4xf32>
    tpu.vector_store %arg6[%c0_30, %c20], %35 {strides = array<i32>} : memref<128x108xf32, #tpu.memory_space<vmem>>, vector<128x4xf32>,
    %c0_i32_31 = arith.constant 0 : i32
    %37 = arith.addi %c0_i32_31, %0 : i32
    %c0_i32_32 = arith.constant 0 : i32
    %38 = arith.addi %37, %c0_i32_32 : i32
    %39 = arith.index_cast %38 : i32 to index
    %c1_33 = arith.constant 1 : index
    %c0_34 = arith.constant 0 : index
    %c0_35 = arith.constant 0 : index
    %40 = vector.load %arg2[%39, %c1_33, %c0_34, %c0_35] : memref<40x5x9x4xf32, #tpu.memory_space<vmem>>, vector<4x4x8x4xf32>
    %41 = vector.shape_cast %40 : vector<4x4x8x4xf32> to vector<128x4xf32>
    %c0_36 = arith.constant 0 : index
    %c24 = arith.constant 24 : index
    %42 = vector.load %arg6[%c0_36, %c24] : memref<128x108xf32, #tpu.memory_space<vmem>>, vector<128x4xf32>
    tpu.vector_store %arg6[%c0_36, %c24], %41 {strides = array<i32>} : memref<128x108xf32, #tpu.memory_space<vmem>>, vector<128x4xf32>,
    %c5_i32_37 = arith.constant 5 : i32
    %43 = arith.addi %c5_i32_37, %0 : i32
    %c0_i32_38 = arith.constant 0 : i32
    %44 = arith.addi %43, %c0_i32_38 : i32
    %45 = arith.index_cast %44 : i32 to index
    %c1_39 = arith.constant 1 : index
    %c0_40 = arith.constant 0 : index
    %c0_41 = arith.constant 0 : index
    %46 = vector.load %arg2[%45, %c1_39, %c0_40, %c0_41] : memref<40x5x9x4xf32, #tpu.memory_space<vmem>>, vector<4x4x8x4xf32>
    %47 = vector.shape_cast %46 : vector<4x4x8x4xf32> to vector<128x4xf32>
    %c0_42 = arith.constant 0 : index
    %c28 = arith.constant 28 : index
    %48 = vector.load %arg6[%c0_42, %c28] : memref<128x108xf32, #tpu.memory_space<vmem>>, vector<128x4xf32>
    tpu.vector_store %arg6[%c0_42, %c28], %47 {strides = array<i32>} : memref<128x108xf32, #tpu.memory_space<vmem>>, vector<128x4xf32>,
    %c0_i32_43 = arith.constant 0 : i32
    %49 = arith.addi %c0_i32_43, %0 : i32
    %c0_i32_44 = arith.constant 0 : i32
    %50 = arith.addi %49, %c0_i32_44 : i32
    %51 = arith.index_cast %50 : i32 to index
    %c1_45 = arith.constant 1 : index
    %c1_46 = arith.constant 1 : index
    %c0_47 = arith.constant 0 : index
    %52 = vector.load %arg2[%51, %c1_45, %c1_46, %c0_47] : memref<40x5x9x4xf32, #tpu.memory_space<vmem>>, vector<4x4x8x4xf32>
    %53 = vector.shape_cast %52 : vector<4x4x8x4xf32> to vector<128x4xf32>
    %c0_48 = arith.constant 0 : index
    %c32 = arith.constant 32 : index
    %54 = vector.load %arg6[%c0_48, %c32] : memref<128x108xf32, #tpu.memory_space<vmem>>, vector<128x4xf32>
    tpu.vector_store %arg6[%c0_48, %c32], %53 {strides = array<i32>} : memref<128x108xf32, #tpu.memory_space<vmem>>, vector<128x4xf32>,
    %c20_i32 = arith.constant 20 : i32
    %55 = arith.addi %c20_i32, %0 : i32
    %c0_i32_49 = arith.constant 0 : i32
    %56 = arith.addi %55, %c0_i32_49 : i32
    %57 = arith.index_cast %56 : i32 to index
    %c0_50 = arith.constant 0 : index
    %c0_51 = arith.constant 0 : index
    %c0_52 = arith.constant 0 : index
    %58 = vector.load %arg2[%57, %c0_50, %c0_51, %c0_52] : memref<40x5x9x4xf32, #tpu.memory_space<vmem>>, vector<4x4x8x4xf32>
    %59 = vector.shape_cast %58 : vector<4x4x8x4xf32> to vector<128x4xf32>
    %c0_53 = arith.constant 0 : index
    %c36 = arith.constant 36 : index
    %60 = vector.load %arg6[%c0_53, %c36] : memref<128x108xf32, #tpu.memory_space<vmem>>, vector<128x4xf32>
    tpu.vector_store %arg6[%c0_53, %c36], %59 {strides = array<i32>} : memref<128x108xf32, #tpu.memory_space<vmem>>, vector<128x4xf32>,
    %c25_i32 = arith.constant 25 : i32
    %61 = arith.addi %c25_i32, %0 : i32
    %c0_i32_54 = arith.constant 0 : i32
    %62 = arith.addi %61, %c0_i32_54 : i32
    %63 = arith.index_cast %62 : i32 to index
    %c0_55 = arith.constant 0 : index
    %c0_56 = arith.constant 0 : index
    %c0_57 = arith.constant 0 : index
    %64 = vector.load %arg2[%63, %c0_55, %c0_56, %c0_57] : memref<40x5x9x4xf32, #tpu.memory_space<vmem>>, vector<4x4x8x4xf32>
    %65 = vector.shape_cast %64 : vector<4x4x8x4xf32> to vector<128x4xf32>
    %c0_58 = arith.constant 0 : index
    %c40 = arith.constant 40 : index
    %66 = vector.load %arg6[%c0_58, %c40] : memref<128x108xf32, #tpu.memory_space<vmem>>, vector<128x4xf32>
    tpu.vector_store %arg6[%c0_58, %c40], %65 {strides = array<i32>} : memref<128x108xf32, #tpu.memory_space<vmem>>, vector<128x4xf32>,
    %c20_i32_59 = arith.constant 20 : i32
    %67 = arith.addi %c20_i32_59, %0 : i32
    %c0_i32_60 = arith.constant 0 : i32
    %68 = arith.addi %67, %c0_i32_60 : i32
    %69 = arith.index_cast %68 : i32 to index
    %c0_61 = arith.constant 0 : index
    %c1_62 = arith.constant 1 : index
    %c0_63 = arith.constant 0 : index
    %70 = vector.load %arg2[%69, %c0_61, %c1_62, %c0_63] : memref<40x5x9x4xf32, #tpu.memory_space<vmem>>, vector<4x4x8x4xf32>
    %71 = vector.shape_cast %70 : vector<4x4x8x4xf32> to vector<128x4xf32>
    %c0_64 = arith.constant 0 : index
    %c44 = arith.constant 44 : index
    %72 = vector.load %arg6[%c0_64, %c44] : memref<128x108xf32, #tpu.memory_space<vmem>>, vector<128x4xf32>
    tpu.vector_store %arg6[%c0_64, %c44], %71 {strides = array<i32>} : memref<128x108xf32, #tpu.memory_space<vmem>>, vector<128x4xf32>,
    %c30_i32 = arith.constant 30 : i32
    %73 = arith.addi %c30_i32, %0 : i32
    %c0_i32_65 = arith.constant 0 : i32
    %74 = arith.addi %73, %c0_i32_65 : i32
    %75 = arith.index_cast %74 : i32 to index
    %c0_66 = arith.constant 0 : index
    %c0_67 = arith.constant 0 : index
    %c0_68 = arith.constant 0 : index
    %76 = vector.load %arg2[%75, %c0_66, %c0_67, %c0_68] : memref<40x5x9x4xf32, #tpu.memory_space<vmem>>, vector<4x4x8x4xf32>
    %77 = vector.shape_cast %76 : vector<4x4x8x4xf32> to vector<128x4xf32>
    %c0_69 = arith.constant 0 : index
    %c48 = arith.constant 48 : index
    %78 = vector.load %arg6[%c0_69, %c48] : memref<128x108xf32, #tpu.memory_space<vmem>>, vector<128x4xf32>
    tpu.vector_store %arg6[%c0_69, %c48], %77 {strides = array<i32>} : memref<128x108xf32, #tpu.memory_space<vmem>>, vector<128x4xf32>,
    %c35_i32 = arith.constant 35 : i32
    %79 = arith.addi %c35_i32, %0 : i32
    %c0_i32_70 = arith.constant 0 : i32
    %80 = arith.addi %79, %c0_i32_70 : i32
    %81 = arith.index_cast %80 : i32 to index
    %c0_71 = arith.constant 0 : index
    %c0_72 = arith.constant 0 : index
    %c0_73 = arith.constant 0 : index
    %82 = vector.load %arg2[%81, %c0_71, %c0_72, %c0_73] : memref<40x5x9x4xf32, #tpu.memory_space<vmem>>, vector<4x4x8x4xf32>
    %83 = vector.shape_cast %82 : vector<4x4x8x4xf32> to vector<128x4xf32>
    %c0_74 = arith.constant 0 : index
    %c52 = arith.constant 52 : index
    %84 = vector.load %arg6[%c0_74, %c52] : memref<128x108xf32, #tpu.memory_space<vmem>>, vector<128x4xf32>
    tpu.vector_store %arg6[%c0_74, %c52], %83 {strides = array<i32>} : memref<128x108xf32, #tpu.memory_space<vmem>>, vector<128x4xf32>,
    %c30_i32_75 = arith.constant 30 : i32
    %85 = arith.addi %c30_i32_75, %0 : i32
    %c0_i32_76 = arith.constant 0 : i32
    %86 = arith.addi %85, %c0_i32_76 : i32
    %87 = arith.index_cast %86 : i32 to index
    %c0_77 = arith.constant 0 : index
    %c1_78 = arith.constant 1 : index
    %c0_79 = arith.constant 0 : index
    %88 = vector.load %arg2[%87, %c0_77, %c1_78, %c0_79] : memref<40x5x9x4xf32, #tpu.memory_space<vmem>>, vector<4x4x8x4xf32>
    %89 = vector.shape_cast %88 : vector<4x4x8x4xf32> to vector<128x4xf32>
    %c0_80 = arith.constant 0 : index
    %c56 = arith.constant 56 : index
    %90 = vector.load %arg6[%c0_80, %c56] : memref<128x108xf32, #tpu.memory_space<vmem>>, vector<128x4xf32>
    tpu.vector_store %arg6[%c0_80, %c56], %89 {strides = array<i32>} : memref<128x108xf32, #tpu.memory_space<vmem>>, vector<128x4xf32>,
    %c20_i32_81 = arith.constant 20 : i32
    %91 = arith.addi %c20_i32_81, %0 : i32
    %c0_i32_82 = arith.constant 0 : i32
    %92 = arith.addi %91, %c0_i32_82 : i32
    %93 = arith.index_cast %92 : i32 to index
    %c1_83 = arith.constant 1 : index
    %c0_84 = arith.constant 0 : index
    %c0_85 = arith.constant 0 : index
    %94 = vector.load %arg2[%93, %c1_83, %c0_84, %c0_85] : memref<40x5x9x4xf32, #tpu.memory_space<vmem>>, vector<4x4x8x4xf32>
    %95 = vector.shape_cast %94 : vector<4x4x8x4xf32> to vector<128x4xf32>
    %c0_86 = arith.constant 0 : index
    %c60 = arith.constant 60 : index
    %96 = vector.load %arg6[%c0_86, %c60] : memref<128x108xf32, #tpu.memory_space<vmem>>, vector<128x4xf32>
    tpu.vector_store %arg6[%c0_86, %c60], %95 {strides = array<i32>} : memref<128x108xf32, #tpu.memory_space<vmem>>, vector<128x4xf32>,
    %c25_i32_87 = arith.constant 25 : i32
    %97 = arith.addi %c25_i32_87, %0 : i32
    %c0_i32_88 = arith.constant 0 : i32
    %98 = arith.addi %97, %c0_i32_88 : i32
    %99 = arith.index_cast %98 : i32 to index
    %c1_89 = arith.constant 1 : index
    %c0_90 = arith.constant 0 : index
    %c0_91 = arith.constant 0 : index
    %100 = vector.load %arg2[%99, %c1_89, %c0_90, %c0_91] : memref<40x5x9x4xf32, #tpu.memory_space<vmem>>, vector<4x4x8x4xf32>
    %101 = vector.shape_cast %100 : vector<4x4x8x4xf32> to vector<128x4xf32>
    %c0_92 = arith.constant 0 : index
    %c64 = arith.constant 64 : index
    %102 = vector.load %arg6[%c0_92, %c64] : memref<128x108xf32, #tpu.memory_space<vmem>>, vector<128x4xf32>
    tpu.vector_store %arg6[%c0_92, %c64], %101 {strides = array<i32>} : memref<128x108xf32, #tpu.memory_space<vmem>>, vector<128x4xf32>,
    %c20_i32_93 = arith.constant 20 : i32
    %103 = arith.addi %c20_i32_93, %0 : i32
    %c0_i32_94 = arith.constant 0 : i32
    %104 = arith.addi %103, %c0_i32_94 : i32
    %105 = arith.index_cast %104 : i32 to index
    %c1_95 = arith.constant 1 : index
    %c1_96 = arith.constant 1 : index
    %c0_97 = arith.constant 0 : index
    %106 = vector.load %arg2[%105, %c1_95, %c1_96, %c0_97] : memref<40x5x9x4xf32, #tpu.memory_space<vmem>>, vector<4x4x8x4xf32>
    %107 = vector.shape_cast %106 : vector<4x4x8x4xf32> to vector<128x4xf32>
    %c0_98 = arith.constant 0 : index
    %c68 = arith.constant 68 : index
    %108 = vector.load %arg6[%c0_98, %c68] : memref<128x108xf32, #tpu.memory_space<vmem>>, vector<128x4xf32>
    tpu.vector_store %arg6[%c0_98, %c68], %107 {strides = array<i32>} : memref<128x108xf32, #tpu.memory_space<vmem>>, vector<128x4xf32>,
    %c0_i32_99 = arith.constant 0 : i32
    %109 = arith.addi %c0_i32_99, %0 : i32
    %c1_i32 = arith.constant 1 : i32
    %110 = arith.addi %109, %c1_i32 : i32
    %111 = arith.index_cast %110 : i32 to index
    %c0_100 = arith.constant 0 : index
    %c0_101 = arith.constant 0 : index
    %c0_102 = arith.constant 0 : index
    %112 = vector.load %arg2[%111, %c0_100, %c0_101, %c0_102] : memref<40x5x9x4xf32, #tpu.memory_space<vmem>>, vector<4x4x8x4xf32>
    %113 = vector.shape_cast %112 : vector<4x4x8x4xf32> to vector<128x4xf32>
    %c0_103 = arith.constant 0 : index
    %c72 = arith.constant 72 : index
    %114 = vector.load %arg6[%c0_103, %c72] : memref<128x108xf32, #tpu.memory_space<vmem>>, vector<128x4xf32>
    tpu.vector_store %arg6[%c0_103, %c72], %113 {strides = array<i32>} : memref<128x108xf32, #tpu.memory_space<vmem>>, vector<128x4xf32>,
    %c5_i32_104 = arith.constant 5 : i32
    %115 = arith.addi %c5_i32_104, %0 : i32
    %c1_i32_105 = arith.constant 1 : i32
    %116 = arith.addi %115, %c1_i32_105 : i32
    %117 = arith.index_cast %116 : i32 to index
    %c0_106 = arith.constant 0 : index
    %c0_107 = arith.constant 0 : index
    %c0_108 = arith.constant 0 : index
    %118 = vector.load %arg2[%117, %c0_106, %c0_107, %c0_108] : memref<40x5x9x4xf32, #tpu.memory_space<vmem>>, vector<4x4x8x4xf32>
    %119 = vector.shape_cast %118 : vector<4x4x8x4xf32> to vector<128x4xf32>
    %c0_109 = arith.constant 0 : index
    %c76 = arith.constant 76 : index
    %120 = vector.load %arg6[%c0_109, %c76] : memref<128x108xf32, #tpu.memory_space<vmem>>, vector<128x4xf32>
    tpu.vector_store %arg6[%c0_109, %c76], %119 {strides = array<i32>} : memref<128x108xf32, #tpu.memory_space<vmem>>, vector<128x4xf32>,
    %c0_i32_110 = arith.constant 0 : i32
    %121 = arith.addi %c0_i32_110, %0 : i32
    %c1_i32_111 = arith.constant 1 : i32
    %122 = arith.addi %121, %c1_i32_111 : i32
    %123 = arith.index_cast %122 : i32 to index
    %c0_112 = arith.constant 0 : index
    %c1_113 = arith.constant 1 : index
    %c0_114 = arith.constant 0 : index
    %124 = vector.load %arg2[%123, %c0_112, %c1_113, %c0_114] : memref<40x5x9x4xf32, #tpu.memory_space<vmem>>, vector<4x4x8x4xf32>
    %125 = vector.shape_cast %124 : vector<4x4x8x4xf32> to vector<128x4xf32>
    %c0_115 = arith.constant 0 : index
    %c80 = arith.constant 80 : index
    %126 = vector.load %arg6[%c0_115, %c80] : memref<128x108xf32, #tpu.memory_space<vmem>>, vector<128x4xf32>
    tpu.vector_store %arg6[%c0_115, %c80], %125 {strides = array<i32>} : memref<128x108xf32, #tpu.memory_space<vmem>>, vector<128x4xf32>,
    %c10_i32_116 = arith.constant 10 : i32
    %127 = arith.addi %c10_i32_116, %0 : i32
    %c1_i32_117 = arith.constant 1 : i32
    %128 = arith.addi %127, %c1_i32_117 : i32
    %129 = arith.index_cast %128 : i32 to index
    %c0_118 = arith.constant 0 : index
    %c0_119 = arith.constant 0 : index
    %c0_120 = arith.constant 0 : index
    %130 = vector.load %arg2[%129, %c0_118, %c0_119, %c0_120] : memref<40x5x9x4xf32, #tpu.memory_space<vmem>>, vector<4x4x8x4xf32>
    %131 = vector.shape_cast %130 : vector<4x4x8x4xf32> to vector<128x4xf32>
    %c0_121 = arith.constant 0 : index
    %c84 = arith.constant 84 : index
    %132 = vector.load %arg6[%c0_121, %c84] : memref<128x108xf32, #tpu.memory_space<vmem>>, vector<128x4xf32>
    tpu.vector_store %arg6[%c0_121, %c84], %131 {strides = array<i32>} : memref<128x108xf32, #tpu.memory_space<vmem>>, vector<128x4xf32>,
    %c15_i32_122 = arith.constant 15 : i32
    %133 = arith.addi %c15_i32_122, %0 : i32
    %c1_i32_123 = arith.constant 1 : i32
    %134 = arith.addi %133, %c1_i32_123 : i32
    %135 = arith.index_cast %134 : i32 to index
    %c0_124 = arith.constant 0 : index
    %c0_125 = arith.constant 0 : index
    %c0_126 = arith.constant 0 : index
    %136 = vector.load %arg2[%135, %c0_124, %c0_125, %c0_126] : memref<40x5x9x4xf32, #tpu.memory_space<vmem>>, vector<4x4x8x4xf32>
    %137 = vector.shape_cast %136 : vector<4x4x8x4xf32> to vector<128x4xf32>
    %c0_127 = arith.constant 0 : index
    %c88 = arith.constant 88 : index
    %138 = vector.load %arg6[%c0_127, %c88] : memref<128x108xf32, #tpu.memory_space<vmem>>, vector<128x4xf32>
    tpu.vector_store %arg6[%c0_127, %c88], %137 {strides = array<i32>} : memref<128x108xf32, #tpu.memory_space<vmem>>, vector<128x4xf32>,
    %c10_i32_128 = arith.constant 10 : i32
    %139 = arith.addi %c10_i32_128, %0 : i32
    %c1_i32_129 = arith.constant 1 : i32
    %140 = arith.addi %139, %c1_i32_129 : i32
    %141 = arith.index_cast %140 : i32 to index
    %c0_130 = arith.constant 0 : index
    %c1_131 = arith.constant 1 : index
    %c0_132 = arith.constant 0 : index
    %142 = vector.load %arg2[%141, %c0_130, %c1_131, %c0_132] : memref<40x5x9x4xf32, #tpu.memory_space<vmem>>, vector<4x4x8x4xf32>
    %143 = vector.shape_cast %142 : vector<4x4x8x4xf32> to vector<128x4xf32>
    %c0_133 = arith.constant 0 : index
    %c92 = arith.constant 92 : index
    %144 = vector.load %arg6[%c0_133, %c92] : memref<128x108xf32, #tpu.memory_space<vmem>>, vector<128x4xf32>
    tpu.vector_store %arg6[%c0_133, %c92], %143 {strides = array<i32>} : memref<128x108xf32, #tpu.memory_space<vmem>>, vector<128x4xf32>,
    %c0_i32_134 = arith.constant 0 : i32
    %145 = arith.addi %c0_i32_134, %0 : i32
    %c1_i32_135 = arith.constant 1 : i32
    %146 = arith.addi %145, %c1_i32_135 : i32
    %147 = arith.index_cast %146 : i32 to index
    %c1_136 = arith.constant 1 : index
    %c0_137 = arith.constant 0 : index
    %c0_138 = arith.constant 0 : index
    %148 = vector.load %arg2[%147, %c1_136, %c0_137, %c0_138] : memref<40x5x9x4xf32, #tpu.memory_space<vmem>>, vector<4x4x8x4xf32>
    %149 = vector.shape_cast %148 : vector<4x4x8x4xf32> to vector<128x4xf32>
    %c0_139 = arith.constant 0 : index
    %c96 = arith.constant 96 : index
    %150 = vector.load %arg6[%c0_139, %c96] : memref<128x108xf32, #tpu.memory_space<vmem>>, vector<128x4xf32>
    tpu.vector_store %arg6[%c0_139, %c96], %149 {strides = array<i32>} : memref<128x108xf32, #tpu.memory_space<vmem>>, vector<128x4xf32>,
    %c5_i32_140 = arith.constant 5 : i32
    %151 = arith.addi %c5_i32_140, %0 : i32
    %c1_i32_141 = arith.constant 1 : i32
    %152 = arith.addi %151, %c1_i32_141 : i32
    %153 = arith.index_cast %152 : i32 to index
    %c1_142 = arith.constant 1 : index
    %c0_143 = arith.constant 0 : index
    %c0_144 = arith.constant 0 : index
    %154 = vector.load %arg2[%153, %c1_142, %c0_143, %c0_144] : memref<40x5x9x4xf32, #tpu.memory_space<vmem>>, vector<4x4x8x4xf32>
    %155 = vector.shape_cast %154 : vector<4x4x8x4xf32> to vector<128x4xf32>
    %c0_145 = arith.constant 0 : index
    %c100 = arith.constant 100 : index
    %156 = vector.load %arg6[%c0_145, %c100] : memref<128x108xf32, #tpu.memory_space<vmem>>, vector<128x4xf32>
    tpu.vector_store %arg6[%c0_145, %c100], %155 {strides = array<i32>} : memref<128x108xf32, #tpu.memory_space<vmem>>, vector<128x4xf32>,
    %c0_i32_146 = arith.constant 0 : i32
    %157 = arith.addi %c0_i32_146, %0 : i32
    %c1_i32_147 = arith.constant 1 : i32
    %158 = arith.addi %157, %c1_i32_147 : i32
    %159 = arith.index_cast %158 : i32 to index
    %c1_148 = arith.constant 1 : index
    %c1_149 = arith.constant 1 : index
    %c0_150 = arith.constant 0 : index
    %160 = vector.load %arg2[%159, %c1_148, %c1_149, %c0_150] : memref<40x5x9x4xf32, #tpu.memory_space<vmem>>, vector<4x4x8x4xf32>
    %161 = vector.shape_cast %160 : vector<4x4x8x4xf32> to vector<128x4xf32>
    %c0_151 = arith.constant 0 : index
    %c104 = arith.constant 104 : index
    %162 = vector.load %arg6[%c0_151, %c104] : memref<128x108xf32, #tpu.memory_space<vmem>>, vector<128x4xf32>
    tpu.vector_store %arg6[%c0_151, %c104], %161 {strides = array<i32>} : memref<128x108xf32, #tpu.memory_space<vmem>>, vector<128x4xf32>,
    %c0_152 = arith.constant 0 : index
    %c0_153 = arith.constant 0 : index
    %163 = vector.load %arg6[%c0_152, %c0_153] : memref<128x108xf32, #tpu.memory_space<vmem>>, vector<128x108xf32>
    %c0_154 = arith.constant 0 : index
    %c0_155 = arith.constant 0 : index
    %164 = vector.load %arg3[%c0_154, %c0_155] : memref<108x4xf32, #tpu.memory_space<vmem>>, vector<108x4xf32>
    %cst = arith.constant dense<0.000000e+00> : vector<128x4xf32>
    %165 = tpu.matmul %163, %164, %cst {dimension_numbers = #tpu.dot_dimension_numbers<[1], [0], [0], [1], [0, 0, 1, 1], [], []>} : vector<128x108xf32>, vector<108x4xf32>, vector<128x4xf32> -> vector<128x4xf32>
    %c0_156 = arith.constant 0 : index
    %c0_157 = arith.constant 0 : index
    %166 = vector.load %arg4[%c0_156, %c0_157] : memref<1x4xf32, #tpu.memory_space<vmem>>, vector<1x4xf32>
    %167 = vector.broadcast %166 : vector<1x4xf32> to vector<128x4xf32>
    %168 = arith.addf %165, %167 : vector<128x4xf32>
    %c0_158 = arith.constant 0 : index
    %c0_159 = arith.constant 0 : index
    %c0_160 = arith.constant 0 : index
    %169 = vector.load %arg5[%c0_158, %c0_159, %c0_160] : memref<1x128x4xf32, #tpu.memory_space<vmem>>, vector<1x128x4xf32>
    %170 = vector.shape_cast %169 : vector<1x128x4xf32> to vector<128x4xf32>
    %171 = vector.shape_cast %168 : vector<128x4xf32> to vector<1x128x4xf32>
    tpu.vector_store %arg5[%c0_158, %c0_159, %c0_160], %171 {strides = array<i32>} : memref<1x128x4xf32, #tpu.memory_space<vmem>>, vector<1x128x4xf32>,
    return
  }
  func.func @transform_0(%arg0: i32, %arg1: i32) -> (i32, i32, i32, i32) {
    %c0_i32 = arith.constant 0 : i32
    %c0_i32_0 = arith.constant 0 : i32
    %c0_i32_1 = arith.constant 0 : i32
    %c0_i32_2 = arith.constant 0 : i32
    return %arg0, %c0_i32, %c0_i32_0, %c0_i32_1 : i32, i32, i32, i32
  }
  func.func @transform_1(%arg0: i32, %arg1: i32) -> (i32, i32) {
    %c0_i32 = arith.constant 0 : i32
    %c0_i32_0 = arith.constant 0 : i32
    %c0_i32_1 = arith.constant 0 : i32
    return %c0_i32, %c0_i32_0 : i32, i32
  }
  func.func @transform_2(%arg0: i32, %arg1: i32) -> (i32, i32) {
    %c0_i32 = arith.constant 0 : i32
    %c0_i32_0 = arith.constant 0 : i32
    %c0_i32_1 = arith.constant 0 : i32
    return %c0_i32, %c0_i32_0 : i32, i32
  }
  func.func @transform_3(%arg0: i32, %arg1: i32) -> (i32, i32, i32) {
    %c0_i32 = arith.constant 0 : i32
    %c0_i32_0 = arith.constant 0 : i32
    return %arg0, %arg1, %c0_i32 : i32, i32, i32
  }
}

</mosaic_0001>

<llo_original>
// kernel: tpu_custom_call.1
$region0: #{tpu_custom_call.1}
  #allocation0 [shape = 'u32[]', space=smem, size = 0x4, offset = 0x4, fixed_abs, tag = 'smem constant byte address 0x4 - core index']
  #allocation1 [shape = 'u32[72,128]{1,0:T(1,128)}', space=vmem, size = 0x9000, scoped, tag = 'internal scratch']
  #allocation2 [shape = 'f32[128,108]{1,0:T(8,128)}', space=vmem, size = 0x10000, scoped, tag = 'scratch operand']
  %s0 = inlined_call_operand.vmem [shape: f32[80,5,9,4], index: 0, kind: input, shape index: {}]
  %s1 = inlined_call_operand.vmem [shape: f32[108,4], index: 1, kind: input, shape index: {}]
  %s2 = inlined_call_operand.vmem [shape: f32[1,4], index: 2, kind: input, shape index: {}]
  %s3 = inlined_call_operand.vmem [shape: f32[2,128,4], index: 3, kind: output, shape index: {}]
  %s4 = sld [smem:[#allocation0]]
  $region45: #{tpu_custom_call.1} parent=0
    _
  %s6 = ssub.s32 1, %s4
  %s7 = scalar_select 0, %s6, %s4
  loop: start=0, step=1, limit=4
  $region2: #{tpu_custom_call.1} parent=0 // loop_pre_header
    _
  $region3: #{tpu_custom_call.1} parent=0 // loop_header
    %s9 = sphi 0, %s13
    %p10 = scmp.ge.s32.totalorder %s9, 4
    %s16 = sphi 0, %s28
    %s17 = sphi 0, %s24
    %s18 = sphi 0, %s16
    %s19 = sphi 0, %s17
    %s20 = sphi 0, %s18
    %s21 = sphi 0, %s19
    %s31 = sphi 0, %s33
    %s34 = sphi 0, %s31
    %s35 = sphi 0, %s34
    %s51 = sphi 0, %s35
    %s55 = sphi 0, %s55
    %s57 = sphi 0, %s55
    %s58 = sphi 0, %s57
    %s72 = sphi 0, %s58
    %s76 = sphi 0, %s76
    %s78 = sphi 0, %s76
    %s79 = sphi 0, %s78
    %s93 = sphi 0, %s79
    %s101 = sphi 0, %s103
    %s104 = sphi 0, %s101
    %s105 = sphi 0, %s104
    %s121 = sphi 0, %s105
  $region4: #{tpu_custom_call.1} parent=0 // loop_header_branch
    %12 = sbr.rel (%p10) target = $region8
  $region5: #{tpu_custom_call.1} parent=0 // loop_body
    %s14 = ssub.s32 %s9, 1
    %s15 = ssub.s32 %s9, 2
    %s22 = sadd.s32 1, %s17
    %p23 = scmp.ge.s32.totalorder %s22, 1
    %s24 = scalar_select %p23, 0, %s22
    %s25 = sadd.s32 1, %s16
    %s26 = scalar_select %p23, %s25, %s16
    %p27 = scmp.ge.s32.totalorder %s26, 2
    %s28 = scalar_select %p27, 0, %s26
    %s29 = ssub.s32 %s16, %s28
    %p30 = scmp.eq.s32.totalorder %s29, 0
    %s32 = sadd.s32 %s31, 1
    %s33 = scalar_select %p30, %s31, %s32
    %p36 = pneg %p30
    %p37 = scmp.eq.s32.totalorder %s9, 1
    %p38 = por %p36, %p37
    %p39 = scmp.ne.s32.totalorder %s31, %s34
    %p40 = scmp.eq.s32.totalorder %s9, 0
    %p41 = por %p39, %p40
    %p42 = scmp.ne.s32.totalorder %s31, %s34
    %p43 = scmp.eq.s32.totalorder %s14, 1
    %p44 = por %p42, %p43
    %p45 = scmp.ne.s32.totalorder %s34, %s35
    %p46 = scmp.eq.s32.totalorder %s14, 0
    %p47 = por %p45, %p46
    %p48 = scmp.ne.s32.totalorder %s34, %s35
    %p49 = scmp.eq.s32.totalorder %s15, 1
    %p50 = por %p48, %p49
    %p52 = scmp.ne.s32.totalorder %s35, %s51
    %p53 = scmp.eq.s32.totalorder %s15, 0
    %p54 = por %p52, %p53
    %s56 = sadd.s32 %s55, 1
    %p59 = scmp.eq.s32.totalorder %s9, 1
    %p60 = scmp.ne.s32.totalorder %s55, %s57
    %p61 = scmp.eq.s32.totalorder %s9, 0
    %p62 = por %p60, %p61
    %p63 = scmp.ne.s32.totalorder %s55, %s57
    %p64 = scmp.eq.s32.totalorder %s14, 1
    %p65 = por %p63, %p64
    %p66 = scmp.ne.s32.totalorder %s57, %s58
    %p67 = scmp.eq.s32.totalorder %s14, 0
    %p68 = por %p66, %p67
    %p69 = scmp.ne.s32.totalorder %s57, %s58
    %p70 = scmp.eq.s32.totalorder %s15, 1
    %p71 = por %p69, %p70
    %p73 = scmp.ne.s32.totalorder %s58, %s72
    %p74 = scmp.eq.s32.totalorder %s15, 0
    %p75 = por %p73, %p74
    %s77 = sadd.s32 %s76, 1
    %p80 = scmp.eq.s32.totalorder %s9, 1
    %p81 = scmp.ne.s32.totalorder %s76, %s78
    %p82 = scmp.eq.s32.totalorder %s9, 0
    %p83 = por %p81, %p82
    %p84 = scmp.ne.s32.totalorder %s76, %s78
    %p85 = scmp.eq.s32.totalorder %s14, 1
    %p86 = por %p84, %p85
    %p87 = scmp.ne.s32.totalorder %s78, %s79
    %p88 = scmp.eq.s32.totalorder %s14, 0
    %p89 = por %p87, %p88
    %p90 = scmp.ne.s32.totalorder %s78, %s79
    %p91 = scmp.eq.s32.totalorder %s15, 1
    %p92 = por %p90, %p91
    %p94 = scmp.ne.s32.totalorder %s79, %s93
    %p95 = scmp.eq.s32.totalorder %s15, 0
    %p96 = por %p94, %p95
    %s97 = ssub.s32 %s16, %s28
    %s98 = ssub.s32 %s17, %s24
    %s99 = sor.u32 %s97, %s98
    %p100 = scmp.eq.s32.totalorder %s99, 0
    %s102 = sadd.s32 %s101, 1
    %s103 = scalar_select %p100, %s101, %s102
    %p106 = pneg %p100
    %p107 = scmp.eq.s32.totalorder %s9, 1
    %p108 = por %p106, %p107
    %p109 = scmp.ne.s32.totalorder %s101, %s104
    %p110 = scmp.eq.s32.totalorder %s9, 0
    %p111 = por %p109, %p110
    %p112 = scmp.ne.s32.totalorder %s101, %s104
    %p113 = scmp.eq.s32.totalorder %s14, 1
    %p114 = por %p112, %p113
    %p115 = scmp.ne.s32.totalorder %s104, %s105
    %p116 = scmp.eq.s32.totalorder %s14, 0
    %p117 = por %p115, %p116
    %p118 = scmp.ne.s32.totalorder %s104, %s105
    %p119 = scmp.eq.s32.totalorder %s15, 1
    %p120 = por %p118, %p119
    %p122 = scmp.ne.s32.totalorder %s105, %s121
    %p123 = scmp.eq.s32.totalorder %s15, 0
    %p124 = por %p122, %p123
    %p125 = scmp.le.s32.totalorder 1, %s9
    %p126 = scmp.lt.s32.totalorder %s9, 3
    %p127 = pnand %p125, %p126
    %p128 = pneg %p127
    // Predicated region
    $region9: #{tpu_custom_call.1} parent=5 // pred_check
      _
    $region10: #{tpu_custom_call.1} parent=5 // pred_check_branch
      %130 = sbr.rel (%p127) target = $region12
    $region11: #{tpu_custom_call.1} parent=5 // pred_region
      %s131 = ssub.s32 %s9, 1
      // Predicated region
      $region13: #{tpu_custom_call.1} parent=11 // pred_check
        %p132 = pneg %p68
      $region14: #{tpu_custom_call.1} parent=11 // pred_check_branch
        %134 = sbr.rel (%p132) target = $region16
      $region15: #{tpu_custom_call.1} parent=11 // pred_region
        _
      $region16: #{tpu_custom_call.1} parent=11 // pred_fallthru
        _
      // Predicated region
      $region17: #{tpu_custom_call.1} parent=11 // pred_check
        %p135 = pneg %p89
      $region18: #{tpu_custom_call.1} parent=11 // pred_check_branch
        %137 = sbr.rel (%p135) target = $region20
      $region19: #{tpu_custom_call.1} parent=11 // pred_region
        _
      $region20: #{tpu_custom_call.1} parent=11 // pred_fallthru
        _
    $region12: #{tpu_custom_call.1} parent=5 // pred_fallthru
      _
    %p138 = scmp.lt.s32.totalorder %s9, 2
    // Predicated region
    $region21: #{tpu_custom_call.1} parent=5 // pred_check
      %p139 = pneg %p138
    $region22: #{tpu_custom_call.1} parent=5 // pred_check_branch
      %141 = sbr.rel (%p139) target = $region24
    $region23: #{tpu_custom_call.1} parent=5 // pred_region
      // Predicated region
      $region25: #{tpu_custom_call.1} parent=23 // pred_check
        %p142 = pneg %p41
      $region26: #{tpu_custom_call.1} parent=23 // pred_check_branch
        %144 = sbr.rel (%p142) target = $region28
      $region27: #{tpu_custom_call.1} parent=23 // pred_region
        %s145 = smul.u32 40, %s16
        %p146 = scmp.lt.s32.totalorder %s145, 79
        %s147 = scalar_select %p146, %s145, 79
        %s148 = smul.addr %s147, 10
        %s149 = smul.addr %s148, 8
        %s150 = scalar_lea.vmem %s0, %s149
        %s151 = smul.u32 40, %s16
      $region28: #{tpu_custom_call.1} parent=23 // pred_fallthru
        _
    $region24: #{tpu_custom_call.1} parent=5 // pred_fallthru
      _
    %p152 = scmp.le.s32.totalorder 1, %s9
    %p153 = scmp.lt.s32.totalorder %s9, 3
    %p154 = pnand %p152, %p153
    %p155 = pneg %p154
    // Predicated region
    $region29: #{tpu_custom_call.1} parent=5 // pred_check
      _
    $region30: #{tpu_custom_call.1} parent=5 // pred_check_branch
      %157 = sbr.rel (%p154) target = $region32
    $region31: #{tpu_custom_call.1} parent=5 // pred_region
      %s158 = ssub.s32 %s9, 1
      %s159 = smul.u32 40, %s18
      %p160 = scmp.lt.s32.totalorder %s159, 79
      %s161 = scalar_select %p160, %s159, 79
      %s162 = smul.addr %s161, 10
      %s163 = smul.addr %s162, 8
      %s164 = scalar_lea.vmem %s0, %s163
      %p165 = pneg %p47
      %p166 = pneg %p44
      %p167 = pneg %p68
      %p168 = pneg %p65
      %p169 = pneg %p89
      %p170 = pneg %p86
      %p171 = pneg %p117
      %p172 = pneg %p114
      %s173 = smul.u32 16, %s19
      %p174 = scmp.lt.s32.totalorder %s18, 1
      %s175 = scalar_select %p174, %s18, 1
      %p176 = scmp.lt.s32.totalorder %s173, 15
      %s177 = scalar_select %p176, %s173, 15
      %s178 = smul.addr %s175, 16
      %s179 = sadd.s32 %s177, %s178
      %s180 = smul.addr %s179, 8
      %s181 = scalar_lea.vmem %s3, %s180
      %s182 = smul.u32 40, %s18
      %p183 = scmp.lt.s32.totalorder %s182, 79
      %s184 = scalar_select %p183, %s182, 79
      %s185 = smul.addr %s184, 10
      %s186 = smul.addr %s185, 8
      %s187 = scalar_lea.vmem %s0, %s186
      %s188 = smul.u32 40, %s18
      %s189 = smul.u32 16, %s19
      %p190 = scmp.lt.s32.totalorder %s18, 1
      %s191 = scalar_select %p190, %s18, 1
      %p192 = scmp.lt.s32.totalorder %s189, 15
      %s193 = scalar_select %p192, %s189, 15
      %s194 = smul.addr %s191, 16
      %s195 = sadd.s32 %s193, %s194
      %s196 = smul.addr %s195, 8
      %s197 = scalar_lea.vmem %s3, %s196
      %s198 = smul.u32 16, %s19
      %s199 = smul.u32 %s19, 4
      %s200 = smul.u32 %s199, 80
      %s201 = scalar_lea.vmem %s187, %s200
      %v202 = vld [vmem:[%s201] sm:$0xff]
      %v203 = vld [vmem:[%s201 + $0x10] sm:$0xff]
      %v204 = vld [vmem:[%s201 + $0x20] sm:$0xff]
      %v205 = vld [vmem:[%s201 + $0x30] sm:$0xff]
      %v206 = vld [vmem:[%s201 + $0x50] sm:$0xff]
      %v207 = vld [vmem:[%s201 + $0x60] sm:$0xff]
      %v208 = vld [vmem:[%s201 + $0x70] sm:$0xff]
      %v209 = vld [vmem:[%s201 + $0x80] sm:$0xff]
      %v210 = vld [vmem:[%s201 + $0xa0] sm:$0xff]
      %v211 = vld [vmem:[%s201 + $0xb0] sm:$0xff]
      %v212 = vld [vmem:[%s201 + $0xc0] sm:$0xff]
      %v213 = vld [vmem:[%s201 + $0xd0] sm:$0xff]
      %v214 = vld [vmem:[%s201 + $0xf0] sm:$0xff]
      %v215 = vld [vmem:[%s201 + $0x100] sm:$0xff]
      %v216 = vld [vmem:[%s201 + $0x110] sm:$0xff]
      %v217 = vld [vmem:[%s201 + $0x120] sm:$0xff]
      %vm218 = vcmask 31744
      %219 = vst.msk [vmem:[#allocation2] sm:$0xff] %vm218, %v202
      %220 = vst.msk [vmem:[#allocation2 + $0x8] sm:$0xff] %vm218, %v203
      %221 = vst.msk [vmem:[#allocation2 + $0x10] sm:$0xff] %vm218, %v204
      %222 = vst.msk [vmem:[#allocation2 + $0x18] sm:$0xff] %vm218, %v205
      %223 = vst.msk [vmem:[#allocation2 + $0x20] sm:$0xff] %vm218, %v206
      %224 = vst.msk [vmem:[#allocation2 + $0x28] sm:$0xff] %vm218, %v207
      %225 = vst.msk [vmem:[#allocation2 + $0x30] sm:$0xff] %vm218, %v208
      %226 = vst.msk [vmem:[#allocation2 + $0x38] sm:$0xff] %vm218, %v209
      %227 = vst.msk [vmem:[#allocation2 + $0x40] sm:$0xff] %vm218, %v210
      %228 = vst.msk [vmem:[#allocation2 + $0x48] sm:$0xff] %vm218, %v211
      %229 = vst.msk [vmem:[#allocation2 + $0x50] sm:$0xff] %vm218, %v212
      %230 = vst.msk [vmem:[#allocation2 + $0x58] sm:$0xff] %vm218, %v213
      %231 = vst.msk [vmem:[#allocation2 + $0x60] sm:$0xff] %vm218, %v214
      %232 = vst.msk [vmem:[#allocation2 + $0x68] sm:$0xff] %vm218, %v215
      %233 = vst.msk [vmem:[#allocation2 + $0x70] sm:$0xff] %vm218, %v216
      %234 = vst.msk [vmem:[#allocation2 + $0x78] sm:$0xff] %vm218, %v217
      %s235 = sadd.s32 %s199, 5
      %s236 = smul.u32 %s235, 80
      %s237 = scalar_lea.vmem %s187, %s236
      %v238 = vld [vmem:[%s237] sm:$0xff]
      %v239 = vld [vmem:[%s237 + $0x10] sm:$0xff]
      %v240 = vld [vmem:[%s237 + $0x20] sm:$0xff]
      %v241 = vld [vmem:[%s237 + $0x30] sm:$0xff]
      %v242 = vld [vmem:[%s237 + $0x50] sm:$0xff]
      %v243 = vld [vmem:[%s237 + $0x60] sm:$0xff]
      %v244 = vld [vmem:[%s237 + $0x70] sm:$0xff]
      %v245 = vld [vmem:[%s237 + $0x80] sm:$0xff]
      %v246 = vld [vmem:[%s237 + $0xa0] sm:$0xff]
      %v247 = vld [vmem:[%s237 + $0xb0] sm:$0xff]
      %v248 = vld [vmem:[%s237 + $0xc0] sm:$0xff]
      %v249 = vld [vmem:[%s237 + $0xd0] sm:$0xff]
      %v250 = vld [vmem:[%s237 + $0xf0] sm:$0xff]
      %v251 = vld [vmem:[%s237 + $0x100] sm:$0xff]
      %v252 = vld [vmem:[%s237 + $0x110] sm:$0xff]
      %v253 = vld [vmem:[%s237 + $0x120] sm:$0xff]
      %270 = vrot.lane.b32.xlu0 %v238, 4
      %v271 = vpop.permute.xlu0 %270
      %272 = vrot.lane.b32.xlu0 %v239, 4
      %v273 = vpop.permute.xlu0 %272
      %274 = vrot.lane.b32.xlu0 %v240, 4
      %v275 = vpop.permute.xlu0 %274
      %276 = vrot.lane.b32.xlu0 %v241, 4
      %v277 = vpop.permute.xlu0 %276
      %278 = vrot.lane.b32.xlu0 %v242, 4
      %v279 = vpop.permute.xlu0 %278
      %280 = vrot.lane.b32.xlu0 %v243, 4
      %v281 = vpop.permute.xlu0 %280
      %282 = vrot.lane.b32.xlu0 %v244, 4
      %v283 = vpop.permute.xlu0 %282
      %284 = vrot.lane.b32.xlu0 %v245, 4
      %v285 = vpop.permute.xlu0 %284
      %286 = vrot.lane.b32.xlu0 %v246, 4
      %v287 = vpop.permute.xlu0 %286
      %288 = vrot.lane.b32.xlu0 %v247, 4
      %v289 = vpop.permute.xlu0 %288
      %290 = vrot.lane.b32.xlu0 %v248, 4
      %v291 = vpop.permute.xlu0 %290
      %292 = vrot.lane.b32.xlu0 %v249, 4
      %v293 = vpop.permute.xlu0 %292
      %294 = vrot.lane.b32.xlu0 %v250, 4
      %v295 = vpop.permute.xlu0 %294
      %296 = vrot.lane.b32.xlu0 %v251, 4
      %v297 = vpop.permute.xlu0 %296
      %298 = vrot.lane.b32.xlu0 %v252, 4
      %v299 = vpop.permute.xlu0 %298
      %300 = vrot.lane.b32.xlu0 %v253, 4
      %v301 = vpop.permute.xlu0 %300
      %vm318 = vcmask 64544
      %319 = vst.msk [vmem:[#allocation2] sm:$0xff] %vm318, %v271
      %320 = vst.msk [vmem:[#allocation2 + $0x8] sm:$0xff] %vm318, %v273
      %321 = vst.msk [vmem:[#allocation2 + $0x10] sm:$0xff] %vm318, %v275
      %322 = vst.msk [vmem:[#allocation2 + $0x18] sm:$0xff] %vm318, %v277
      %323 = vst.msk [vmem:[#allocation2 + $0x20] sm:$0xff] %vm318, %v279
      %324 = vst.msk [vmem:[#allocation2 + $0x28] sm:$0xff] %vm318, %v281
      %325 = vst.msk [vmem:[#allocation2 + $0x30] sm:$0xff] %vm318, %v283
      %326 = vst.msk [vmem:[#allocation2 + $0x38] sm:$0xff] %vm318, %v285
      %327 = vst.msk [vmem:[#allocation2 + $0x40] sm:$0xff] %vm318, %v287
      %328 = vst.msk [vmem:[#allocation2 + $0x48] sm:$0xff] %vm318, %v289
      %329 = vst.msk [vmem:[#allocation2 + $0x50] sm:$0xff] %vm318, %v291
      %330 = vst.msk [vmem:[#allocation2 + $0x58] sm:$0xff] %vm318, %v293
      %331 = vst.msk [vmem:[#allocation2 + $0x60] sm:$0xff] %vm318, %v295
      %332 = vst.msk [vmem:[#allocation2 + $0x68] sm:$0xff] %vm318, %v297
      %333 = vst.msk [vmem:[#allocation2 + $0x70] sm:$0xff] %vm318, %v299
      %334 = vst.msk [vmem:[#allocation2 + $0x78] sm:$0xff] %vm318, %v301
      %v335 = vld [vmem:[%s201 + $0x1] sm:$0xff]
      %v336 = vld [vmem:[%s201 + $0x11] sm:$0xff]
      %v337 = vld [vmem:[%s201 + $0x21] sm:$0xff]
      %v338 = vld [vmem:[%s201 + $0x31] sm:$0xff]
      %v339 = vld [vmem:[%s201 + $0x51] sm:$0xff]
      %v340 = vld [vmem:[%s201 + $0x61] sm:$0xff]
      %v341 = vld [vmem:[%s201 + $0x71] sm:$0xff]
      %v342 = vld [vmem:[%s201 + $0x81] sm:$0xff]
      %v343 = vld [vmem:[%s201 + $0xa1] sm:$0xff]
      %v344 = vld [vmem:[%s201 + $0xb1] sm:$0xff]
      %v345 = vld [vmem:[%s201 + $0xc1] sm:$0xff]
      %v346 = vld [vmem:[%s201 + $0xd1] sm:$0xff]
      %v347 = vld [vmem:[%s201 + $0xf1] sm:$0xff]
      %v348 = vld [vmem:[%s201 + $0x101] sm:$0xff]
      %v349 = vld [vmem:[%s201 + $0x111] sm:$0xff]
      %v350 = vld [vmem:[%s201 + $0x121] sm:$0xff]
      %367 = vrot.lane.b32.xlu0 %v335, 8
      %v368 = vpop.permute.xlu0 %367
      %369 = vrot.lane.b32.xlu0 %v336, 8
      %v370 = vpop.permute.xlu0 %369
      %371 = vrot.lane.b32.xlu0 %v337, 8
      %v372 = vpop.permute.xlu0 %371
      %373 = vrot.lane.b32.xlu0 %v338, 8
      %v374 = vpop.permute.xlu0 %373
      %375 = vrot.lane.b32.xlu0 %v339, 8
      %v376 = vpop.permute.xlu0 %375
      %377 = vrot.lane.b32.xlu0 %v340, 8
      %v378 = vpop.permute.xlu0 %377
      %379 = vrot.lane.b32.xlu0 %v341, 8
      %v380 = vpop.permute.xlu0 %379
      %381 = vrot.lane.b32.xlu0 %v342, 8
      %v382 = vpop.permute.xlu0 %381
      %383 = vrot.lane.b32.xlu0 %v343, 8
      %v384 = vpop.permute.xlu0 %383
      %385 = vrot.lane.b32.xlu0 %v344, 8
      %v386 = vpop.permute.xlu0 %385
      %387 = vrot.lane.b32.xlu0 %v345, 8
      %v388 = vpop.permute.xlu0 %387
      %389 = vrot.lane.b32.xlu0 %v346, 8
      %v390 = vpop.permute.xlu0 %389
      %391 = vrot.lane.b32.xlu0 %v347, 8
      %v392 = vpop.permute.xlu0 %391
      %393 = vrot.lane.b32.xlu0 %v348, 8
      %v394 = vpop.permute.xlu0 %393
      %395 = vrot.lane.b32.xlu0 %v349, 8
      %v396 = vpop.permute.xlu0 %395
      %397 = vrot.lane.b32.xlu0 %v350, 8
      %v398 = vpop.permute.xlu0 %397
      %vm415 = vcmask 97344
      %416 = vst.msk [vmem:[#allocation2] sm:$0xff] %vm415, %v368
      %417 = vst.msk [vmem:[#allocation2 + $0x8] sm:$0xff] %vm415, %v370
      %418 = vst.msk [vmem:[#allocation2 + $0x10] sm:$0xff] %vm415, %v372
      %419 = vst.msk [vmem:[#allocation2 + $0x18] sm:$0xff] %vm415, %v374
      %420 = vst.msk [vmem:[#allocation2 + $0x20] sm:$0xff] %vm415, %v376
      %421 = vst.msk [vmem:[#allocation2 + $0x28] sm:$0xff] %vm415, %v378
      %422 = vst.msk [vmem:[#allocation2 + $0x30] sm:$0xff] %vm415, %v380
      %423 = vst.msk [vmem:[#allocation2 + $0x38] sm:$0xff] %vm415, %v382
      %424 = vst.msk [vmem:[#allocation2 + $0x40] sm:$0xff] %vm415, %v384
      %425 = vst.msk [vmem:[#allocation2 + $0x48] sm:$0xff] %vm415, %v386
      %426 = vst.msk [vmem:[#allocation2 + $0x50] sm:$0xff] %vm415, %v388
      %427 = vst.msk [vmem:[#allocation2 + $0x58] sm:$0xff] %vm415, %v390
      %428 = vst.msk [vmem:[#allocation2 + $0x60] sm:$0xff] %vm415, %v392
      %429 = vst.msk [vmem:[#allocation2 + $0x68] sm:$0xff] %vm415, %v394
      %430 = vst.msk [vmem:[#allocation2 + $0x70] sm:$0xff] %vm415, %v396
      %431 = vst.msk [vmem:[#allocation2 + $0x78] sm:$0xff] %vm415, %v398
      %s432 = sadd.s32 %s199, 10
      %s433 = smul.u32 %s432, 80
      %s434 = scalar_lea.vmem %s187, %s433
      %v435 = vld [vmem:[%s434] sm:$0xff]
      %v436 = vld [vmem:[%s434 + $0x10] sm:$0xff]
      %v437 = vld [vmem:[%s434 + $0x20] sm:$0xff]
      %v438 = vld [vmem:[%s434 + $0x30] sm:$0xff]
      %v439 = vld [vmem:[%s434 + $0x50] sm:$0xff]
      %v440 = vld [vmem:[%s434 + $0x60] sm:$0xff]
      %v441 = vld [vmem:[%s434 + $0x70] sm:$0xff]
      %v442 = vld [vmem:[%s434 + $0x80] sm:$0xff]
      %v443 = vld [vmem:[%s434 + $0xa0] sm:$0xff]
      %v444 = vld [vmem:[%s434 + $0xb0] sm:$0xff]
      %v445 = vld [vmem:[%s434 + $0xc0] sm:$0xff]
      %v446 = vld [vmem:[%s434 + $0xd0] sm:$0xff]
      %v447 = vld [vmem:[%s434 + $0xf0] sm:$0xff]
      %v448 = vld [vmem:[%s434 + $0x100] sm:$0xff]
      %v449 = vld [vmem:[%s434 + $0x110] sm:$0xff]
      %v450 = vld [vmem:[%s434 + $0x120] sm:$0xff]
      %467 = vrot.lane.b32.xlu0 %v435, 12
      %v468 = vpop.permute.xlu0 %467
      %469 = vrot.lane.b32.xlu0 %v436, 12
      %v470 = vpop.permute.xlu0 %469
      %471 = vrot.lane.b32.xlu0 %v437, 12
      %v472 = vpop.permute.xlu0 %471
      %473 = vrot.lane.b32.xlu0 %v438, 12
      %v474 = vpop.permute.xlu0 %473
      %475 = vrot.lane.b32.xlu0 %v439, 12
      %v476 = vpop.permute.xlu0 %475
      %477 = vrot.lane.b32.xlu0 %v440, 12
      %v478 = vpop.permute.xlu0 %477
      %479 = vrot.lane.b32.xlu0 %v441, 12
      %v480 = vpop.permute.xlu0 %479
      %481 = vrot.lane.b32.xlu0 %v442, 12
      %v482 = vpop.permute.xlu0 %481
      %483 = vrot.lane.b32.xlu0 %v443, 12
      %v484 = vpop.permute.xlu0 %483
      %485 = vrot.lane.b32.xlu0 %v444, 12
      %v486 = vpop.permute.xlu0 %485
      %487 = vrot.lane.b32.xlu0 %v445, 12
      %v488 = vpop.permute.xlu0 %487
      %489 = vrot.lane.b32.xlu0 %v446, 12
      %v490 = vpop.permute.xlu0 %489
      %491 = vrot.lane.b32.xlu0 %v447, 12
      %v492 = vpop.permute.xlu0 %491
      %493 = vrot.lane.b32.xlu0 %v448, 12
      %v494 = vpop.permute.xlu0 %493
      %495 = vrot.lane.b32.xlu0 %v449, 12
      %v496 = vpop.permute.xlu0 %495
      %497 = vrot.lane.b32.xlu0 %v450, 12
      %v498 = vpop.permute.xlu0 %497
      %vm515 = vcmask 130144
      %516 = vst.msk [vmem:[#allocation2] sm:$0xff] %vm515, %v468
      %517 = vst.msk [vmem:[#allocation2 + $0x8] sm:$0xff] %vm515, %v470
      %518 = vst.msk [vmem:[#allocation2 + $0x10] sm:$0xff] %vm515, %v472
      %519 = vst.msk [vmem:[#allocation2 + $0x18] sm:$0xff] %vm515, %v474
      %520 = vst.msk [vmem:[#allocation2 + $0x20] sm:$0xff] %vm515, %v476
      %521 = vst.msk [vmem:[#allocation2 + $0x28] sm:$0xff] %vm515, %v478
      %522 = vst.msk [vmem:[#allocation2 + $0x30] sm:$0xff] %vm515, %v480
      %523 = vst.msk [vmem:[#allocation2 + $0x38] sm:$0xff] %vm515, %v482
      %524 = vst.msk [vmem:[#allocation2 + $0x40] sm:$0xff] %vm515, %v484
      %525 = vst.msk [vmem:[#allocation2 + $0x48] sm:$0xff] %vm515, %v486
      %526 = vst.msk [vmem:[#allocation2 + $0x50] sm:$0xff] %vm515, %v488
      %527 = vst.msk [vmem:[#allocation2 + $0x58] sm:$0xff] %vm515, %v490
      %528 = vst.msk [vmem:[#allocation2 + $0x60] sm:$0xff] %vm515, %v492
      %529 = vst.msk [vmem:[#allocation2 + $0x68] sm:$0xff] %vm515, %v494
      %530 = vst.msk [vmem:[#allocation2 + $0x70] sm:$0xff] %vm515, %v496
      %531 = vst.msk [vmem:[#allocation2 + $0x78] sm:$0xff] %vm515, %v498
      %s532 = sadd.s32 %s199, 15
      %s533 = smul.u32 %s532, 80
      %s534 = scalar_lea.vmem %s187, %s533
      %v535 = vld [vmem:[%s534] sm:$0xff]
      %v536 = vld [vmem:[%s534 + $0x10] sm:$0xff]
      %v537 = vld [vmem:[%s534 + $0x20] sm:$0xff]
      %v538 = vld [vmem:[%s534 + $0x30] sm:$0xff]
      %v539 = vld [vmem:[%s534 + $0x50] sm:$0xff]
      %v540 = vld [vmem:[%s534 + $0x60] sm:$0xff]
      %v541 = vld [vmem:[%s534 + $0x70] sm:$0xff]
      %v542 = vld [vmem:[%s534 + $0x80] sm:$0xff]
      %v543 = vld [vmem:[%s534 + $0xa0] sm:$0xff]
      %v544 = vld [vmem:[%s534 + $0xb0] sm:$0xff]
      %v545 = vld [vmem:[%s534 + $0xc0] sm:$0xff]
      %v546 = vld [vmem:[%s534 + $0xd0] sm:$0xff]
      %v547 = vld [vmem:[%s534 + $0xf0] sm:$0xff]
      %v548 = vld [vmem:[%s534 + $0x100] sm:$0xff]
      %v549 = vld [vmem:[%s534 + $0x110] sm:$0xff]
      %v550 = vld [vmem:[%s534 + $0x120] sm:$0xff]
      %567 = vrot.lane.b32.xlu0 %v535, 16
      %v568 = vpop.permute.xlu0 %567
      %569 = vrot.lane.b32.xlu0 %v536, 16
      %v570 = vpop.permute.xlu0 %569
      %571 = vrot.lane.b32.xlu0 %v537, 16
      %v572 = vpop.permute.xlu0 %571
      %573 = vrot.lane.b32.xlu0 %v538, 16
      %v574 = vpop.permute.xlu0 %573
      %575 = vrot.lane.b32.xlu0 %v539, 16
      %v576 = vpop.permute.xlu0 %575
      %577 = vrot.lane.b32.xlu0 %v540, 16
      %v578 = vpop.permute.xlu0 %577
      %579 = vrot.lane.b32.xlu0 %v541, 16
      %v580 = vpop.permute.xlu0 %579
      %581 = vrot.lane.b32.xlu0 %v542, 16
      %v582 = vpop.permute.xlu0 %581
      %583 = vrot.lane.b32.xlu0 %v543, 16
      %v584 = vpop.permute.xlu0 %583
      %585 = vrot.lane.b32.xlu0 %v544, 16
      %v586 = vpop.permute.xlu0 %585
      %587 = vrot.lane.b32.xlu0 %v545, 16
      %v588 = vpop.permute.xlu0 %587
      %589 = vrot.lane.b32.xlu0 %v546, 16
      %v590 = vpop.permute.xlu0 %589
      %591 = vrot.lane.b32.xlu0 %v547, 16
      %v592 = vpop.permute.xlu0 %591
      %593 = vrot.lane.b32.xlu0 %v548, 16
      %v594 = vpop.permute.xlu0 %593
      %595 = vrot.lane.b32.xlu0 %v549, 16
      %v596 = vpop.permute.xlu0 %595
      %597 = vrot.lane.b32.xlu0 %v550, 16
      %v598 = vpop.permute.xlu0 %597
      %vm615 = vcmask 162944
      %616 = vst.msk [vmem:[#allocation2] sm:$0xff] %vm615, %v568
      %617 = vst.msk [vmem:[#allocation2 + $0x8] sm:$0xff] %vm615, %v570
      %618 = vst.msk [vmem:[#allocation2 + $0x10] sm:$0xff] %vm615, %v572
      %619 = vst.msk [vmem:[#allocation2 + $0x18] sm:$0xff] %vm615, %v574
      %620 = vst.msk [vmem:[#allocation2 + $0x20] sm:$0xff] %vm615, %v576
      %621 = vst.msk [vmem:[#allocation2 + $0x28] sm:$0xff] %vm615, %v578
      %622 = vst.msk [vmem:[#allocation2 + $0x30] sm:$0xff] %vm615, %v580
      %623 = vst.msk [vmem:[#allocation2 + $0x38] sm:$0xff] %vm615, %v582
      %624 = vst.msk [vmem:[#allocation2 + $0x40] sm:$0xff] %vm615, %v584
      %625 = vst.msk [vmem:[#allocation2 + $0x48] sm:$0xff] %vm615, %v586
      %626 = vst.msk [vmem:[#allocation2 + $0x50] sm:$0xff] %vm615, %v588
      %627 = vst.msk [vmem:[#allocation2 + $0x58] sm:$0xff] %vm615, %v590
      %628 = vst.msk [vmem:[#allocation2 + $0x60] sm:$0xff] %vm615, %v592
      %629 = vst.msk [vmem:[#allocation2 + $0x68] sm:$0xff] %vm615, %v594
      %630 = vst.msk [vmem:[#allocation2 + $0x70] sm:$0xff] %vm615, %v596
      %631 = vst.msk [vmem:[#allocation2 + $0x78] sm:$0xff] %vm615, %v598
      %v632 = vld [vmem:[%s434 + $0x1] sm:$0xff]
      %v633 = vld [vmem:[%s434 + $0x11] sm:$0xff]
      %v634 = vld [vmem:[%s434 + $0x21] sm:$0xff]
      %v635 = vld [vmem:[%s434 + $0x31] sm:$0xff]
      %v636 = vld [vmem:[%s434 + $0x51] sm:$0xff]
      %v637 = vld [vmem:[%s434 + $0x61] sm:$0xff]
      %v638 = vld [vmem:[%s434 + $0x71] sm:$0xff]
      %v639 = vld [vmem:[%s434 + $0x81] sm:$0xff]
      %v640 = vld [vmem:[%s434 + $0xa1] sm:$0xff]
      %v641 = vld [vmem:[%s434 + $0xb1] sm:$0xff]
      %v642 = vld [vmem:[%s434 + $0xc1] sm:$0xff]
      %v643 = vld [vmem:[%s434 + $0xd1] sm:$0xff]
      %v644 = vld [vmem:[%s434 + $0xf1] sm:$0xff]
      %v645 = vld [vmem:[%s434 + $0x101] sm:$0xff]
      %v646 = vld [vmem:[%s434 + $0x111] sm:$0xff]
      %v647 = vld [vmem:[%s434 + $0x121] sm:$0xff]
      %664 = vrot.lane.b32.xlu0 %v632, 20
      %v665 = vpop.permute.xlu0 %664
      %666 = vrot.lane.b32.xlu0 %v633, 20
      %v667 = vpop.permute.xlu0 %666
      %668 = vrot.lane.b32.xlu0 %v634, 20
      %v669 = vpop.permute.xlu0 %668
      %670 = vrot.lane.b32.xlu0 %v635, 20
      %v671 = vpop.permute.xlu0 %670
      %672 = vrot.lane.b32.xlu0 %v636, 20
      %v673 = vpop.permute.xlu0 %672
      %674 = vrot.lane.b32.xlu0 %v637, 20
      %v675 = vpop.permute.xlu0 %674
      %676 = vrot.lane.b32.xlu0 %v638, 20
      %v677 = vpop.permute.xlu0 %676
      %678 = vrot.lane.b32.xlu0 %v639, 20
      %v679 = vpop.permute.xlu0 %678
      %680 = vrot.lane.b32.xlu0 %v640, 20
      %v681 = vpop.permute.xlu0 %680
      %682 = vrot.lane.b32.xlu0 %v641, 20
      %v683 = vpop.permute.xlu0 %682
      %684 = vrot.lane.b32.xlu0 %v642, 20
      %v685 = vpop.permute.xlu0 %684
      %686 = vrot.lane.b32.xlu0 %v643, 20
      %v687 = vpop.permute.xlu0 %686
      %688 = vrot.lane.b32.xlu0 %v644, 20
      %v689 = vpop.permute.xlu0 %688
      %690 = vrot.lane.b32.xlu0 %v645, 20
      %v691 = vpop.permute.xlu0 %690
      %692 = vrot.lane.b32.xlu0 %v646, 20
      %v693 = vpop.permute.xlu0 %692
      %694 = vrot.lane.b32.xlu0 %v647, 20
      %v695 = vpop.permute.xlu0 %694
      %vm712 = vcmask 195744
      %713 = vst.msk [vmem:[#allocation2] sm:$0xff] %vm712, %v665
      %714 = vst.msk [vmem:[#allocation2 + $0x8] sm:$0xff] %vm712, %v667
      %715 = vst.msk [vmem:[#allocation2 + $0x10] sm:$0xff] %vm712, %v669
      %716 = vst.msk [vmem:[#allocation2 + $0x18] sm:$0xff] %vm712, %v671
      %717 = vst.msk [vmem:[#allocation2 + $0x20] sm:$0xff] %vm712, %v673
      %718 = vst.msk [vmem:[#allocation2 + $0x28] sm:$0xff] %vm712, %v675
      %719 = vst.msk [vmem:[#allocation2 + $0x30] sm:$0xff] %vm712, %v677
      %720 = vst.msk [vmem:[#allocation2 + $0x38] sm:$0xff] %vm712, %v679
      %721 = vst.msk [vmem:[#allocation2 + $0x40] sm:$0xff] %vm712, %v681
      %722 = vst.msk [vmem:[#allocation2 + $0x48] sm:$0xff] %vm712, %v683
      %723 = vst.msk [vmem:[#allocation2 + $0x50] sm:$0xff] %vm712, %v685
      %724 = vst.msk [vmem:[#allocation2 + $0x58] sm:$0xff] %vm712, %v687
      %725 = vst.msk [vmem:[#allocation2 + $0x60] sm:$0xff] %vm712, %v689
      %726 = vst.msk [vmem:[#allocation2 + $0x68] sm:$0xff] %vm712, %v691
      %727 = vst.msk [vmem:[#allocation2 + $0x70] sm:$0xff] %vm712, %v693
      %728 = vst.msk [vmem:[#allocation2 + $0x78] sm:$0xff] %vm712, %v695
      %s729 = sadd.s32 16, %s200
      %s730 = scalar_lea.vmem %s187, %s729
      %v731 = vld [vmem:[%s730] sm:$0xff]
      %v732 = vld [vmem:[%s730 + $0x10] sm:$0xff]
      %v733 = vld [vmem:[%s730 + $0x20] sm:$0xff]
      %v734 = vld [vmem:[%s730 + $0x30] sm:$0xff]
      %v735 = vld [vmem:[%s730 + $0x50] sm:$0xff]
      %v736 = vld [vmem:[%s730 + $0x60] sm:$0xff]
      %v737 = vld [vmem:[%s730 + $0x70] sm:$0xff]
      %v738 = vld [vmem:[%s730 + $0x80] sm:$0xff]
      %v739 = vld [vmem:[%s730 + $0xa0] sm:$0xff]
      %v740 = vld [vmem:[%s730 + $0xb0] sm:$0xff]
      %v741 = vld [vmem:[%s730 + $0xc0] sm:$0xff]
      %v742 = vld [vmem:[%s730 + $0xd0] sm:$0xff]
      %v743 = vld [vmem:[%s730 + $0xf0] sm:$0xff]
      %v744 = vld [vmem:[%s730 + $0x100] sm:$0xff]
      %v745 = vld [vmem:[%s730 + $0x110] sm:$0xff]
      %v746 = vld [vmem:[%s730 + $0x120] sm:$0xff]
      %763 = vrot.lane.b32.xlu0 %v731, 24
      %v764 = vpop.permute.xlu0 %763
      %765 = vrot.lane.b32.xlu0 %v732, 24
      %v766 = vpop.permute.xlu0 %765
      %767 = vrot.lane.b32.xlu0 %v733, 24
      %v768 = vpop.permute.xlu0 %767
      %769 = vrot.lane.b32.xlu0 %v734, 24
      %v770 = vpop.permute.xlu0 %769
      %771 = vrot.lane.b32.xlu0 %v735, 24
      %v772 = vpop.permute.xlu0 %771
      %773 = vrot.lane.b32.xlu0 %v736, 24
      %v774 = vpop.permute.xlu0 %773
      %775 = vrot.lane.b32.xlu0 %v737, 24
      %v776 = vpop.permute.xlu0 %775
      %777 = vrot.lane.b32.xlu0 %v738, 24
      %v778 = vpop.permute.xlu0 %777
      %779 = vrot.lane.b32.xlu0 %v739, 24
      %v780 = vpop.permute.xlu0 %779
      %781 = vrot.lane.b32.xlu0 %v740, 24
      %v782 = vpop.permute.xlu0 %781
      %783 = vrot.lane.b32.xlu0 %v741, 24
      %v784 = vpop.permute.xlu0 %783
      %785 = vrot.lane.b32.xlu0 %v742, 24
      %v786 = vpop.permute.xlu0 %785
      %787 = vrot.lane.b32.xlu0 %v743, 24
      %v788 = vpop.permute.xlu0 %787
      %789 = vrot.lane.b32.xlu0 %v744, 24
      %v790 = vpop.permute.xlu0 %789
      %791 = vrot.lane.b32.xlu0 %v745, 24
      %v792 = vpop.permute.xlu0 %791
      %793 = vrot.lane.b32.xlu0 %v746, 24
      %v794 = vpop.permute.xlu0 %793
      %vm811 = vcmask 228544
      %812 = vst.msk [vmem:[#allocation2] sm:$0xff] %vm811, %v764
      %813 = vst.msk [vmem:[#allocation2 + $0x8] sm:$0xff] %vm811, %v766
      %814 = vst.msk [vmem:[#allocation2 + $0x10] sm:$0xff] %vm811, %v768
      %815 = vst.msk [vmem:[#allocation2 + $0x18] sm:$0xff] %vm811, %v770
      %816 = vst.msk [vmem:[#allocation2 + $0x20] sm:$0xff] %vm811, %v772
      %817 = vst.msk [vmem:[#allocation2 + $0x28] sm:$0xff] %vm811, %v774
      %818 = vst.msk [vmem:[#allocation2 + $0x30] sm:$0xff] %vm811, %v776
      %819 = vst.msk [vmem:[#allocation2 + $0x38] sm:$0xff] %vm811, %v778
      %820 = vst.msk [vmem:[#allocation2 + $0x40] sm:$0xff] %vm811, %v780
      %821 = vst.msk [vmem:[#allocation2 + $0x48] sm:$0xff] %vm811, %v782
      %822 = vst.msk [vmem:[#allocation2 + $0x50] sm:$0xff] %vm811, %v784
      %823 = vst.msk [vmem:[#allocation2 + $0x58] sm:$0xff] %vm811, %v786
      %824 = vst.msk [vmem:[#allocation2 + $0x60] sm:$0xff] %vm811, %v788
      %825 = vst.msk [vmem:[#allocation2 + $0x68] sm:$0xff] %vm811, %v790
      %826 = vst.msk [vmem:[#allocation2 + $0x70] sm:$0xff] %vm811, %v792
      %827 = vst.msk [vmem:[#allocation2 + $0x78] sm:$0xff] %vm811, %v794
      %s828 = sadd.s32 16, %s236
      %s829 = scalar_lea.vmem %s187, %s828
      %v830 = vld [vmem:[%s829] sm:$0xff]
      %v831 = vld [vmem:[%s829 + $0x10] sm:$0xff]
      %v832 = vld [vmem:[%s829 + $0x20] sm:$0xff]
      %v833 = vld [vmem:[%s829 + $0x30] sm:$0xff]
      %v834 = vld [vmem:[%s829 + $0x50] sm:$0xff]
      %v835 = vld [vmem:[%s829 + $0x60] sm:$0xff]
      %v836 = vld [vmem:[%s829 + $0x70] sm:$0xff]
      %v837 = vld [vmem:[%s829 + $0x80] sm:$0xff]
      %v838 = vld [vmem:[%s829 + $0xa0] sm:$0xff]
      %v839 = vld [vmem:[%s829 + $0xb0] sm:$0xff]
      %v840 = vld [vmem:[%s829 + $0xc0] sm:$0xff]
      %v841 = vld [vmem:[%s829 + $0xd0] sm:$0xff]
      %v842 = vld [vmem:[%s829 + $0xf0] sm:$0xff]
      %v843 = vld [vmem:[%s829 + $0x100] sm:$0xff]
      %v844 = vld [vmem:[%s829 + $0x110] sm:$0xff]
      %v845 = vld [vmem:[%s829 + $0x120] sm:$0xff]
      %862 = vrot.lane.b32.xlu0 %v830, 28
      %v863 = vpop.permute.xlu0 %862
      %864 = vrot.lane.b32.xlu0 %v831, 28
      %v865 = vpop.permute.xlu0 %864
      %866 = vrot.lane.b32.xlu0 %v832, 28
      %v867 = vpop.permute.xlu0 %866
      %868 = vrot.lane.b32.xlu0 %v833, 28
      %v869 = vpop.permute.xlu0 %868
      %870 = vrot.lane.b32.xlu0 %v834, 28
      %v871 = vpop.permute.xlu0 %870
      %872 = vrot.lane.b32.xlu0 %v835, 28
      %v873 = vpop.permute.xlu0 %872
      %874 = vrot.lane.b32.xlu0 %v836, 28
      %v875 = vpop.permute.xlu0 %874
      %876 = vrot.lane.b32.xlu0 %v837, 28
      %v877 = vpop.permute.xlu0 %876
      %878 = vrot.lane.b32.xlu0 %v838, 28
      %v879 = vpop.permute.xlu0 %878
      %880 = vrot.lane.b32.xlu0 %v839, 28
      %v881 = vpop.permute.xlu0 %880
      %882 = vrot.lane.b32.xlu0 %v840, 28
      %v883 = vpop.permute.xlu0 %882
      %884 = vrot.lane.b32.xlu0 %v841, 28
      %v885 = vpop.permute.xlu0 %884
      %886 = vrot.lane.b32.xlu0 %v842, 28
      %v887 = vpop.permute.xlu0 %886
      %888 = vrot.lane.b32.xlu0 %v843, 28
      %v889 = vpop.permute.xlu0 %888
      %890 = vrot.lane.b32.xlu0 %v844, 28
      %v891 = vpop.permute.xlu0 %890
      %892 = vrot.lane.b32.xlu0 %v845, 28
      %v893 = vpop.permute.xlu0 %892
      %vm910 = vcmask 261344
      %911 = vst.msk [vmem:[#allocation2] sm:$0xff] %vm910, %v863
      %912 = vst.msk [vmem:[#allocation2 + $0x8] sm:$0xff] %vm910, %v865
      %913 = vst.msk [vmem:[#allocation2 + $0x10] sm:$0xff] %vm910, %v867
      %914 = vst.msk [vmem:[#allocation2 + $0x18] sm:$0xff] %vm910, %v869
      %915 = vst.msk [vmem:[#allocation2 + $0x20] sm:$0xff] %vm910, %v871
      %916 = vst.msk [vmem:[#allocation2 + $0x28] sm:$0xff] %vm910, %v873
      %917 = vst.msk [vmem:[#allocation2 + $0x30] sm:$0xff] %vm910, %v875
      %918 = vst.msk [vmem:[#allocation2 + $0x38] sm:$0xff] %vm910, %v877
      %919 = vst.msk [vmem:[#allocation2 + $0x40] sm:$0xff] %vm910, %v879
      %920 = vst.msk [vmem:[#allocation2 + $0x48] sm:$0xff] %vm910, %v881
      %921 = vst.msk [vmem:[#allocation2 + $0x50] sm:$0xff] %vm910, %v883
      %922 = vst.msk [vmem:[#allocation2 + $0x58] sm:$0xff] %vm910, %v885
      %923 = vst.msk [vmem:[#allocation2 + $0x60] sm:$0xff] %vm910, %v887
      %924 = vst.msk [vmem:[#allocation2 + $0x68] sm:$0xff] %vm910, %v889
      %925 = vst.msk [vmem:[#allocation2 + $0x70] sm:$0xff] %vm910, %v891
      %926 = vst.msk [vmem:[#allocation2 + $0x78] sm:$0xff] %vm910, %v893
      %v927 = vld [vmem:[%s730 + $0x1] sm:$0xff]
      %v928 = vld [vmem:[%s730 + $0x11] sm:$0xff]
      %v929 = vld [vmem:[%s730 + $0x21] sm:$0xff]
      %v930 = vld [vmem:[%s730 + $0x31] sm:$0xff]
      %v931 = vld [vmem:[%s730 + $0x51] sm:$0xff]
      %v932 = vld [vmem:[%s730 + $0x61] sm:$0xff]
      %v933 = vld [vmem:[%s730 + $0x71] sm:$0xff]
      %v934 = vld [vmem:[%s730 + $0x81] sm:$0xff]
      %v935 = vld [vmem:[%s730 + $0xa1] sm:$0xff]
      %v936 = vld [vmem:[%s730 + $0xb1] sm:$0xff]
      %v937 = vld [vmem:[%s730 + $0xc1] sm:$0xff]
      %v938 = vld [vmem:[%s730 + $0xd1] sm:$0xff]
      %v939 = vld [vmem:[%s730 + $0xf1] sm:$0xff]
      %v940 = vld [vmem:[%s730 + $0x101] sm:$0xff]
      %v941 = vld [vmem:[%s730 + $0x111] sm:$0xff]
      %v942 = vld [vmem:[%s730 + $0x121] sm:$0xff]
      %959 = vrot.lane.b32.xlu0 %v927, 32
      %v960 = vpop.permute.xlu0 %959
      %961 = vrot.lane.b32.xlu0 %v928, 32
      %v962 = vpop.permute.xlu0 %961
      %963 = vrot.lane.b32.xlu0 %v929, 32
      %v964 = vpop.permute.xlu0 %963
      %965 = vrot.lane.b32.xlu0 %v930, 32
      %v966 = vpop.permute.xlu0 %965
      %967 = vrot.lane.b32.xlu0 %v931, 32
      %v968 = vpop.permute.xlu0 %967
      %969 = vrot.lane.b32.xlu0 %v932, 32
      %v970 = vpop.permute.xlu0 %969
      %971 = vrot.lane.b32.xlu0 %v933, 32
      %v972 = vpop.permute.xlu0 %971
      %973 = vrot.lane.b32.xlu0 %v934, 32
      %v974 = vpop.permute.xlu0 %973
      %975 = vrot.lane.b32.xlu0 %v935, 32
      %v976 = vpop.permute.xlu0 %975
      %977 = vrot.lane.b32.xlu0 %v936, 32
      %v978 = vpop.permute.xlu0 %977
      %979 = vrot.lane.b32.xlu0 %v937, 32
      %v980 = vpop.permute.xlu0 %979
      %981 = vrot.lane.b32.xlu0 %v938, 32
      %v982 = vpop.permute.xlu0 %981
      %983 = vrot.lane.b32.xlu0 %v939, 32
      %v984 = vpop.permute.xlu0 %983
      %985 = vrot.lane.b32.xlu0 %v940, 32
      %v986 = vpop.permute.xlu0 %985
      %987 = vrot.lane.b32.xlu0 %v941, 32
      %v988 = vpop.permute.xlu0 %987
      %989 = vrot.lane.b32.xlu0 %v942, 32
      %v990 = vpop.permute.xlu0 %989
      %vm1007 = vcmask 294144
      %1008 = vst.msk [vmem:[#allocation2] sm:$0xff] %vm1007, %v960
      %1009 = vst.msk [vmem:[#allocation2 + $0x8] sm:$0xff] %vm1007, %v962
      %1010 = vst.msk [vmem:[#allocation2 + $0x10] sm:$0xff] %vm1007, %v964
      %1011 = vst.msk [vmem:[#allocation2 + $0x18] sm:$0xff] %vm1007, %v966
      %1012 = vst.msk [vmem:[#allocation2 + $0x20] sm:$0xff] %vm1007, %v968
      %1013 = vst.msk [vmem:[#allocation2 + $0x28] sm:$0xff] %vm1007, %v970
      %1014 = vst.msk [vmem:[#allocation2 + $0x30] sm:$0xff] %vm1007, %v972
      %1015 = vst.msk [vmem:[#allocation2 + $0x38] sm:$0xff] %vm1007, %v974
      %1016 = vst.msk [vmem:[#allocation2 + $0x40] sm:$0xff] %vm1007, %v976
      %1017 = vst.msk [vmem:[#allocation2 + $0x48] sm:$0xff] %vm1007, %v978
      %1018 = vst.msk [vmem:[#allocation2 + $0x50] sm:$0xff] %vm1007, %v980
      %1019 = vst.msk [vmem:[#allocation2 + $0x58] sm:$0xff] %vm1007, %v982
      %1020 = vst.msk [vmem:[#allocation2 + $0x60] sm:$0xff] %vm1007, %v984
      %1021 = vst.msk [vmem:[#allocation2 + $0x68] sm:$0xff] %vm1007, %v986
      %1022 = vst.msk [vmem:[#allocation2 + $0x70] sm:$0xff] %vm1007, %v988
      %1023 = vst.msk [vmem:[#allocation2 + $0x78] sm:$0xff] %vm1007, %v990
      %s1024 = sadd.s32 %s199, 20
      %s1025 = smul.u32 %s1024, 80
      %s1026 = scalar_lea.vmem %s187, %s1025
      %v1027 = vld [vmem:[%s1026] sm:$0xff]
      %v1028 = vld [vmem:[%s1026 + $0x10] sm:$0xff]
      %v1029 = vld [vmem:[%s1026 + $0x20] sm:$0xff]
      %v1030 = vld [vmem:[%s1026 + $0x30] sm:$0xff]
      %v1031 = vld [vmem:[%s1026 + $0x50] sm:$0xff]
      %v1032 = vld [vmem:[%s1026 + $0x60] sm:$0xff]
      %v1033 = vld [vmem:[%s1026 + $0x70] sm:$0xff]
      %v1034 = vld [vmem:[%s1026 + $0x80] sm:$0xff]
      %v1035 = vld [vmem:[%s1026 + $0xa0] sm:$0xff]
      %v1036 = vld [vmem:[%s1026 + $0xb0] sm:$0xff]
      %v1037 = vld [vmem:[%s1026 + $0xc0] sm:$0xff]
      %v1038 = vld [vmem:[%s1026 + $0xd0] sm:$0xff]
      %v1039 = vld [vmem:[%s1026 + $0xf0] sm:$0xff]
      %v1040 = vld [vmem:[%s1026 + $0x100] sm:$0xff]
      %v1041 = vld [vmem:[%s1026 + $0x110] sm:$0xff]
      %v1042 = vld [vmem:[%s1026 + $0x120] sm:$0xff]
      %1059 = vrot.lane.b32.xlu0 %v1027, 36
      %v1060 = vpop.permute.xlu0 %1059
      %1061 = vrot.lane.b32.xlu0 %v1028, 36
      %v1062 = vpop.permute.xlu0 %1061
      %1063 = vrot.lane.b32.xlu0 %v1029, 36
      %v1064 = vpop.permute.xlu0 %1063
      %1065 = vrot.lane.b32.xlu0 %v1030, 36
      %v1066 = vpop.permute.xlu0 %1065
      %1067 = vrot.lane.b32.xlu0 %v1031, 36
      %v1068 = vpop.permute.xlu0 %1067
      %1069 = vrot.lane.b32.xlu0 %v1032, 36
      %v1070 = vpop.permute.xlu0 %1069
      %1071 = vrot.lane.b32.xlu0 %v1033, 36
      %v1072 = vpop.permute.xlu0 %1071
      %1073 = vrot.lane.b32.xlu0 %v1034, 36
      %v1074 = vpop.permute.xlu0 %1073
      %1075 = vrot.lane.b32.xlu0 %v1035, 36
      %v1076 = vpop.permute.xlu0 %1075
      %1077 = vrot.lane.b32.xlu0 %v1036, 36
      %v1078 = vpop.permute.xlu0 %1077
      %1079 = vrot.lane.b32.xlu0 %v1037, 36
      %v1080 = vpop.permute.xlu0 %1079
      %1081 = vrot.lane.b32.xlu0 %v1038, 36
      %v1082 = vpop.permute.xlu0 %1081
      %1083 = vrot.lane.b32.xlu0 %v1039, 36
      %v1084 = vpop.permute.xlu0 %1083
      %1085 = vrot.lane.b32.xlu0 %v1040, 36
      %v1086 = vpop.permute.xlu0 %1085
      %1087 = vrot.lane.b32.xlu0 %v1041, 36
      %v1088 = vpop.permute.xlu0 %1087
      %1089 = vrot.lane.b32.xlu0 %v1042, 36
      %v1090 = vpop.permute.xlu0 %1089
      %vm1107 = vcmask 326944
      %1108 = vst.msk [vmem:[#allocation2] sm:$0xff] %vm1107, %v1060
      %1109 = vst.msk [vmem:[#allocation2 + $0x8] sm:$0xff] %vm1107, %v1062
      %1110 = vst.msk [vmem:[#allocation2 + $0x10] sm:$0xff] %vm1107, %v1064
      %1111 = vst.msk [vmem:[#allocation2 + $0x18] sm:$0xff] %vm1107, %v1066
      %1112 = vst.msk [vmem:[#allocation2 + $0x20] sm:$0xff] %vm1107, %v1068
      %1113 = vst.msk [vmem:[#allocation2 + $0x28] sm:$0xff] %vm1107, %v1070
      %1114 = vst.msk [vmem:[#allocation2 + $0x30] sm:$0xff] %vm1107, %v1072
      %1115 = vst.msk [vmem:[#allocation2 + $0x38] sm:$0xff] %vm1107, %v1074
      %1116 = vst.msk [vmem:[#allocation2 + $0x40] sm:$0xff] %vm1107, %v1076
      %1117 = vst.msk [vmem:[#allocation2 + $0x48] sm:$0xff] %vm1107, %v1078
      %1118 = vst.msk [vmem:[#allocation2 + $0x50] sm:$0xff] %vm1107, %v1080
      %1119 = vst.msk [vmem:[#allocation2 + $0x58] sm:$0xff] %vm1107, %v1082
      %1120 = vst.msk [vmem:[#allocation2 + $0x60] sm:$0xff] %vm1107, %v1084
      %1121 = vst.msk [vmem:[#allocation2 + $0x68] sm:$0xff] %vm1107, %v1086
      %1122 = vst.msk [vmem:[#allocation2 + $0x70] sm:$0xff] %vm1107, %v1088
      %1123 = vst.msk [vmem:[#allocation2 + $0x78] sm:$0xff] %vm1107, %v1090
      %s1124 = sadd.s32 %s199, 25
      %s1125 = smul.u32 %s1124, 80
      %s1126 = scalar_lea.vmem %s187, %s1125
      %v1127 = vld [vmem:[%s1126] sm:$0xff]
      %v1128 = vld [vmem:[%s1126 + $0x10] sm:$0xff]
      %v1129 = vld [vmem:[%s1126 + $0x20] sm:$0xff]
      %v1130 = vld [vmem:[%s1126 + $0x30] sm:$0xff]
      %v1131 = vld [vmem:[%s1126 + $0x50] sm:$0xff]
      %v1132 = vld [vmem:[%s1126 + $0x60] sm:$0xff]
      %v1133 = vld [vmem:[%s1126 + $0x70] sm:$0xff]
      %v1134 = vld [vmem:[%s1126 + $0x80] sm:$0xff]
      %v1135 = vld [vmem:[%s1126 + $0xa0] sm:$0xff]
      %v1136 = vld [vmem:[%s1126 + $0xb0] sm:$0xff]
      %v1137 = vld [vmem:[%s1126 + $0xc0] sm:$0xff]
      %v1138 = vld [vmem:[%s1126 + $0xd0] sm:$0xff]
      %v1139 = vld [vmem:[%s1126 + $0xf0] sm:$0xff]
      %v1140 = vld [vmem:[%s1126 + $0x100] sm:$0xff]
      %v1141 = vld [vmem:[%s1126 + $0x110] sm:$0xff]
      %v1142 = vld [vmem:[%s1126 + $0x120] sm:$0xff]
      %1159 = vrot.lane.b32.xlu0 %v1127, 40
      %v1160 = vpop.permute.xlu0 %1159
      %1161 = vrot.lane.b32.xlu0 %v1128, 40
      %v1162 = vpop.permute.xlu0 %1161
      %1163 = vrot.lane.b32.xlu0 %v1129, 40
      %v1164 = vpop.permute.xlu0 %1163
      %1165 = vrot.lane.b32.xlu0 %v1130, 40
      %v1166 = vpop.permute.xlu0 %1165
      %1167 = vrot.lane.b32.xlu0 %v1131, 40
      %v1168 = vpop.permute.xlu0 %1167
      %1169 = vrot.lane.b32.xlu0 %v1132, 40
      %v1170 = vpop.permute.xlu0 %1169
      %1171 = vrot.lane.b32.xlu0 %v1133, 40
      %v1172 = vpop.permute.xlu0 %1171
      %1173 = vrot.lane.b32.xlu0 %v1134, 40
      %v1174 = vpop.permute.xlu0 %1173
      %1175 = vrot.lane.b32.xlu0 %v1135, 40
      %v1176 = vpop.permute.xlu0 %1175
      %1177 = vrot.lane.b32.xlu0 %v1136, 40
      %v1178 = vpop.permute.xlu0 %1177
      %1179 = vrot.lane.b32.xlu0 %v1137, 40
      %v1180 = vpop.permute.xlu0 %1179
      %1181 = vrot.lane.b32.xlu0 %v1138, 40
      %v1182 = vpop.permute.xlu0 %1181
      %1183 = vrot.lane.b32.xlu0 %v1139, 40
      %v1184 = vpop.permute.xlu0 %1183
      %1185 = vrot.lane.b32.xlu0 %v1140, 40
      %v1186 = vpop.permute.xlu0 %1185
      %1187 = vrot.lane.b32.xlu0 %v1141, 40
      %v1188 = vpop.permute.xlu0 %1187
      %1189 = vrot.lane.b32.xlu0 %v1142, 40
      %v1190 = vpop.permute.xlu0 %1189
      %vm1207 = vcmask 359744
      %1208 = vst.msk [vmem:[#allocation2] sm:$0xff] %vm1207, %v1160
      %1209 = vst.msk [vmem:[#allocation2 + $0x8] sm:$0xff] %vm1207, %v1162
      %1210 = vst.msk [vmem:[#allocation2 + $0x10] sm:$0xff] %vm1207, %v1164
      %1211 = vst.msk [vmem:[#allocation2 + $0x18] sm:$0xff] %vm1207, %v1166
      %1212 = vst.msk [vmem:[#allocation2 + $0x20] sm:$0xff] %vm1207, %v1168
      %1213 = vst.msk [vmem:[#allocation2 + $0x28] sm:$0xff] %vm1207, %v1170
      %1214 = vst.msk [vmem:[#allocation2 + $0x30] sm:$0xff] %vm1207, %v1172
      %1215 = vst.msk [vmem:[#allocation2 + $0x38] sm:$0xff] %vm1207, %v1174
      %1216 = vst.msk [vmem:[#allocation2 + $0x40] sm:$0xff] %vm1207, %v1176
      %1217 = vst.msk [vmem:[#allocation2 + $0x48] sm:$0xff] %vm1207, %v1178
      %1218 = vst.msk [vmem:[#allocation2 + $0x50] sm:$0xff] %vm1207, %v1180
      %1219 = vst.msk [vmem:[#allocation2 + $0x58] sm:$0xff] %vm1207, %v1182
      %1220 = vst.msk [vmem:[#allocation2 + $0x60] sm:$0xff] %vm1207, %v1184
      %1221 = vst.msk [vmem:[#allocation2 + $0x68] sm:$0xff] %vm1207, %v1186
      %1222 = vst.msk [vmem:[#allocation2 + $0x70] sm:$0xff] %vm1207, %v1188
      %1223 = vst.msk [vmem:[#allocation2 + $0x78] sm:$0xff] %vm1207, %v1190
      %v1224 = vld [vmem:[%s1026 + $0x1] sm:$0xff]
      %v1225 = vld [vmem:[%s1026 + $0x11] sm:$0xff]
      %v1226 = vld [vmem:[%s1026 + $0x21] sm:$0xff]
      %v1227 = vld [vmem:[%s1026 + $0x31] sm:$0xff]
      %v1228 = vld [vmem:[%s1026 + $0x51] sm:$0xff]
      %v1229 = vld [vmem:[%s1026 + $0x61] sm:$0xff]
      %v1230 = vld [vmem:[%s1026 + $0x71] sm:$0xff]
      %v1231 = vld [vmem:[%s1026 + $0x81] sm:$0xff]
      %v1232 = vld [vmem:[%s1026 + $0xa1] sm:$0xff]
      %v1233 = vld [vmem:[%s1026 + $0xb1] sm:$0xff]
      %v1234 = vld [vmem:[%s1026 + $0xc1] sm:$0xff]
      %v1235 = vld [vmem:[%s1026 + $0xd1] sm:$0xff]
      %v1236 = vld [vmem:[%s1026 + $0xf1] sm:$0xff]
      %v1237 = vld [vmem:[%s1026 + $0x101] sm:$0xff]
      %v1238 = vld [vmem:[%s1026 + $0x111] sm:$0xff]
      %v1239 = vld [vmem:[%s1026 + $0x121] sm:$0xff]
      %1256 = vrot.lane.b32.xlu0 %v1224, 44
      %v1257 = vpop.permute.xlu0 %1256
      %1258 = vrot.lane.b32.xlu0 %v1225, 44
      %v1259 = vpop.permute.xlu0 %1258
      %1260 = vrot.lane.b32.xlu0 %v1226, 44
      %v1261 = vpop.permute.xlu0 %1260
      %1262 = vrot.lane.b32.xlu0 %v1227, 44
      %v1263 = vpop.permute.xlu0 %1262
      %1264 = vrot.lane.b32.xlu0 %v1228, 44
      %v1265 = vpop.permute.xlu0 %1264
      %1266 = vrot.lane.b32.xlu0 %v1229, 44
      %v1267 = vpop.permute.xlu0 %1266
      %1268 = vrot.lane.b32.xlu0 %v1230, 44
      %v1269 = vpop.permute.xlu0 %1268
      %1270 = vrot.lane.b32.xlu0 %v1231, 44
      %v1271 = vpop.permute.xlu0 %1270
      %1272 = vrot.lane.b32.xlu0 %v1232, 44
      %v1273 = vpop.permute.xlu0 %1272
      %1274 = vrot.lane.b32.xlu0 %v1233, 44
      %v1275 = vpop.permute.xlu0 %1274
      %1276 = vrot.lane.b32.xlu0 %v1234, 44
      %v1277 = vpop.permute.xlu0 %1276
      %1278 = vrot.lane.b32.xlu0 %v1235, 44
      %v1279 = vpop.permute.xlu0 %1278
      %1280 = vrot.lane.b32.xlu0 %v1236, 44
      %v1281 = vpop.permute.xlu0 %1280
      %1282 = vrot.lane.b32.xlu0 %v1237, 44
      %v1283 = vpop.permute.xlu0 %1282
      %1284 = vrot.lane.b32.xlu0 %v1238, 44
      %v1285 = vpop.permute.xlu0 %1284
      %1286 = vrot.lane.b32.xlu0 %v1239, 44
      %v1287 = vpop.permute.xlu0 %1286
      %vm1304 = vcmask 392544
      %1305 = vst.msk [vmem:[#allocation2] sm:$0xff] %vm1304, %v1257
      %1306 = vst.msk [vmem:[#allocation2 + $0x8] sm:$0xff] %vm1304, %v1259
      %1307 = vst.msk [vmem:[#allocation2 + $0x10] sm:$0xff] %vm1304, %v1261
      %1308 = vst.msk [vmem:[#allocation2 + $0x18] sm:$0xff] %vm1304, %v1263
      %1309 = vst.msk [vmem:[#allocation2 + $0x20] sm:$0xff] %vm1304, %v1265
      %1310 = vst.msk [vmem:[#allocation2 + $0x28] sm:$0xff] %vm1304, %v1267
      %1311 = vst.msk [vmem:[#allocation2 + $0x30] sm:$0xff] %vm1304, %v1269
      %1312 = vst.msk [vmem:[#allocation2 + $0x38] sm:$0xff] %vm1304, %v1271
      %1313 = vst.msk [vmem:[#allocation2 + $0x40] sm:$0xff] %vm1304, %v1273
      %1314 = vst.msk [vmem:[#allocation2 + $0x48] sm:$0xff] %vm1304, %v1275
      %1315 = vst.msk [vmem:[#allocation2 + $0x50] sm:$0xff] %vm1304, %v1277
      %1316 = vst.msk [vmem:[#allocation2 + $0x58] sm:$0xff] %vm1304, %v1279
      %1317 = vst.msk [vmem:[#allocation2 + $0x60] sm:$0xff] %vm1304, %v1281
      %1318 = vst.msk [vmem:[#allocation2 + $0x68] sm:$0xff] %vm1304, %v1283
      %1319 = vst.msk [vmem:[#allocation2 + $0x70] sm:$0xff] %vm1304, %v1285
      %1320 = vst.msk [vmem:[#allocation2 + $0x78] sm:$0xff] %vm1304, %v1287
      %s1321 = sadd.s32 %s199, 30
      %s1322 = smul.u32 %s1321, 80
      %s1323 = scalar_lea.vmem %s187, %s1322
      %v1324 = vld [vmem:[%s1323] sm:$0xff]
      %v1325 = vld [vmem:[%s1323 + $0x10] sm:$0xff]
      %v1326 = vld [vmem:[%s1323 + $0x20] sm:$0xff]
      %v1327 = vld [vmem:[%s1323 + $0x30] sm:$0xff]
      %v1328 = vld [vmem:[%s1323 + $0x50] sm:$0xff]
      %v1329 = vld [vmem:[%s1323 + $0x60] sm:$0xff]
      %v1330 = vld [vmem:[%s1323 + $0x70] sm:$0xff]
      %v1331 = vld [vmem:[%s1323 + $0x80] sm:$0xff]
      %v1332 = vld [vmem:[%s1323 + $0xa0] sm:$0xff]
      %v1333 = vld [vmem:[%s1323 + $0xb0] sm:$0xff]
      %v1334 = vld [vmem:[%s1323 + $0xc0] sm:$0xff]
      %v1335 = vld [vmem:[%s1323 + $0xd0] sm:$0xff]
      %v1336 = vld [vmem:[%s1323 + $0xf0] sm:$0xff]
      %v1337 = vld [vmem:[%s1323 + $0x100] sm:$0xff]
      %v1338 = vld [vmem:[%s1323 + $0x110] sm:$0xff]
      %v1339 = vld [vmem:[%s1323 + $0x120] sm:$0xff]
      %1356 = vrot.lane.b32.xlu0 %v1324, 48
      %v1357 = vpop.permute.xlu0 %1356
      %1358 = vrot.lane.b32.xlu0 %v1325, 48
      %v1359 = vpop.permute.xlu0 %1358
      %1360 = vrot.lane.b32.xlu0 %v1326, 48
      %v1361 = vpop.permute.xlu0 %1360
      %1362 = vrot.lane.b32.xlu0 %v1327, 48
      %v1363 = vpop.permute.xlu0 %1362
      %1364 = vrot.lane.b32.xlu0 %v1328, 48
      %v1365 = vpop.permute.xlu0 %1364
      %1366 = vrot.lane.b32.xlu0 %v1329, 48
      %v1367 = vpop.permute.xlu0 %1366
      %1368 = vrot.lane.b32.xlu0 %v1330, 48
      %v1369 = vpop.permute.xlu0 %1368
      %1370 = vrot.lane.b32.xlu0 %v1331, 48
      %v1371 = vpop.permute.xlu0 %1370
      %1372 = vrot.lane.b32.xlu0 %v1332, 48
      %v1373 = vpop.permute.xlu0 %1372
      %1374 = vrot.lane.b32.xlu0 %v1333, 48
      %v1375 = vpop.permute.xlu0 %1374
      %1376 = vrot.lane.b32.xlu0 %v1334, 48
      %v1377 = vpop.permute.xlu0 %1376
      %1378 = vrot.lane.b32.xlu0 %v1335, 48
      %v1379 = vpop.permute.xlu0 %1378
      %1380 = vrot.lane.b32.xlu0 %v1336, 48
      %v1381 = vpop.permute.xlu0 %1380
      %1382 = vrot.lane.b32.xlu0 %v1337, 48
      %v1383 = vpop.permute.xlu0 %1382
      %1384 = vrot.lane.b32.xlu0 %v1338, 48
      %v1385 = vpop.permute.xlu0 %1384
      %1386 = vrot.lane.b32.xlu0 %v1339, 48
      %v1387 = vpop.permute.xlu0 %1386
      %vm1404 = vcmask 425344
      %1405 = vst.msk [vmem:[#allocation2] sm:$0xff] %vm1404, %v1357
      %1406 = vst.msk [vmem:[#allocation2 + $0x8] sm:$0xff] %vm1404, %v1359
      %1407 = vst.msk [vmem:[#allocation2 + $0x10] sm:$0xff] %vm1404, %v1361
      %1408 = vst.msk [vmem:[#allocation2 + $0x18] sm:$0xff] %vm1404, %v1363
      %1409 = vst.msk [vmem:[#allocation2 + $0x20] sm:$0xff] %vm1404, %v1365
      %1410 = vst.msk [vmem:[#allocation2 + $0x28] sm:$0xff] %vm1404, %v1367
      %1411 = vst.msk [vmem:[#allocation2 + $0x30] sm:$0xff] %vm1404, %v1369
      %1412 = vst.msk [vmem:[#allocation2 + $0x38] sm:$0xff] %vm1404, %v1371
      %1413 = vst.msk [vmem:[#allocation2 + $0x40] sm:$0xff] %vm1404, %v1373
      %1414 = vst.msk [vmem:[#allocation2 + $0x48] sm:$0xff] %vm1404, %v1375
      %1415 = vst.msk [vmem:[#allocation2 + $0x50] sm:$0xff] %vm1404, %v1377
      %1416 = vst.msk [vmem:[#allocation2 + $0x58] sm:$0xff] %vm1404, %v1379
      %1417 = vst.msk [vmem:[#allocation2 + $0x60] sm:$0xff] %vm1404, %v1381
      %1418 = vst.msk [vmem:[#allocation2 + $0x68] sm:$0xff] %vm1404, %v1383
      %1419 = vst.msk [vmem:[#allocation2 + $0x70] sm:$0xff] %vm1404, %v1385
      %1420 = vst.msk [vmem:[#allocation2 + $0x78] sm:$0xff] %vm1404, %v1387
      %s1421 = sadd.s32 %s199, 35
      %s1422 = smul.u32 %s1421, 80
      %s1423 = scalar_lea.vmem %s187, %s1422
      %v1424 = vld [vmem:[%s1423] sm:$0xff]
      %v1425 = vld [vmem:[%s1423 + $0x10] sm:$0xff]
      %v1426 = vld [vmem:[%s1423 + $0x20] sm:$0xff]
      %v1427 = vld [vmem:[%s1423 + $0x30] sm:$0xff]
      %v1428 = vld [vmem:[%s1423 + $0x50] sm:$0xff]
      %v1429 = vld [vmem:[%s1423 + $0x60] sm:$0xff]
      %v1430 = vld [vmem:[%s1423 + $0x70] sm:$0xff]
      %v1431 = vld [vmem:[%s1423 + $0x80] sm:$0xff]
      %v1432 = vld [vmem:[%s1423 + $0xa0] sm:$0xff]
      %v1433 = vld [vmem:[%s1423 + $0xb0] sm:$0xff]
      %v1434 = vld [vmem:[%s1423 + $0xc0] sm:$0xff]
      %v1435 = vld [vmem:[%s1423 + $0xd0] sm:$0xff]
      %v1436 = vld [vmem:[%s1423 + $0xf0] sm:$0xff]
      %v1437 = vld [vmem:[%s1423 + $0x100] sm:$0xff]
      %v1438 = vld [vmem:[%s1423 + $0x110] sm:$0xff]
      %v1439 = vld [vmem:[%s1423 + $0x120] sm:$0xff]
      %1456 = vrot.lane.b32.xlu0 %v1424, 52
      %v1457 = vpop.permute.xlu0 %1456
      %1458 = vrot.lane.b32.xlu0 %v1425, 52
      %v1459 = vpop.permute.xlu0 %1458
      %1460 = vrot.lane.b32.xlu0 %v1426, 52
      %v1461 = vpop.permute.xlu0 %1460
      %1462 = vrot.lane.b32.xlu0 %v1427, 52
      %v1463 = vpop.permute.xlu0 %1462
      %1464 = vrot.lane.b32.xlu0 %v1428, 52
      %v1465 = vpop.permute.xlu0 %1464
      %1466 = vrot.lane.b32.xlu0 %v1429, 52
      %v1467 = vpop.permute.xlu0 %1466
      %1468 = vrot.lane.b32.xlu0 %v1430, 52
      %v1469 = vpop.permute.xlu0 %1468
      %1470 = vrot.lane.b32.xlu0 %v1431, 52
      %v1471 = vpop.permute.xlu0 %1470
      %1472 = vrot.lane.b32.xlu0 %v1432, 52
      %v1473 = vpop.permute.xlu0 %1472
      %1474 = vrot.lane.b32.xlu0 %v1433, 52
      %v1475 = vpop.permute.xlu0 %1474
      %1476 = vrot.lane.b32.xlu0 %v1434, 52
      %v1477 = vpop.permute.xlu0 %1476
      %1478 = vrot.lane.b32.xlu0 %v1435, 52
      %v1479 = vpop.permute.xlu0 %1478
      %1480 = vrot.lane.b32.xlu0 %v1436, 52
      %v1481 = vpop.permute.xlu0 %1480
      %1482 = vrot.lane.b32.xlu0 %v1437, 52
      %v1483 = vpop.permute.xlu0 %1482
      %1484 = vrot.lane.b32.xlu0 %v1438, 52
      %v1485 = vpop.permute.xlu0 %1484
      %1486 = vrot.lane.b32.xlu0 %v1439, 52
      %v1487 = vpop.permute.xlu0 %1486
      %vm1504 = vcmask 458144
      %1505 = vst.msk [vmem:[#allocation2] sm:$0xff] %vm1504, %v1457
      %1506 = vst.msk [vmem:[#allocation2 + $0x8] sm:$0xff] %vm1504, %v1459
      %1507 = vst.msk [vmem:[#allocation2 + $0x10] sm:$0xff] %vm1504, %v1461
      %1508 = vst.msk [vmem:[#allocation2 + $0x18] sm:$0xff] %vm1504, %v1463
      %1509 = vst.msk [vmem:[#allocation2 + $0x20] sm:$0xff] %vm1504, %v1465
      %1510 = vst.msk [vmem:[#allocation2 + $0x28] sm:$0xff] %vm1504, %v1467
      %1511 = vst.msk [vmem:[#allocation2 + $0x30] sm:$0xff] %vm1504, %v1469
      %1512 = vst.msk [vmem:[#allocation2 + $0x38] sm:$0xff] %vm1504, %v1471
      %1513 = vst.msk [vmem:[#allocation2 + $0x40] sm:$0xff] %vm1504, %v1473
      %1514 = vst.msk [vmem:[#allocation2 + $0x48] sm:$0xff] %vm1504, %v1475
      %1515 = vst.msk [vmem:[#allocation2 + $0x50] sm:$0xff] %vm1504, %v1477
      %1516 = vst.msk [vmem:[#allocation2 + $0x58] sm:$0xff] %vm1504, %v1479
      %1517 = vst.msk [vmem:[#allocation2 + $0x60] sm:$0xff] %vm1504, %v1481
      %1518 = vst.msk [vmem:[#allocation2 + $0x68] sm:$0xff] %vm1504, %v1483
      %1519 = vst.msk [vmem:[#allocation2 + $0x70] sm:$0xff] %vm1504, %v1485
      %1520 = vst.msk [vmem:[#allocation2 + $0x78] sm:$0xff] %vm1504, %v1487
      %v1521 = vld [vmem:[%s1323 + $0x1] sm:$0xff]
      %v1522 = vld [vmem:[%s1323 + $0x11] sm:$0xff]
      %v1523 = vld [vmem:[%s1323 + $0x21] sm:$0xff]
      %v1524 = vld [vmem:[%s1323 + $0x31] sm:$0xff]
      %v1525 = vld [vmem:[%s1323 + $0x51] sm:$0xff]
      %v1526 = vld [vmem:[%s1323 + $0x61] sm:$0xff]
      %v1527 = vld [vmem:[%s1323 + $0x71] sm:$0xff]
      %v1528 = vld [vmem:[%s1323 + $0x81] sm:$0xff]
      %v1529 = vld [vmem:[%s1323 + $0xa1] sm:$0xff]
      %v1530 = vld [vmem:[%s1323 + $0xb1] sm:$0xff]
      %v1531 = vld [vmem:[%s1323 + $0xc1] sm:$0xff]
      %v1532 = vld [vmem:[%s1323 + $0xd1] sm:$0xff]
      %v1533 = vld [vmem:[%s1323 + $0xf1] sm:$0xff]
      %v1534 = vld [vmem:[%s1323 + $0x101] sm:$0xff]
      %v1535 = vld [vmem:[%s1323 + $0x111] sm:$0xff]
      %v1536 = vld [vmem:[%s1323 + $0x121] sm:$0xff]
      %1553 = vrot.lane.b32.xlu0 %v1521, 56
      %v1554 = vpop.permute.xlu0 %1553
      %1555 = vrot.lane.b32.xlu0 %v1522, 56
      %v1556 = vpop.permute.xlu0 %1555
      %1557 = vrot.lane.b32.xlu0 %v1523, 56
      %v1558 = vpop.permute.xlu0 %1557
      %1559 = vrot.lane.b32.xlu0 %v1524, 56
      %v1560 = vpop.permute.xlu0 %1559
      %1561 = vrot.lane.b32.xlu0 %v1525, 56
      %v1562 = vpop.permute.xlu0 %1561
      %1563 = vrot.lane.b32.xlu0 %v1526, 56
      %v1564 = vpop.permute.xlu0 %1563
      %1565 = vrot.lane.b32.xlu0 %v1527, 56
      %v1566 = vpop.permute.xlu0 %1565
      %1567 = vrot.lane.b32.xlu0 %v1528, 56
      %v1568 = vpop.permute.xlu0 %1567
      %1569 = vrot.lane.b32.xlu0 %v1529, 56
      %v1570 = vpop.permute.xlu0 %1569
      %1571 = vrot.lane.b32.xlu0 %v1530, 56
      %v1572 = vpop.permute.xlu0 %1571
      %1573 = vrot.lane.b32.xlu0 %v1531, 56
      %v1574 = vpop.permute.xlu0 %1573
      %1575 = vrot.lane.b32.xlu0 %v1532, 56
      %v1576 = vpop.permute.xlu0 %1575
      %1577 = vrot.lane.b32.xlu0 %v1533, 56
      %v1578 = vpop.permute.xlu0 %1577
      %1579 = vrot.lane.b32.xlu0 %v1534, 56
      %v1580 = vpop.permute.xlu0 %1579
      %1581 = vrot.lane.b32.xlu0 %v1535, 56
      %v1582 = vpop.permute.xlu0 %1581
      %1583 = vrot.lane.b32.xlu0 %v1536, 56
      %v1584 = vpop.permute.xlu0 %1583
      %vm1601 = vcmask 490944
      %1602 = vst.msk [vmem:[#allocation2] sm:$0xff] %vm1601, %v1554
      %1603 = vst.msk [vmem:[#allocation2 + $0x8] sm:$0xff] %vm1601, %v1556
      %1604 = vst.msk [vmem:[#allocation2 + $0x10] sm:$0xff] %vm1601, %v1558
      %1605 = vst.msk [vmem:[#allocation2 + $0x18] sm:$0xff] %vm1601, %v1560
      %1606 = vst.msk [vmem:[#allocation2 + $0x20] sm:$0xff] %vm1601, %v1562
      %1607 = vst.msk [vmem:[#allocation2 + $0x28] sm:$0xff] %vm1601, %v1564
      %1608 = vst.msk [vmem:[#allocation2 + $0x30] sm:$0xff] %vm1601, %v1566
      %1609 = vst.msk [vmem:[#allocation2 + $0x38] sm:$0xff] %vm1601, %v1568
      %1610 = vst.msk [vmem:[#allocation2 + $0x40] sm:$0xff] %vm1601, %v1570
      %1611 = vst.msk [vmem:[#allocation2 + $0x48] sm:$0xff] %vm1601, %v1572
      %1612 = vst.msk [vmem:[#allocation2 + $0x50] sm:$0xff] %vm1601, %v1574
      %1613 = vst.msk [vmem:[#allocation2 + $0x58] sm:$0xff] %vm1601, %v1576
      %1614 = vst.msk [vmem:[#allocation2 + $0x60] sm:$0xff] %vm1601, %v1578
      %1615 = vst.msk [vmem:[#allocation2 + $0x68] sm:$0xff] %vm1601, %v1580
      %1616 = vst.msk [vmem:[#allocation2 + $0x70] sm:$0xff] %vm1601, %v1582
      %1617 = vst.msk [vmem:[#allocation2 + $0x78] sm:$0xff] %vm1601, %v1584
      %s1618 = sadd.s32 16, %s1025
      %s1619 = scalar_lea.vmem %s187, %s1618
      %v1620 = vld [vmem:[%s1619] sm:$0xff]
      %v1621 = vld [vmem:[%s1619 + $0x10] sm:$0xff]
      %v1622 = vld [vmem:[%s1619 + $0x20] sm:$0xff]
      %v1623 = vld [vmem:[%s1619 + $0x30] sm:$0xff]
      %v1624 = vld [vmem:[%s1619 + $0x50] sm:$0xff]
      %v1625 = vld [vmem:[%s1619 + $0x60] sm:$0xff]
      %v1626 = vld [vmem:[%s1619 + $0x70] sm:$0xff]
      %v1627 = vld [vmem:[%s1619 + $0x80] sm:$0xff]
      %v1628 = vld [vmem:[%s1619 + $0xa0] sm:$0xff]
      %v1629 = vld [vmem:[%s1619 + $0xb0] sm:$0xff]
      %v1630 = vld [vmem:[%s1619 + $0xc0] sm:$0xff]
      %v1631 = vld [vmem:[%s1619 + $0xd0] sm:$0xff]
      %v1632 = vld [vmem:[%s1619 + $0xf0] sm:$0xff]
      %v1633 = vld [vmem:[%s1619 + $0x100] sm:$0xff]
      %v1634 = vld [vmem:[%s1619 + $0x110] sm:$0xff]
      %v1635 = vld [vmem:[%s1619 + $0x120] sm:$0xff]
      %1652 = vrot.lane.b32.xlu0 %v1620, 60
      %v1653 = vpop.permute.xlu0 %1652
      %1654 = vrot.lane.b32.xlu0 %v1621, 60
      %v1655 = vpop.permute.xlu0 %1654
      %1656 = vrot.lane.b32.xlu0 %v1622, 60
      %v1657 = vpop.permute.xlu0 %1656
      %1658 = vrot.lane.b32.xlu0 %v1623, 60
      %v1659 = vpop.permute.xlu0 %1658
      %1660 = vrot.lane.b32.xlu0 %v1624, 60
      %v1661 = vpop.permute.xlu0 %1660
      %1662 = vrot.lane.b32.xlu0 %v1625, 60
      %v1663 = vpop.permute.xlu0 %1662
      %1664 = vrot.lane.b32.xlu0 %v1626, 60
      %v1665 = vpop.permute.xlu0 %1664
      %1666 = vrot.lane.b32.xlu0 %v1627, 60
      %v1667 = vpop.permute.xlu0 %1666
      %1668 = vrot.lane.b32.xlu0 %v1628, 60
      %v1669 = vpop.permute.xlu0 %1668
      %1670 = vrot.lane.b32.xlu0 %v1629, 60
      %v1671 = vpop.permute.xlu0 %1670
      %1672 = vrot.lane.b32.xlu0 %v1630, 60
      %v1673 = vpop.permute.xlu0 %1672
      %1674 = vrot.lane.b32.xlu0 %v1631, 60
      %v1675 = vpop.permute.xlu0 %1674
      %1676 = vrot.lane.b32.xlu0 %v1632, 60
      %v1677 = vpop.permute.xlu0 %1676
      %1678 = vrot.lane.b32.xlu0 %v1633, 60
      %v1679 = vpop.permute.xlu0 %1678
      %1680 = vrot.lane.b32.xlu0 %v1634, 60
      %v1681 = vpop.permute.xlu0 %1680
      %1682 = vrot.lane.b32.xlu0 %v1635, 60
      %v1683 = vpop.permute.xlu0 %1682
      %vm1700 = vcmask 523744
      %1701 = vst.msk [vmem:[#allocation2] sm:$0xff] %vm1700, %v1653
      %1702 = vst.msk [vmem:[#allocation2 + $0x8] sm:$0xff] %vm1700, %v1655
      %1703 = vst.msk [vmem:[#allocation2 + $0x10] sm:$0xff] %vm1700, %v1657
      %1704 = vst.msk [vmem:[#allocation2 + $0x18] sm:$0xff] %vm1700, %v1659
      %1705 = vst.msk [vmem:[#allocation2 + $0x20] sm:$0xff] %vm1700, %v1661
      %1706 = vst.msk [vmem:[#allocation2 + $0x28] sm:$0xff] %vm1700, %v1663
      %1707 = vst.msk [vmem:[#allocation2 + $0x30] sm:$0xff] %vm1700, %v1665
      %1708 = vst.msk [vmem:[#allocation2 + $0x38] sm:$0xff] %vm1700, %v1667
      %1709 = vst.msk [vmem:[#allocation2 + $0x40] sm:$0xff] %vm1700, %v1669
      %1710 = vst.msk [vmem:[#allocation2 + $0x48] sm:$0xff] %vm1700, %v1671
      %1711 = vst.msk [vmem:[#allocation2 + $0x50] sm:$0xff] %vm1700, %v1673
      %1712 = vst.msk [vmem:[#allocation2 + $0x58] sm:$0xff] %vm1700, %v1675
      %1713 = vst.msk [vmem:[#allocation2 + $0x60] sm:$0xff] %vm1700, %v1677
      %1714 = vst.msk [vmem:[#allocation2 + $0x68] sm:$0xff] %vm1700, %v1679
      %1715 = vst.msk [vmem:[#allocation2 + $0x70] sm:$0xff] %vm1700, %v1681
      %1716 = vst.msk [vmem:[#allocation2 + $0x78] sm:$0xff] %vm1700, %v1683
      %s1717 = sadd.s32 16, %s1125
      %s1718 = scalar_lea.vmem %s187, %s1717
      %v1719 = vld [vmem:[%s1718] sm:$0xff]
      %v1720 = vld [vmem:[%s1718 + $0x10] sm:$0xff]
      %v1721 = vld [vmem:[%s1718 + $0x20] sm:$0xff]
      %v1722 = vld [vmem:[%s1718 + $0x30] sm:$0xff]
      %v1723 = vld [vmem:[%s1718 + $0x50] sm:$0xff]
      %v1724 = vld [vmem:[%s1718 + $0x60] sm:$0xff]
      %v1725 = vld [vmem:[%s1718 + $0x70] sm:$0xff]
      %v1726 = vld [vmem:[%s1718 + $0x80] sm:$0xff]
      %v1727 = vld [vmem:[%s1718 + $0xa0] sm:$0xff]
      %v1728 = vld [vmem:[%s1718 + $0xb0] sm:$0xff]
      %v1729 = vld [vmem:[%s1718 + $0xc0] sm:$0xff]
      %v1730 = vld [vmem:[%s1718 + $0xd0] sm:$0xff]
      %v1731 = vld [vmem:[%s1718 + $0xf0] sm:$0xff]
      %v1732 = vld [vmem:[%s1718 + $0x100] sm:$0xff]
      %v1733 = vld [vmem:[%s1718 + $0x110] sm:$0xff]
      %v1734 = vld [vmem:[%s1718 + $0x120] sm:$0xff]
      %1751 = vrot.lane.b32.xlu0 %v1719, 64
      %v1752 = vpop.permute.xlu0 %1751
      %1753 = vrot.lane.b32.xlu0 %v1720, 64
      %v1754 = vpop.permute.xlu0 %1753
      %1755 = vrot.lane.b32.xlu0 %v1721, 64
      %v1756 = vpop.permute.xlu0 %1755
      %1757 = vrot.lane.b32.xlu0 %v1722, 64
      %v1758 = vpop.permute.xlu0 %1757
      %1759 = vrot.lane.b32.xlu0 %v1723, 64
      %v1760 = vpop.permute.xlu0 %1759
      %1761 = vrot.lane.b32.xlu0 %v1724, 64
      %v1762 = vpop.permute.xlu0 %1761
      %1763 = vrot.lane.b32.xlu0 %v1725, 64
      %v1764 = vpop.permute.xlu0 %1763
      %1765 = vrot.lane.b32.xlu0 %v1726, 64
      %v1766 = vpop.permute.xlu0 %1765
      %1767 = vrot.lane.b32.xlu0 %v1727, 64
      %v1768 = vpop.permute.xlu0 %1767
      %1769 = vrot.lane.b32.xlu0 %v1728, 64
      %v1770 = vpop.permute.xlu0 %1769
      %1771 = vrot.lane.b32.xlu0 %v1729, 64
      %v1772 = vpop.permute.xlu0 %1771
      %1773 = vrot.lane.b32.xlu0 %v1730, 64
      %v1774 = vpop.permute.xlu0 %1773
      %1775 = vrot.lane.b32.xlu0 %v1731, 64
      %v1776 = vpop.permute.xlu0 %1775
      %1777 = vrot.lane.b32.xlu0 %v1732, 64
      %v1778 = vpop.permute.xlu0 %1777
      %1779 = vrot.lane.b32.xlu0 %v1733, 64
      %v1780 = vpop.permute.xlu0 %1779
      %1781 = vrot.lane.b32.xlu0 %v1734, 64
      %v1782 = vpop.permute.xlu0 %1781
      %vm1799 = vcmask 556544
      %1800 = vst.msk [vmem:[#allocation2] sm:$0xff] %vm1799, %v1752
      %1801 = vst.msk [vmem:[#allocation2 + $0x8] sm:$0xff] %vm1799, %v1754
      %1802 = vst.msk [vmem:[#allocation2 + $0x10] sm:$0xff] %vm1799, %v1756
      %1803 = vst.msk [vmem:[#allocation2 + $0x18] sm:$0xff] %vm1799, %v1758
      %1804 = vst.msk [vmem:[#allocation2 + $0x20] sm:$0xff] %vm1799, %v1760
      %1805 = vst.msk [vmem:[#allocation2 + $0x28] sm:$0xff] %vm1799, %v1762
      %1806 = vst.msk [vmem:[#allocation2 + $0x30] sm:$0xff] %vm1799, %v1764
      %1807 = vst.msk [vmem:[#allocation2 + $0x38] sm:$0xff] %vm1799, %v1766
      %1808 = vst.msk [vmem:[#allocation2 + $0x40] sm:$0xff] %vm1799, %v1768
      %1809 = vst.msk [vmem:[#allocation2 + $0x48] sm:$0xff] %vm1799, %v1770
      %1810 = vst.msk [vmem:[#allocation2 + $0x50] sm:$0xff] %vm1799, %v1772
      %1811 = vst.msk [vmem:[#allocation2 + $0x58] sm:$0xff] %vm1799, %v1774
      %1812 = vst.msk [vmem:[#allocation2 + $0x60] sm:$0xff] %vm1799, %v1776
      %1813 = vst.msk [vmem:[#allocation2 + $0x68] sm:$0xff] %vm1799, %v1778
      %1814 = vst.msk [vmem:[#allocation2 + $0x70] sm:$0xff] %vm1799, %v1780
      %1815 = vst.msk [vmem:[#allocation2 + $0x78] sm:$0xff] %vm1799, %v1782
      %v1816 = vld [vmem:[%s1619 + $0x1] sm:$0xff]
      %v1817 = vld [vmem:[%s1619 + $0x11] sm:$0xff]
      %v1818 = vld [vmem:[%s1619 + $0x21] sm:$0xff]
      %v1819 = vld [vmem:[%s1619 + $0x31] sm:$0xff]
      %v1820 = vld [vmem:[%s1619 + $0x51] sm:$0xff]
      %v1821 = vld [vmem:[%s1619 + $0x61] sm:$0xff]
      %v1822 = vld [vmem:[%s1619 + $0x71] sm:$0xff]
      %v1823 = vld [vmem:[%s1619 + $0x81] sm:$0xff]
      %v1824 = vld [vmem:[%s1619 + $0xa1] sm:$0xff]
      %v1825 = vld [vmem:[%s1619 + $0xb1] sm:$0xff]
      %v1826 = vld [vmem:[%s1619 + $0xc1] sm:$0xff]
      %v1827 = vld [vmem:[%s1619 + $0xd1] sm:$0xff]
      %v1828 = vld [vmem:[%s1619 + $0xf1] sm:$0xff]
      %v1829 = vld [vmem:[%s1619 + $0x101] sm:$0xff]
      %v1830 = vld [vmem:[%s1619 + $0x111] sm:$0xff]
      %v1831 = vld [vmem:[%s1619 + $0x121] sm:$0xff]
      %1848 = vrot.lane.b32.xlu0 %v1816, 68
      %v1849 = vpop.permute.xlu0 %1848
      %1850 = vrot.lane.b32.xlu0 %v1817, 68
      %v1851 = vpop.permute.xlu0 %1850
      %1852 = vrot.lane.b32.xlu0 %v1818, 68
      %v1853 = vpop.permute.xlu0 %1852
      %1854 = vrot.lane.b32.xlu0 %v1819, 68
      %v1855 = vpop.permute.xlu0 %1854
      %1856 = vrot.lane.b32.xlu0 %v1820, 68
      %v1857 = vpop.permute.xlu0 %1856
      %1858 = vrot.lane.b32.xlu0 %v1821, 68
      %v1859 = vpop.permute.xlu0 %1858
      %1860 = vrot.lane.b32.xlu0 %v1822, 68
      %v1861 = vpop.permute.xlu0 %1860
      %1862 = vrot.lane.b32.xlu0 %v1823, 68
      %v1863 = vpop.permute.xlu0 %1862
      %1864 = vrot.lane.b32.xlu0 %v1824, 68
      %v1865 = vpop.permute.xlu0 %1864
      %1866 = vrot.lane.b32.xlu0 %v1825, 68
      %v1867 = vpop.permute.xlu0 %1866
      %1868 = vrot.lane.b32.xlu0 %v1826, 68
      %v1869 = vpop.permute.xlu0 %1868
      %1870 = vrot.lane.b32.xlu0 %v1827, 68
      %v1871 = vpop.permute.xlu0 %1870
      %1872 = vrot.lane.b32.xlu0 %v1828, 68
      %v1873 = vpop.permute.xlu0 %1872
      %1874 = vrot.lane.b32.xlu0 %v1829, 68
      %v1875 = vpop.permute.xlu0 %1874
      %1876 = vrot.lane.b32.xlu0 %v1830, 68
      %v1877 = vpop.permute.xlu0 %1876
      %1878 = vrot.lane.b32.xlu0 %v1831, 68
      %v1879 = vpop.permute.xlu0 %1878
      %vm1896 = vcmask 589344
      %1897 = vst.msk [vmem:[#allocation2] sm:$0xff] %vm1896, %v1849
      %1898 = vst.msk [vmem:[#allocation2 + $0x8] sm:$0xff] %vm1896, %v1851
      %1899 = vst.msk [vmem:[#allocation2 + $0x10] sm:$0xff] %vm1896, %v1853
      %1900 = vst.msk [vmem:[#allocation2 + $0x18] sm:$0xff] %vm1896, %v1855
      %1901 = vst.msk [vmem:[#allocation2 + $0x20] sm:$0xff] %vm1896, %v1857
      %1902 = vst.msk [vmem:[#allocation2 + $0x28] sm:$0xff] %vm1896, %v1859
      %1903 = vst.msk [vmem:[#allocation2 + $0x30] sm:$0xff] %vm1896, %v1861
      %1904 = vst.msk [vmem:[#allocation2 + $0x38] sm:$0xff] %vm1896, %v1863
      %1905 = vst.msk [vmem:[#allocation2 + $0x40] sm:$0xff] %vm1896, %v1865
      %1906 = vst.msk [vmem:[#allocation2 + $0x48] sm:$0xff] %vm1896, %v1867
      %1907 = vst.msk [vmem:[#allocation2 + $0x50] sm:$0xff] %vm1896, %v1869
      %1908 = vst.msk [vmem:[#allocation2 + $0x58] sm:$0xff] %vm1896, %v1871
      %1909 = vst.msk [vmem:[#allocation2 + $0x60] sm:$0xff] %vm1896, %v1873
      %1910 = vst.msk [vmem:[#allocation2 + $0x68] sm:$0xff] %vm1896, %v1875
      %1911 = vst.msk [vmem:[#allocation2 + $0x70] sm:$0xff] %vm1896, %v1877
      %1912 = vst.msk [vmem:[#allocation2 + $0x78] sm:$0xff] %vm1896, %v1879
      %s1913 = sadd.s32 %s199, 1
      %s1914 = smul.u32 %s1913, 80
      %s1915 = scalar_lea.vmem %s187, %s1914
      %v1916 = vld [vmem:[%s1915] sm:$0xff]
      %v1917 = vld [vmem:[%s1915 + $0x10] sm:$0xff]
      %v1918 = vld [vmem:[%s1915 + $0x20] sm:$0xff]
      %v1919 = vld [vmem:[%s1915 + $0x30] sm:$0xff]
      %v1920 = vld [vmem:[%s1915 + $0x50] sm:$0xff]
      %v1921 = vld [vmem:[%s1915 + $0x60] sm:$0xff]
      %v1922 = vld [vmem:[%s1915 + $0x70] sm:$0xff]
      %v1923 = vld [vmem:[%s1915 + $0x80] sm:$0xff]
      %v1924 = vld [vmem:[%s1915 + $0xa0] sm:$0xff]
      %v1925 = vld [vmem:[%s1915 + $0xb0] sm:$0xff]
      %v1926 = vld [vmem:[%s1915 + $0xc0] sm:$0xff]
      %v1927 = vld [vmem:[%s1915 + $0xd0] sm:$0xff]
      %v1928 = vld [vmem:[%s1915 + $0xf0] sm:$0xff]
      %v1929 = vld [vmem:[%s1915 + $0x100] sm:$0xff]
      %v1930 = vld [vmem:[%s1915 + $0x110] sm:$0xff]
      %v1931 = vld [vmem:[%s1915 + $0x120] sm:$0xff]
      %1948 = vrot.lane.b32.xlu0 %v1916, 72
      %v1949 = vpop.permute.xlu0 %1948
      %1950 = vrot.lane.b32.xlu0 %v1917, 72
      %v1951 = vpop.permute.xlu0 %1950
      %1952 = vrot.lane.b32.xlu0 %v1918, 72
      %v1953 = vpop.permute.xlu0 %1952
      %1954 = vrot.lane.b32.xlu0 %v1919, 72
      %v1955 = vpop.permute.xlu0 %1954
      %1956 = vrot.lane.b32.xlu0 %v1920, 72
      %v1957 = vpop.permute.xlu0 %1956
      %1958 = vrot.lane.b32.xlu0 %v1921, 72
      %v1959 = vpop.permute.xlu0 %1958
      %1960 = vrot.lane.b32.xlu0 %v1922, 72
      %v1961 = vpop.permute.xlu0 %1960
      %1962 = vrot.lane.b32.xlu0 %v1923, 72
      %v1963 = vpop.permute.xlu0 %1962
      %1964 = vrot.lane.b32.xlu0 %v1924, 72
      %v1965 = vpop.permute.xlu0 %1964
      %1966 = vrot.lane.b32.xlu0 %v1925, 72
      %v1967 = vpop.permute.xlu0 %1966
      %1968 = vrot.lane.b32.xlu0 %v1926, 72
      %v1969 = vpop.permute.xlu0 %1968
      %1970 = vrot.lane.b32.xlu0 %v1927, 72
      %v1971 = vpop.permute.xlu0 %1970
      %1972 = vrot.lane.b32.xlu0 %v1928, 72
      %v1973 = vpop.permute.xlu0 %1972
      %1974 = vrot.lane.b32.xlu0 %v1929, 72
      %v1975 = vpop.permute.xlu0 %1974
      %1976 = vrot.lane.b32.xlu0 %v1930, 72
      %v1977 = vpop.permute.xlu0 %1976
      %1978 = vrot.lane.b32.xlu0 %v1931, 72
      %v1979 = vpop.permute.xlu0 %1978
      %vm1996 = vcmask 622144
      %1997 = vst.msk [vmem:[#allocation2] sm:$0xff] %vm1996, %v1949
      %1998 = vst.msk [vmem:[#allocation2 + $0x8] sm:$0xff] %vm1996, %v1951
      %1999 = vst.msk [vmem:[#allocation2 + $0x10] sm:$0xff] %vm1996, %v1953
      %2000 = vst.msk [vmem:[#allocation2 + $0x18] sm:$0xff] %vm1996, %v1955
      %2001 = vst.msk [vmem:[#allocation2 + $0x20] sm:$0xff] %vm1996, %v1957
      %2002 = vst.msk [vmem:[#allocation2 + $0x28] sm:$0xff] %vm1996, %v1959
      %2003 = vst.msk [vmem:[#allocation2 + $0x30] sm:$0xff] %vm1996, %v1961
      %2004 = vst.msk [vmem:[#allocation2 + $0x38] sm:$0xff] %vm1996, %v1963
      %2005 = vst.msk [vmem:[#allocation2 + $0x40] sm:$0xff] %vm1996, %v1965
      %2006 = vst.msk [vmem:[#allocation2 + $0x48] sm:$0xff] %vm1996, %v1967
      %2007 = vst.msk [vmem:[#allocation2 + $0x50] sm:$0xff] %vm1996, %v1969
      %2008 = vst.msk [vmem:[#allocation2 + $0x58] sm:$0xff] %vm1996, %v1971
      %2009 = vst.msk [vmem:[#allocation2 + $0x60] sm:$0xff] %vm1996, %v1973
      %2010 = vst.msk [vmem:[#allocation2 + $0x68] sm:$0xff] %vm1996, %v1975
      %2011 = vst.msk [vmem:[#allocation2 + $0x70] sm:$0xff] %vm1996, %v1977
      %2012 = vst.msk [vmem:[#allocation2 + $0x78] sm:$0xff] %vm1996, %v1979
      %s2013 = sadd.s32 %s199, 6
      %s2014 = smul.u32 %s2013, 80
      %s2015 = scalar_lea.vmem %s187, %s2014
      %v2016 = vld [vmem:[%s2015] sm:$0xff]
      %v2017 = vld [vmem:[%s2015 + $0x10] sm:$0xff]
      %v2018 = vld [vmem:[%s2015 + $0x20] sm:$0xff]
      %v2019 = vld [vmem:[%s2015 + $0x30] sm:$0xff]
      %v2020 = vld [vmem:[%s2015 + $0x50] sm:$0xff]
      %v2021 = vld [vmem:[%s2015 + $0x60] sm:$0xff]
      %v2022 = vld [vmem:[%s2015 + $0x70] sm:$0xff]
      %v2023 = vld [vmem:[%s2015 + $0x80] sm:$0xff]
      %v2024 = vld [vmem:[%s2015 + $0xa0] sm:$0xff]
      %v2025 = vld [vmem:[%s2015 + $0xb0] sm:$0xff]
      %v2026 = vld [vmem:[%s2015 + $0xc0] sm:$0xff]
      %v2027 = vld [vmem:[%s2015 + $0xd0] sm:$0xff]
      %v2028 = vld [vmem:[%s2015 + $0xf0] sm:$0xff]
      %v2029 = vld [vmem:[%s2015 + $0x100] sm:$0xff]
      %v2030 = vld [vmem:[%s2015 + $0x110] sm:$0xff]
      %v2031 = vld [vmem:[%s2015 + $0x120] sm:$0xff]
      %2048 = vrot.lane.b32.xlu0 %v2016, 76
      %v2049 = vpop.permute.xlu0 %2048
      %2050 = vrot.lane.b32.xlu0 %v2017, 76
      %v2051 = vpop.permute.xlu0 %2050
      %2052 = vrot.lane.b32.xlu0 %v2018, 76
      %v2053 = vpop.permute.xlu0 %2052
      %2054 = vrot.lane.b32.xlu0 %v2019, 76
      %v2055 = vpop.permute.xlu0 %2054
      %2056 = vrot.lane.b32.xlu0 %v2020, 76
      %v2057 = vpop.permute.xlu0 %2056
      %2058 = vrot.lane.b32.xlu0 %v2021, 76
      %v2059 = vpop.permute.xlu0 %2058
      %2060 = vrot.lane.b32.xlu0 %v2022, 76
      %v2061 = vpop.permute.xlu0 %2060
      %2062 = vrot.lane.b32.xlu0 %v2023, 76
      %v2063 = vpop.permute.xlu0 %2062
      %2064 = vrot.lane.b32.xlu0 %v2024, 76
      %v2065 = vpop.permute.xlu0 %2064
      %2066 = vrot.lane.b32.xlu0 %v2025, 76
      %v2067 = vpop.permute.xlu0 %2066
      %2068 = vrot.lane.b32.xlu0 %v2026, 76
      %v2069 = vpop.permute.xlu0 %2068
      %2070 = vrot.lane.b32.xlu0 %v2027, 76
      %v2071 = vpop.permute.xlu0 %2070
      %2072 = vrot.lane.b32.xlu0 %v2028, 76
      %v2073 = vpop.permute.xlu0 %2072
      %2074 = vrot.lane.b32.xlu0 %v2029, 76
      %v2075 = vpop.permute.xlu0 %2074
      %2076 = vrot.lane.b32.xlu0 %v2030, 76
      %v2077 = vpop.permute.xlu0 %2076
      %2078 = vrot.lane.b32.xlu0 %v2031, 76
      %v2079 = vpop.permute.xlu0 %2078
      %vm2096 = vcmask 654944
      %2097 = vst.msk [vmem:[#allocation2] sm:$0xff] %vm2096, %v2049
      %2098 = vst.msk [vmem:[#allocation2 + $0x8] sm:$0xff] %vm2096, %v2051
      %2099 = vst.msk [vmem:[#allocation2 + $0x10] sm:$0xff] %vm2096, %v2053
      %2100 = vst.msk [vmem:[#allocation2 + $0x18] sm:$0xff] %vm2096, %v2055
      %2101 = vst.msk [vmem:[#allocation2 + $0x20] sm:$0xff] %vm2096, %v2057
      %2102 = vst.msk [vmem:[#allocation2 + $0x28] sm:$0xff] %vm2096, %v2059
      %2103 = vst.msk [vmem:[#allocation2 + $0x30] sm:$0xff] %vm2096, %v2061
      %2104 = vst.msk [vmem:[#allocation2 + $0x38] sm:$0xff] %vm2096, %v2063
      %2105 = vst.msk [vmem:[#allocation2 + $0x40] sm:$0xff] %vm2096, %v2065
      %2106 = vst.msk [vmem:[#allocation2 + $0x48] sm:$0xff] %vm2096, %v2067
      %2107 = vst.msk [vmem:[#allocation2 + $0x50] sm:$0xff] %vm2096, %v2069
      %2108 = vst.msk [vmem:[#allocation2 + $0x58] sm:$0xff] %vm2096, %v2071
      %2109 = vst.msk [vmem:[#allocation2 + $0x60] sm:$0xff] %vm2096, %v2073
      %2110 = vst.msk [vmem:[#allocation2 + $0x68] sm:$0xff] %vm2096, %v2075
      %2111 = vst.msk [vmem:[#allocation2 + $0x70] sm:$0xff] %vm2096, %v2077
      %2112 = vst.msk [vmem:[#allocation2 + $0x78] sm:$0xff] %vm2096, %v2079
      %v2113 = vld [vmem:[%s1915 + $0x1] sm:$0xff]
      %v2114 = vld [vmem:[%s1915 + $0x11] sm:$0xff]
      %v2115 = vld [vmem:[%s1915 + $0x21] sm:$0xff]
      %v2116 = vld [vmem:[%s1915 + $0x31] sm:$0xff]
      %v2117 = vld [vmem:[%s1915 + $0x51] sm:$0xff]
      %v2118 = vld [vmem:[%s1915 + $0x61] sm:$0xff]
      %v2119 = vld [vmem:[%s1915 + $0x71] sm:$0xff]
      %v2120 = vld [vmem:[%s1915 + $0x81] sm:$0xff]
      %v2121 = vld [vmem:[%s1915 + $0xa1] sm:$0xff]
      %v2122 = vld [vmem:[%s1915 + $0xb1] sm:$0xff]
      %v2123 = vld [vmem:[%s1915 + $0xc1] sm:$0xff]
      %v2124 = vld [vmem:[%s1915 + $0xd1] sm:$0xff]
      %v2125 = vld [vmem:[%s1915 + $0xf1] sm:$0xff]
      %v2126 = vld [vmem:[%s1915 + $0x101] sm:$0xff]
      %v2127 = vld [vmem:[%s1915 + $0x111] sm:$0xff]
      %v2128 = vld [vmem:[%s1915 + $0x121] sm:$0xff]
      %2145 = vrot.lane.b32.xlu0 %v2113, 80
      %v2146 = vpop.permute.xlu0 %2145
      %2147 = vrot.lane.b32.xlu0 %v2114, 80
      %v2148 = vpop.permute.xlu0 %2147
      %2149 = vrot.lane.b32.xlu0 %v2115, 80
      %v2150 = vpop.permute.xlu0 %2149
      %2151 = vrot.lane.b32.xlu0 %v2116, 80
      %v2152 = vpop.permute.xlu0 %2151
      %2153 = vrot.lane.b32.xlu0 %v2117, 80
      %v2154 = vpop.permute.xlu0 %2153
      %2155 = vrot.lane.b32.xlu0 %v2118, 80
      %v2156 = vpop.permute.xlu0 %2155
      %2157 = vrot.lane.b32.xlu0 %v2119, 80
      %v2158 = vpop.permute.xlu0 %2157
      %2159 = vrot.lane.b32.xlu0 %v2120, 80
      %v2160 = vpop.permute.xlu0 %2159
      %2161 = vrot.lane.b32.xlu0 %v2121, 80
      %v2162 = vpop.permute.xlu0 %2161
      %2163 = vrot.lane.b32.xlu0 %v2122, 80
      %v2164 = vpop.permute.xlu0 %2163
      %2165 = vrot.lane.b32.xlu0 %v2123, 80
      %v2166 = vpop.permute.xlu0 %2165
      %2167 = vrot.lane.b32.xlu0 %v2124, 80
      %v2168 = vpop.permute.xlu0 %2167
      %2169 = vrot.lane.b32.xlu0 %v2125, 80
      %v2170 = vpop.permute.xlu0 %2169
      %2171 = vrot.lane.b32.xlu0 %v2126, 80
      %v2172 = vpop.permute.xlu0 %2171
      %2173 = vrot.lane.b32.xlu0 %v2127, 80
      %v2174 = vpop.permute.xlu0 %2173
      %2175 = vrot.lane.b32.xlu0 %v2128, 80
      %v2176 = vpop.permute.xlu0 %2175
      %vm2193 = vcmask 687744
      %2194 = vst.msk [vmem:[#allocation2] sm:$0xff] %vm2193, %v2146
      %2195 = vst.msk [vmem:[#allocation2 + $0x8] sm:$0xff] %vm2193, %v2148
      %2196 = vst.msk [vmem:[#allocation2 + $0x10] sm:$0xff] %vm2193, %v2150
      %2197 = vst.msk [vmem:[#allocation2 + $0x18] sm:$0xff] %vm2193, %v2152
      %2198 = vst.msk [vmem:[#allocation2 + $0x20] sm:$0xff] %vm2193, %v2154
      %2199 = vst.msk [vmem:[#allocation2 + $0x28] sm:$0xff] %vm2193, %v2156
      %2200 = vst.msk [vmem:[#allocation2 + $0x30] sm:$0xff] %vm2193, %v2158
      %2201 = vst.msk [vmem:[#allocation2 + $0x38] sm:$0xff] %vm2193, %v2160
      %2202 = vst.msk [vmem:[#allocation2 + $0x40] sm:$0xff] %vm2193, %v2162
      %2203 = vst.msk [vmem:[#allocation2 + $0x48] sm:$0xff] %vm2193, %v2164
      %2204 = vst.msk [vmem:[#allocation2 + $0x50] sm:$0xff] %vm2193, %v2166
      %2205 = vst.msk [vmem:[#allocation2 + $0x58] sm:$0xff] %vm2193, %v2168
      %2206 = vst.msk [vmem:[#allocation2 + $0x60] sm:$0xff] %vm2193, %v2170
      %2207 = vst.msk [vmem:[#allocation2 + $0x68] sm:$0xff] %vm2193, %v2172
      %2208 = vst.msk [vmem:[#allocation2 + $0x70] sm:$0xff] %vm2193, %v2174
      %2209 = vst.msk [vmem:[#allocation2 + $0x78] sm:$0xff] %vm2193, %v2176
      %s2210 = sadd.s32 %s199, 11
      %s2211 = smul.u32 %s2210, 80
      %s2212 = scalar_lea.vmem %s187, %s2211
      %v2213 = vld [vmem:[%s2212] sm:$0xff]
      %v2214 = vld [vmem:[%s2212 + $0x10] sm:$0xff]
      %v2215 = vld [vmem:[%s2212 + $0x20] sm:$0xff]
      %v2216 = vld [vmem:[%s2212 + $0x30] sm:$0xff]
      %v2217 = vld [vmem:[%s2212 + $0x50] sm:$0xff]
      %v2218 = vld [vmem:[%s2212 + $0x60] sm:$0xff]
      %v2219 = vld [vmem:[%s2212 + $0x70] sm:$0xff]
      %v2220 = vld [vmem:[%s2212 + $0x80] sm:$0xff]
      %v2221 = vld [vmem:[%s2212 + $0xa0] sm:$0xff]
      %v2222 = vld [vmem:[%s2212 + $0xb0] sm:$0xff]
      %v2223 = vld [vmem:[%s2212 + $0xc0] sm:$0xff]
      %v2224 = vld [vmem:[%s2212 + $0xd0] sm:$0xff]
      %v2225 = vld [vmem:[%s2212 + $0xf0] sm:$0xff]
      %v2226 = vld [vmem:[%s2212 + $0x100] sm:$0xff]
      %v2227 = vld [vmem:[%s2212 + $0x110] sm:$0xff]
      %v2228 = vld [vmem:[%s2212 + $0x120] sm:$0xff]
      %2245 = vrot.lane.b32.xlu0 %v2213, 84
      %v2246 = vpop.permute.xlu0 %2245
      %2247 = vrot.lane.b32.xlu0 %v2214, 84
      %v2248 = vpop.permute.xlu0 %2247
      %2249 = vrot.lane.b32.xlu0 %v2215, 84
      %v2250 = vpop.permute.xlu0 %2249
      %2251 = vrot.lane.b32.xlu0 %v2216, 84
      %v2252 = vpop.permute.xlu0 %2251
      %2253 = vrot.lane.b32.xlu0 %v2217, 84
      %v2254 = vpop.permute.xlu0 %2253
      %2255 = vrot.lane.b32.xlu0 %v2218, 84
      %v2256 = vpop.permute.xlu0 %2255
      %2257 = vrot.lane.b32.xlu0 %v2219, 84
      %v2258 = vpop.permute.xlu0 %2257
      %2259 = vrot.lane.b32.xlu0 %v2220, 84
      %v2260 = vpop.permute.xlu0 %2259
      %2261 = vrot.lane.b32.xlu0 %v2221, 84
      %v2262 = vpop.permute.xlu0 %2261
      %2263 = vrot.lane.b32.xlu0 %v2222, 84
      %v2264 = vpop.permute.xlu0 %2263
      %2265 = vrot.lane.b32.xlu0 %v2223, 84
      %v2266 = vpop.permute.xlu0 %2265
      %2267 = vrot.lane.b32.xlu0 %v2224, 84
      %v2268 = vpop.permute.xlu0 %2267
      %2269 = vrot.lane.b32.xlu0 %v2225, 84
      %v2270 = vpop.permute.xlu0 %2269
      %2271 = vrot.lane.b32.xlu0 %v2226, 84
      %v2272 = vpop.permute.xlu0 %2271
      %2273 = vrot.lane.b32.xlu0 %v2227, 84
      %v2274 = vpop.permute.xlu0 %2273
      %2275 = vrot.lane.b32.xlu0 %v2228, 84
      %v2276 = vpop.permute.xlu0 %2275
      %vm2293 = vcmask 720544
      %2294 = vst.msk [vmem:[#allocation2] sm:$0xff] %vm2293, %v2246
      %2295 = vst.msk [vmem:[#allocation2 + $0x8] sm:$0xff] %vm2293, %v2248
      %2296 = vst.msk [vmem:[#allocation2 + $0x10] sm:$0xff] %vm2293, %v2250
      %2297 = vst.msk [vmem:[#allocation2 + $0x18] sm:$0xff] %vm2293, %v2252
      %2298 = vst.msk [vmem:[#allocation2 + $0x20] sm:$0xff] %vm2293, %v2254
      %2299 = vst.msk [vmem:[#allocation2 + $0x28] sm:$0xff] %vm2293, %v2256
      %2300 = vst.msk [vmem:[#allocation2 + $0x30] sm:$0xff] %vm2293, %v2258
      %2301 = vst.msk [vmem:[#allocation2 + $0x38] sm:$0xff] %vm2293, %v2260
      %2302 = vst.msk [vmem:[#allocation2 + $0x40] sm:$0xff] %vm2293, %v2262
      %2303 = vst.msk [vmem:[#allocation2 + $0x48] sm:$0xff] %vm2293, %v2264
      %2304 = vst.msk [vmem:[#allocation2 + $0x50] sm:$0xff] %vm2293, %v2266
      %2305 = vst.msk [vmem:[#allocation2 + $0x58] sm:$0xff] %vm2293, %v2268
      %2306 = vst.msk [vmem:[#allocation2 + $0x60] sm:$0xff] %vm2293, %v2270
      %2307 = vst.msk [vmem:[#allocation2 + $0x68] sm:$0xff] %vm2293, %v2272
      %2308 = vst.msk [vmem:[#allocation2 + $0x70] sm:$0xff] %vm2293, %v2274
      %2309 = vst.msk [vmem:[#allocation2 + $0x78] sm:$0xff] %vm2293, %v2276
      %s2310 = sadd.s32 %s199, 16
      %s2311 = smul.u32 %s2310, 80
      %s2312 = scalar_lea.vmem %s187, %s2311
      %v2313 = vld [vmem:[%s2312] sm:$0xff]
      %v2314 = vld [vmem:[%s2312 + $0x10] sm:$0xff]
      %v2315 = vld [vmem:[%s2312 + $0x20] sm:$0xff]
      %v2316 = vld [vmem:[%s2312 + $0x30] sm:$0xff]
      %v2317 = vld [vmem:[%s2312 + $0x50] sm:$0xff]
      %v2318 = vld [vmem:[%s2312 + $0x60] sm:$0xff]
      %v2319 = vld [vmem:[%s2312 + $0x70] sm:$0xff]
      %v2320 = vld [vmem:[%s2312 + $0x80] sm:$0xff]
      %v2321 = vld [vmem:[%s2312 + $0xa0] sm:$0xff]
      %v2322 = vld [vmem:[%s2312 + $0xb0] sm:$0xff]
      %v2323 = vld [vmem:[%s2312 + $0xc0] sm:$0xff]
      %v2324 = vld [vmem:[%s2312 + $0xd0] sm:$0xff]
      %v2325 = vld [vmem:[%s2312 + $0xf0] sm:$0xff]
      %v2326 = vld [vmem:[%s2312 + $0x100] sm:$0xff]
      %v2327 = vld [vmem:[%s2312 + $0x110] sm:$0xff]
      %v2328 = vld [vmem:[%s2312 + $0x120] sm:$0xff]
      %2345 = vrot.lane.b32.xlu0 %v2313, 88
      %v2346 = vpop.permute.xlu0 %2345
      %2347 = vrot.lane.b32.xlu0 %v2314, 88
      %v2348 = vpop.permute.xlu0 %2347
      %2349 = vrot.lane.b32.xlu0 %v2315, 88
      %v2350 = vpop.permute.xlu0 %2349
      %2351 = vrot.lane.b32.xlu0 %v2316, 88
      %v2352 = vpop.permute.xlu0 %2351
      %2353 = vrot.lane.b32.xlu0 %v2317, 88
      %v2354 = vpop.permute.xlu0 %2353
      %2355 = vrot.lane.b32.xlu0 %v2318, 88
      %v2356 = vpop.permute.xlu0 %2355
      %2357 = vrot.lane.b32.xlu0 %v2319, 88
      %v2358 = vpop.permute.xlu0 %2357
      %2359 = vrot.lane.b32.xlu0 %v2320, 88
      %v2360 = vpop.permute.xlu0 %2359
      %2361 = vrot.lane.b32.xlu0 %v2321, 88
      %v2362 = vpop.permute.xlu0 %2361
      %2363 = vrot.lane.b32.xlu0 %v2322, 88
      %v2364 = vpop.permute.xlu0 %2363
      %2365 = vrot.lane.b32.xlu0 %v2323, 88
      %v2366 = vpop.permute.xlu0 %2365
      %2367 = vrot.lane.b32.xlu0 %v2324, 88
      %v2368 = vpop.permute.xlu0 %2367
      %2369 = vrot.lane.b32.xlu0 %v2325, 88
      %v2370 = vpop.permute.xlu0 %2369
      %2371 = vrot.lane.b32.xlu0 %v2326, 88
      %v2372 = vpop.permute.xlu0 %2371
      %2373 = vrot.lane.b32.xlu0 %v2327, 88
      %v2374 = vpop.permute.xlu0 %2373
      %2375 = vrot.lane.b32.xlu0 %v2328, 88
      %v2376 = vpop.permute.xlu0 %2375
      %vm2393 = vcmask 753344
      %2394 = vst.msk [vmem:[#allocation2] sm:$0xff] %vm2393, %v2346
      %2395 = vst.msk [vmem:[#allocation2 + $0x8] sm:$0xff] %vm2393, %v2348
      %2396 = vst.msk [vmem:[#allocation2 + $0x10] sm:$0xff] %vm2393, %v2350
      %2397 = vst.msk [vmem:[#allocation2 + $0x18] sm:$0xff] %vm2393, %v2352
      %2398 = vst.msk [vmem:[#allocation2 + $0x20] sm:$0xff] %vm2393, %v2354
      %2399 = vst.msk [vmem:[#allocation2 + $0x28] sm:$0xff] %vm2393, %v2356
      %2400 = vst.msk [vmem:[#allocation2 + $0x30] sm:$0xff] %vm2393, %v2358
      %2401 = vst.msk [vmem:[#allocation2 + $0x38] sm:$0xff] %vm2393, %v2360
      %2402 = vst.msk [vmem:[#allocation2 + $0x40] sm:$0xff] %vm2393, %v2362
      %2403 = vst.msk [vmem:[#allocation2 + $0x48] sm:$0xff] %vm2393, %v2364
      %2404 = vst.msk [vmem:[#allocation2 + $0x50] sm:$0xff] %vm2393, %v2366
      %2405 = vst.msk [vmem:[#allocation2 + $0x58] sm:$0xff] %vm2393, %v2368
      %2406 = vst.msk [vmem:[#allocation2 + $0x60] sm:$0xff] %vm2393, %v2370
      %2407 = vst.msk [vmem:[#allocation2 + $0x68] sm:$0xff] %vm2393, %v2372
      %2408 = vst.msk [vmem:[#allocation2 + $0x70] sm:$0xff] %vm2393, %v2374
      %2409 = vst.msk [vmem:[#allocation2 + $0x78] sm:$0xff] %vm2393, %v2376
      %v2410 = vld [vmem:[%s2212 + $0x1] sm:$0xff]
      %v2411 = vld [vmem:[%s2212 + $0x11] sm:$0xff]
      %v2412 = vld [vmem:[%s2212 + $0x21] sm:$0xff]
      %v2413 = vld [vmem:[%s2212 + $0x31] sm:$0xff]
      %v2414 = vld [vmem:[%s2212 + $0x51] sm:$0xff]
      %v2415 = vld [vmem:[%s2212 + $0x61] sm:$0xff]
      %v2416 = vld [vmem:[%s2212 + $0x71] sm:$0xff]
      %v2417 = vld [vmem:[%s2212 + $0x81] sm:$0xff]
      %v2418 = vld [vmem:[%s2212 + $0xa1] sm:$0xff]
      %v2419 = vld [vmem:[%s2212 + $0xb1] sm:$0xff]
      %v2420 = vld [vmem:[%s2212 + $0xc1] sm:$0xff]
      %v2421 = vld [vmem:[%s2212 + $0xd1] sm:$0xff]
      %v2422 = vld [vmem:[%s2212 + $0xf1] sm:$0xff]
      %v2423 = vld [vmem:[%s2212 + $0x101] sm:$0xff]
      %v2424 = vld [vmem:[%s2212 + $0x111] sm:$0xff]
      %v2425 = vld [vmem:[%s2212 + $0x121] sm:$0xff]
      %2442 = vrot.lane.b32.xlu0 %v2410, 92
      %v2443 = vpop.permute.xlu0 %2442
      %2444 = vrot.lane.b32.xlu0 %v2411, 92
      %v2445 = vpop.permute.xlu0 %2444
      %2446 = vrot.lane.b32.xlu0 %v2412, 92
      %v2447 = vpop.permute.xlu0 %2446
      %2448 = vrot.lane.b32.xlu0 %v2413, 92
      %v2449 = vpop.permute.xlu0 %2448
      %2450 = vrot.lane.b32.xlu0 %v2414, 92
      %v2451 = vpop.permute.xlu0 %2450
      %2452 = vrot.lane.b32.xlu0 %v2415, 92
      %v2453 = vpop.permute.xlu0 %2452
      %2454 = vrot.lane.b32.xlu0 %v2416, 92
      %v2455 = vpop.permute.xlu0 %2454
      %2456 = vrot.lane.b32.xlu0 %v2417, 92
      %v2457 = vpop.permute.xlu0 %2456
      %2458 = vrot.lane.b32.xlu0 %v2418, 92
      %v2459 = vpop.permute.xlu0 %2458
      %2460 = vrot.lane.b32.xlu0 %v2419, 92
      %v2461 = vpop.permute.xlu0 %2460
      %2462 = vrot.lane.b32.xlu0 %v2420, 92
      %v2463 = vpop.permute.xlu0 %2462
      %2464 = vrot.lane.b32.xlu0 %v2421, 92
      %v2465 = vpop.permute.xlu0 %2464
      %2466 = vrot.lane.b32.xlu0 %v2422, 92
      %v2467 = vpop.permute.xlu0 %2466
      %2468 = vrot.lane.b32.xlu0 %v2423, 92
      %v2469 = vpop.permute.xlu0 %2468
      %2470 = vrot.lane.b32.xlu0 %v2424, 92
      %v2471 = vpop.permute.xlu0 %2470
      %2472 = vrot.lane.b32.xlu0 %v2425, 92
      %v2473 = vpop.permute.xlu0 %2472
      %vm2490 = vcmask 786144
      %2491 = vst.msk [vmem:[#allocation2] sm:$0xff] %vm2490, %v2443
      %2492 = vst.msk [vmem:[#allocation2 + $0x8] sm:$0xff] %vm2490, %v2445
      %2493 = vst.msk [vmem:[#allocation2 + $0x10] sm:$0xff] %vm2490, %v2447
      %2494 = vst.msk [vmem:[#allocation2 + $0x18] sm:$0xff] %vm2490, %v2449
      %2495 = vst.msk [vmem:[#allocation2 + $0x20] sm:$0xff] %vm2490, %v2451
      %2496 = vst.msk [vmem:[#allocation2 + $0x28] sm:$0xff] %vm2490, %v2453
      %2497 = vst.msk [vmem:[#allocation2 + $0x30] sm:$0xff] %vm2490, %v2455
      %2498 = vst.msk [vmem:[#allocation2 + $0x38] sm:$0xff] %vm2490, %v2457
      %2499 = vst.msk [vmem:[#allocation2 + $0x40] sm:$0xff] %vm2490, %v2459
      %2500 = vst.msk [vmem:[#allocation2 + $0x48] sm:$0xff] %vm2490, %v2461
      %2501 = vst.msk [vmem:[#allocation2 + $0x50] sm:$0xff] %vm2490, %v2463
      %2502 = vst.msk [vmem:[#allocation2 + $0x58] sm:$0xff] %vm2490, %v2465
      %2503 = vst.msk [vmem:[#allocation2 + $0x60] sm:$0xff] %vm2490, %v2467
      %2504 = vst.msk [vmem:[#allocation2 + $0x68] sm:$0xff] %vm2490, %v2469
      %2505 = vst.msk [vmem:[#allocation2 + $0x70] sm:$0xff] %vm2490, %v2471
      %2506 = vst.msk [vmem:[#allocation2 + $0x78] sm:$0xff] %vm2490, %v2473
      %s2507 = sadd.s32 16, %s1914
      %s2508 = scalar_lea.vmem %s187, %s2507
      %v2509 = vld [vmem:[%s2508] sm:$0xff]
      %v2510 = vld [vmem:[%s2508 + $0x10] sm:$0xff]
      %v2511 = vld [vmem:[%s2508 + $0x20] sm:$0xff]
      %v2512 = vld [vmem:[%s2508 + $0x30] sm:$0xff]
      %v2513 = vld [vmem:[%s2508 + $0x50] sm:$0xff]
      %v2514 = vld [vmem:[%s2508 + $0x60] sm:$0xff]
      %v2515 = vld [vmem:[%s2508 + $0x70] sm:$0xff]
      %v2516 = vld [vmem:[%s2508 + $0x80] sm:$0xff]
      %v2517 = vld [vmem:[%s2508 + $0xa0] sm:$0xff]
      %v2518 = vld [vmem:[%s2508 + $0xb0] sm:$0xff]
      %v2519 = vld [vmem:[%s2508 + $0xc0] sm:$0xff]
      %v2520 = vld [vmem:[%s2508 + $0xd0] sm:$0xff]
      %v2521 = vld [vmem:[%s2508 + $0xf0] sm:$0xff]
      %v2522 = vld [vmem:[%s2508 + $0x100] sm:$0xff]
      %v2523 = vld [vmem:[%s2508 + $0x110] sm:$0xff]
      %v2524 = vld [vmem:[%s2508 + $0x120] sm:$0xff]
      %2541 = vrot.lane.b32.xlu0 %v2509, 96
      %v2542 = vpop.permute.xlu0 %2541
      %2543 = vrot.lane.b32.xlu0 %v2510, 96
      %v2544 = vpop.permute.xlu0 %2543
      %2545 = vrot.lane.b32.xlu0 %v2511, 96
      %v2546 = vpop.permute.xlu0 %2545
      %2547 = vrot.lane.b32.xlu0 %v2512, 96
      %v2548 = vpop.permute.xlu0 %2547
      %2549 = vrot.lane.b32.xlu0 %v2513, 96
      %v2550 = vpop.permute.xlu0 %2549
      %2551 = vrot.lane.b32.xlu0 %v2514, 96
      %v2552 = vpop.permute.xlu0 %2551
      %2553 = vrot.lane.b32.xlu0 %v2515, 96
      %v2554 = vpop.permute.xlu0 %2553
      %2555 = vrot.lane.b32.xlu0 %v2516, 96
      %v2556 = vpop.permute.xlu0 %2555
      %2557 = vrot.lane.b32.xlu0 %v2517, 96
      %v2558 = vpop.permute.xlu0 %2557
      %2559 = vrot.lane.b32.xlu0 %v2518, 96
      %v2560 = vpop.permute.xlu0 %2559
      %2561 = vrot.lane.b32.xlu0 %v2519, 96
      %v2562 = vpop.permute.xlu0 %2561
      %2563 = vrot.lane.b32.xlu0 %v2520, 96
      %v2564 = vpop.permute.xlu0 %2563
      %2565 = vrot.lane.b32.xlu0 %v2521, 96
      %v2566 = vpop.permute.xlu0 %2565
      %2567 = vrot.lane.b32.xlu0 %v2522, 96
      %v2568 = vpop.permute.xlu0 %2567
      %2569 = vrot.lane.b32.xlu0 %v2523, 96
      %v2570 = vpop.permute.xlu0 %2569
      %2571 = vrot.lane.b32.xlu0 %v2524, 96
      %v2572 = vpop.permute.xlu0 %2571
      %vm2589 = vcmask 818944
      %2590 = vst.msk [vmem:[#allocation2] sm:$0xff] %vm2589, %v2542
      %2591 = vst.msk [vmem:[#allocation2 + $0x8] sm:$0xff] %vm2589, %v2544
      %2592 = vst.msk [vmem:[#allocation2 + $0x10] sm:$0xff] %vm2589, %v2546
      %2593 = vst.msk [vmem:[#allocation2 + $0x18] sm:$0xff] %vm2589, %v2548
      %2594 = vst.msk [vmem:[#allocation2 + $0x20] sm:$0xff] %vm2589, %v2550
      %2595 = vst.msk [vmem:[#allocation2 + $0x28] sm:$0xff] %vm2589, %v2552
      %2596 = vst.msk [vmem:[#allocation2 + $0x30] sm:$0xff] %vm2589, %v2554
      %2597 = vst.msk [vmem:[#allocation2 + $0x38] sm:$0xff] %vm2589, %v2556
      %2598 = vst.msk [vmem:[#allocation2 + $0x40] sm:$0xff] %vm2589, %v2558
      %2599 = vst.msk [vmem:[#allocation2 + $0x48] sm:$0xff] %vm2589, %v2560
      %2600 = vst.msk [vmem:[#allocation2 + $0x50] sm:$0xff] %vm2589, %v2562
      %2601 = vst.msk [vmem:[#allocation2 + $0x58] sm:$0xff] %vm2589, %v2564
      %2602 = vst.msk [vmem:[#allocation2 + $0x60] sm:$0xff] %vm2589, %v2566
      %2603 = vst.msk [vmem:[#allocation2 + $0x68] sm:$0xff] %vm2589, %v2568
      %2604 = vst.msk [vmem:[#allocation2 + $0x70] sm:$0xff] %vm2589, %v2570
      %2605 = vst.msk [vmem:[#allocation2 + $0x78] sm:$0xff] %vm2589, %v2572
      %s2606 = sadd.s32 16, %s2014
      %s2607 = scalar_lea.vmem %s187, %s2606
      %v2608 = vld [vmem:[%s2607] sm:$0xff]
      %v2609 = vld [vmem:[%s2607 + $0x10] sm:$0xff]
      %v2610 = vld [vmem:[%s2607 + $0x20] sm:$0xff]
      %v2611 = vld [vmem:[%s2607 + $0x30] sm:$0xff]
      %v2612 = vld [vmem:[%s2607 + $0x50] sm:$0xff]
      %v2613 = vld [vmem:[%s2607 + $0x60] sm:$0xff]
      %v2614 = vld [vmem:[%s2607 + $0x70] sm:$0xff]
      %v2615 = vld [vmem:[%s2607 + $0x80] sm:$0xff]
      %v2616 = vld [vmem:[%s2607 + $0xa0] sm:$0xff]
      %v2617 = vld [vmem:[%s2607 + $0xb0] sm:$0xff]
      %v2618 = vld [vmem:[%s2607 + $0xc0] sm:$0xff]
      %v2619 = vld [vmem:[%s2607 + $0xd0] sm:$0xff]
      %v2620 = vld [vmem:[%s2607 + $0xf0] sm:$0xff]
      %v2621 = vld [vmem:[%s2607 + $0x100] sm:$0xff]
      %v2622 = vld [vmem:[%s2607 + $0x110] sm:$0xff]
      %v2623 = vld [vmem:[%s2607 + $0x120] sm:$0xff]
      %2640 = vrot.lane.b32.xlu0 %v2608, 100
      %v2641 = vpop.permute.xlu0 %2640
      %2642 = vrot.lane.b32.xlu0 %v2609, 100
      %v2643 = vpop.permute.xlu0 %2642
      %2644 = vrot.lane.b32.xlu0 %v2610, 100
      %v2645 = vpop.permute.xlu0 %2644
      %2646 = vrot.lane.b32.xlu0 %v2611, 100
      %v2647 = vpop.permute.xlu0 %2646
      %2648 = vrot.lane.b32.xlu0 %v2612, 100
      %v2649 = vpop.permute.xlu0 %2648
      %2650 = vrot.lane.b32.xlu0 %v2613, 100
      %v2651 = vpop.permute.xlu0 %2650
      %2652 = vrot.lane.b32.xlu0 %v2614, 100
      %v2653 = vpop.permute.xlu0 %2652
      %2654 = vrot.lane.b32.xlu0 %v2615, 100
      %v2655 = vpop.permute.xlu0 %2654
      %2656 = vrot.lane.b32.xlu0 %v2616, 100
      %v2657 = vpop.permute.xlu0 %2656
      %2658 = vrot.lane.b32.xlu0 %v2617, 100
      %v2659 = vpop.permute.xlu0 %2658
      %2660 = vrot.lane.b32.xlu0 %v2618, 100
      %v2661 = vpop.permute.xlu0 %2660
      %2662 = vrot.lane.b32.xlu0 %v2619, 100
      %v2663 = vpop.permute.xlu0 %2662
      %2664 = vrot.lane.b32.xlu0 %v2620, 100
      %v2665 = vpop.permute.xlu0 %2664
      %2666 = vrot.lane.b32.xlu0 %v2621, 100
      %v2667 = vpop.permute.xlu0 %2666
      %2668 = vrot.lane.b32.xlu0 %v2622, 100
      %v2669 = vpop.permute.xlu0 %2668
      %2670 = vrot.lane.b32.xlu0 %v2623, 100
      %v2671 = vpop.permute.xlu0 %2670
      %vm2688 = vcmask 851744
      %2689 = vst.msk [vmem:[#allocation2] sm:$0xff] %vm2688, %v2641
      %2690 = vst.msk [vmem:[#allocation2 + $0x8] sm:$0xff] %vm2688, %v2643
      %2691 = vst.msk [vmem:[#allocation2 + $0x10] sm:$0xff] %vm2688, %v2645
      %2692 = vst.msk [vmem:[#allocation2 + $0x18] sm:$0xff] %vm2688, %v2647
      %2693 = vst.msk [vmem:[#allocation2 + $0x20] sm:$0xff] %vm2688, %v2649
      %2694 = vst.msk [vmem:[#allocation2 + $0x28] sm:$0xff] %vm2688, %v2651
      %2695 = vst.msk [vmem:[#allocation2 + $0x30] sm:$0xff] %vm2688, %v2653
      %2696 = vst.msk [vmem:[#allocation2 + $0x38] sm:$0xff] %vm2688, %v2655
      %2697 = vst.msk [vmem:[#allocation2 + $0x40] sm:$0xff] %vm2688, %v2657
      %2698 = vst.msk [vmem:[#allocation2 + $0x48] sm:$0xff] %vm2688, %v2659
      %2699 = vst.msk [vmem:[#allocation2 + $0x50] sm:$0xff] %vm2688, %v2661
      %2700 = vst.msk [vmem:[#allocation2 + $0x58] sm:$0xff] %vm2688, %v2663
      %2701 = vst.msk [vmem:[#allocation2 + $0x60] sm:$0xff] %vm2688, %v2665
      %2702 = vst.msk [vmem:[#allocation2 + $0x68] sm:$0xff] %vm2688, %v2667
      %2703 = vst.msk [vmem:[#allocation2 + $0x70] sm:$0xff] %vm2688, %v2669
      %2704 = vst.msk [vmem:[#allocation2 + $0x78] sm:$0xff] %vm2688, %v2671
      %v2705 = vld [vmem:[%s2508 + $0x1] sm:$0xff]
      %v2706 = vld [vmem:[%s2508 + $0x11] sm:$0xff]
      %v2707 = vld [vmem:[%s2508 + $0x21] sm:$0xff]
      %v2708 = vld [vmem:[%s2508 + $0x31] sm:$0xff]
      %v2709 = vld [vmem:[%s2508 + $0x51] sm:$0xff]
      %v2710 = vld [vmem:[%s2508 + $0x61] sm:$0xff]
      %v2711 = vld [vmem:[%s2508 + $0x71] sm:$0xff]
      %v2712 = vld [vmem:[%s2508 + $0x81] sm:$0xff]
      %v2713 = vld [vmem:[%s2508 + $0xa1] sm:$0xff]
      %v2714 = vld [vmem:[%s2508 + $0xb1] sm:$0xff]
      %v2715 = vld [vmem:[%s2508 + $0xc1] sm:$0xff]
      %v2716 = vld [vmem:[%s2508 + $0xd1] sm:$0xff]
      %v2717 = vld [vmem:[%s2508 + $0xf1] sm:$0xff]
      %v2718 = vld [vmem:[%s2508 + $0x101] sm:$0xff]
      %v2719 = vld [vmem:[%s2508 + $0x111] sm:$0xff]
      %v2720 = vld [vmem:[%s2508 + $0x121] sm:$0xff]
      %2737 = vrot.lane.b32.xlu0 %v2705, 104
      %v2738 = vpop.permute.xlu0 %2737
      %2739 = vrot.lane.b32.xlu0 %v2706, 104
      %v2740 = vpop.permute.xlu0 %2739
      %2741 = vrot.lane.b32.xlu0 %v2707, 104
      %v2742 = vpop.permute.xlu0 %2741
      %2743 = vrot.lane.b32.xlu0 %v2708, 104
      %v2744 = vpop.permute.xlu0 %2743
      %2745 = vrot.lane.b32.xlu0 %v2709, 104
      %v2746 = vpop.permute.xlu0 %2745
      %2747 = vrot.lane.b32.xlu0 %v2710, 104
      %v2748 = vpop.permute.xlu0 %2747
      %2749 = vrot.lane.b32.xlu0 %v2711, 104
      %v2750 = vpop.permute.xlu0 %2749
      %2751 = vrot.lane.b32.xlu0 %v2712, 104
      %v2752 = vpop.permute.xlu0 %2751
      %2753 = vrot.lane.b32.xlu0 %v2713, 104
      %v2754 = vpop.permute.xlu0 %2753
      %2755 = vrot.lane.b32.xlu0 %v2714, 104
      %v2756 = vpop.permute.xlu0 %2755
      %2757 = vrot.lane.b32.xlu0 %v2715, 104
      %v2758 = vpop.permute.xlu0 %2757
      %2759 = vrot.lane.b32.xlu0 %v2716, 104
      %v2760 = vpop.permute.xlu0 %2759
      %2761 = vrot.lane.b32.xlu0 %v2717, 104
      %v2762 = vpop.permute.xlu0 %2761
      %2763 = vrot.lane.b32.xlu0 %v2718, 104
      %v2764 = vpop.permute.xlu0 %2763
      %2765 = vrot.lane.b32.xlu0 %v2719, 104
      %v2766 = vpop.permute.xlu0 %2765
      %2767 = vrot.lane.b32.xlu0 %v2720, 104
      %v2768 = vpop.permute.xlu0 %2767
      %vm2785 = vcmask 884544
      %2786 = vst.msk [vmem:[#allocation2] sm:$0xff] %vm2785, %v2738
      %2787 = vst.msk [vmem:[#allocation2 + $0x8] sm:$0xff] %vm2785, %v2740
      %2788 = vst.msk [vmem:[#allocation2 + $0x10] sm:$0xff] %vm2785, %v2742
      %2789 = vst.msk [vmem:[#allocation2 + $0x18] sm:$0xff] %vm2785, %v2744
      %2790 = vst.msk [vmem:[#allocation2 + $0x20] sm:$0xff] %vm2785, %v2746
      %2791 = vst.msk [vmem:[#allocation2 + $0x28] sm:$0xff] %vm2785, %v2748
      %2792 = vst.msk [vmem:[#allocation2 + $0x30] sm:$0xff] %vm2785, %v2750
      %2793 = vst.msk [vmem:[#allocation2 + $0x38] sm:$0xff] %vm2785, %v2752
      %2794 = vst.msk [vmem:[#allocation2 + $0x40] sm:$0xff] %vm2785, %v2754
      %2795 = vst.msk [vmem:[#allocation2 + $0x48] sm:$0xff] %vm2785, %v2756
      %2796 = vst.msk [vmem:[#allocation2 + $0x50] sm:$0xff] %vm2785, %v2758
      %2797 = vst.msk [vmem:[#allocation2 + $0x58] sm:$0xff] %vm2785, %v2760
      %2798 = vst.msk [vmem:[#allocation2 + $0x60] sm:$0xff] %vm2785, %v2762
      %2799 = vst.msk [vmem:[#allocation2 + $0x68] sm:$0xff] %vm2785, %v2764
      %2800 = vst.msk [vmem:[#allocation2 + $0x70] sm:$0xff] %vm2785, %v2766
      %2801 = vst.msk [vmem:[#allocation2 + $0x78] sm:$0xff] %vm2785, %v2768
      %v2802 = vld [vmem:[#allocation2] sm:$0xff]
      %v2803 = vld [vmem:[#allocation2 + $0x8] sm:$0xff]
      %v2804 = vld [vmem:[#allocation2 + $0x10] sm:$0xff]
      %v2805 = vld [vmem:[#allocation2 + $0x18] sm:$0xff]
      %v2806 = vld [vmem:[#allocation2 + $0x20] sm:$0xff]
      %v2807 = vld [vmem:[#allocation2 + $0x28] sm:$0xff]
      %v2808 = vld [vmem:[#allocation2 + $0x30] sm:$0xff]
      %v2809 = vld [vmem:[#allocation2 + $0x38] sm:$0xff]
      %v2810 = vld [vmem:[#allocation2 + $0x40] sm:$0xff]
      %v2811 = vld [vmem:[#allocation2 + $0x48] sm:$0xff]
      %v2812 = vld [vmem:[#allocation2 + $0x50] sm:$0xff]
      %v2813 = vld [vmem:[#allocation2 + $0x58] sm:$0xff]
      %v2814 = vld [vmem:[#allocation2 + $0x60] sm:$0xff]
      %v2815 = vld [vmem:[#allocation2 + $0x68] sm:$0xff]
      %v2816 = vld [vmem:[#allocation2 + $0x70] sm:$0xff]
      %v2817 = vld [vmem:[#allocation2 + $0x78] sm:$0xff]
      %v2818 = vld [vmem:[%s1] sm:$0xff]
      %v2819 = vld [vmem:[%s1 + $0x8] sm:$0xff]
      %v2820 = vld [vmem:[%s1 + $0x10] sm:$0xff]
      %v2821 = vld [vmem:[%s1 + $0x18] sm:$0xff]
      %v2822 = vld [vmem:[%s1 + $0x20] sm:$0xff]
      %v2823 = vld [vmem:[%s1 + $0x28] sm:$0xff]
      %v2824 = vld [vmem:[%s1 + $0x30] sm:$0xff]
      %v2825 = vld [vmem:[%s1 + $0x38] sm:$0xff]
      %v2826 = vld [vmem:[%s1 + $0x40] sm:$0xff]
      %v2827 = vld [vmem:[%s1 + $0x48] sm:$0xff]
      %v2828 = vld [vmem:[%s1 + $0x50] sm:$0xff]
      %v2829 = vld [vmem:[%s1 + $0x58] sm:$0xff]
      %v2830 = vld [vmem:[%s1 + $0x60] sm:$0xff]
      %v2831 = vld [vmem:[%s1 + $0x68] sm:$0xf]
      %v2832 = vld [vmem:[%s2] sm:$0x1]
      %v2834 = vperm.slane %v2832, 0
      %vm2836 = vcmask 883712
      %v2838 = vsel %vm2836, %v2802, 0
      %v2841 = vsel %vm2836, %v2803, 0
      %v2844 = vsel %vm2836, %v2804, 0
      %v2847 = vsel %vm2836, %v2805, 0
      %v2850 = vsel %vm2836, %v2806, 0
      %v2853 = vsel %vm2836, %v2807, 0
      %v2856 = vsel %vm2836, %v2808, 0
      %v2859 = vsel %vm2836, %v2809, 0
      %v2862 = vsel %vm2836, %v2810, 0
      %v2865 = vsel %vm2836, %v2811, 0
      %v2868 = vsel %vm2836, %v2812, 0
      %v2871 = vsel %vm2836, %v2813, 0
      %v2874 = vsel %vm2836, %v2814, 0
      %v2877 = vsel %vm2836, %v2815, 0
      %v2880 = vsel %vm2836, %v2816, 0
      %v2883 = vsel %vm2836, %v2817, 0
      %vm2885 = vcmask 1043456
      %v2887 = vsel %vm2885, %v2831, 0
      %2889 = vmatpush.msra.mxu0 0.0
      %2890 = vmatpush.msra.mxu0 0.0
      %2891 = vmatpush.msra.mxu0 %v2887
      %2892 = vmatpush.msra.mxu0 %v2830
      %2893 = vmatpush.msra.mxu0 %v2829
      %2894 = vmatpush.msra.mxu0 %v2828
      %2895 = vmatpush.msra.mxu0 %v2827
      %2896 = vmatpush.msra.mxu0 %v2826
      %2897 = vmatpush.msra.mxu0 %v2825
      %2898 = vmatpush.msra.mxu0 %v2824
      %2899 = vmatpush.msra.mxu0 %v2823
      %2900 = vmatpush.msra.mxu0 %v2822
      %2901 = vmatpush.msra.mxu0 %v2821
      %2902 = vmatpush.msra.mxu0 %v2820
      %2903 = vmatpush.msra.mxu0 %v2819
      %2904 = vmatpush.msra.mxu0 %v2818
      %2905 = vmatmul.f32.gmra.mxu0 %v2838
      %v2906 = vpop.f32.mrf.mxu0
      %v2907 = vadd.f32 %v2834, %v2906
      %2908 = vmatmul.f32.gmra.mxu0 %v2841
      %v2909 = vpop.f32.mrf.mxu0
      %v2910 = vadd.f32 %v2834, %v2909
      %2911 = vmatmul.f32.gmra.mxu0 %v2844
      %v2912 = vpop.f32.mrf.mxu0
      %v2913 = vadd.f32 %v2834, %v2912
      %2914 = vmatmul.f32.gmra.mxu0 %v2847
      %v2915 = vpop.f32.mrf.mxu0
      %v2916 = vadd.f32 %v2834, %v2915
      %2917 = vmatmul.f32.gmra.mxu0 %v2850
      %v2918 = vpop.f32.mrf.mxu0
      %v2919 = vadd.f32 %v2834, %v2918
      %2920 = vmatmul.f32.gmra.mxu0 %v2853
      %v2921 = vpop.f32.mrf.mxu0
      %v2922 = vadd.f32 %v2834, %v2921
      %2923 = vmatmul.f32.gmra.mxu0 %v2856
      %v2924 = vpop.f32.mrf.mxu0
      %v2925 = vadd.f32 %v2834, %v2924
      %2926 = vmatmul.f32.gmra.mxu0 %v2859
      %v2927 = vpop.f32.mrf.mxu0
      %v2928 = vadd.f32 %v2834, %v2927
      %2929 = vmatmul.f32.gmra.mxu0 %v2862
      %v2930 = vpop.f32.mrf.mxu0
      %v2931 = vadd.f32 %v2834, %v2930
      %2932 = vmatmul.f32.gmra.mxu0 %v2865
      %v2933 = vpop.f32.mrf.mxu0
      %v2934 = vadd.f32 %v2834, %v2933
      %2935 = vmatmul.f32.gmra.mxu0 %v2868
      %v2936 = vpop.f32.mrf.mxu0
      %v2937 = vadd.f32 %v2834, %v2936
      %2938 = vmatmul.f32.gmra.mxu0 %v2871
      %v2939 = vpop.f32.mrf.mxu0
      %v2940 = vadd.f32 %v2834, %v2939
      %2941 = vmatmul.f32.gmra.mxu0 %v2874
      %v2942 = vpop.f32.mrf.mxu0
      %v2943 = vadd.f32 %v2834, %v2942
      %2944 = vmatmul.f32.gmra.mxu0 %v2877
      %v2945 = vpop.f32.mrf.mxu0
      %v2946 = vadd.f32 %v2834, %v2945
      %2947 = vmatmul.f32.gmra.mxu0 %v2880
      %v2948 = vpop.f32.mrf.mxu0
      %v2949 = vadd.f32 %v2834, %v2948
      %2950 = vmatmul.f32.gmra.mxu0 %v2883
      %v2951 = vpop.f32.mrf.mxu0
      %v2952 = vadd.f32 %v2834, %v2951
      %2953 = vdwg.mxu0
      %2954 = vst.msk [vmem:[%s197] sm:$0xff] %vm218, %v2907
      %2955 = vst.msk [vmem:[%s197 + $0x8] sm:$0xff] %vm218, %v2910
      %2956 = vst.msk [vmem:[%s197 + $0x10] sm:$0xff] %vm218, %v2913
      %2957 = vst.msk [vmem:[%s197 + $0x18] sm:$0xff] %vm218, %v2916
      %2958 = vst.msk [vmem:[%s197 + $0x20] sm:$0xff] %vm218, %v2919
      %2959 = vst.msk [vmem:[%s197 + $0x28] sm:$0xff] %vm218, %v2922
      %2960 = vst.msk [vmem:[%s197 + $0x30] sm:$0xff] %vm218, %v2925
      %2961 = vst.msk [vmem:[%s197 + $0x38] sm:$0xff] %vm218, %v2928
      %2962 = vst.msk [vmem:[%s197 + $0x40] sm:$0xff] %vm218, %v2931
      %2963 = vst.msk [vmem:[%s197 + $0x48] sm:$0xff] %vm218, %v2934
      %2964 = vst.msk [vmem:[%s197 + $0x50] sm:$0xff] %vm218, %v2937
      %2965 = vst.msk [vmem:[%s197 + $0x58] sm:$0xff] %vm218, %v2940
      %2966 = vst.msk [vmem:[%s197 + $0x60] sm:$0xff] %vm218, %v2943
      %2967 = vst.msk [vmem:[%s197 + $0x68] sm:$0xff] %vm218, %v2946
      %2968 = vst.msk [vmem:[%s197 + $0x70] sm:$0xff] %vm218, %v2949
      %2969 = vst.msk [vmem:[%s197 + $0x78] sm:$0xff] %vm218, %v2952
      %s2970 = smul.u32 16, %s19
      %p2971 = scmp.lt.s32.totalorder %s18, 1
      %s2972 = scalar_select %p2971, %s18, 1
      %p2973 = scmp.lt.s32.totalorder %s2970, 15
      %s2974 = scalar_select %p2973, %s2970, 15
      %s2975 = smul.addr %s2972, 16
      %s2976 = sadd.s32 %s2974, %s2975
      %s2977 = smul.addr %s2976, 8
      %s2978 = scalar_lea.vmem %s3, %s2977
      // Predicated region
      $region33: #{tpu_custom_call.1} parent=31 // pred_check
        %p2979 = pneg %p114
      $region34: #{tpu_custom_call.1} parent=31 // pred_check_branch
        %2981 = sbr.rel (%p2979) target = $region36
      $region35: #{tpu_custom_call.1} parent=31 // pred_region
        %s2982 = smul.u32 16, %s19
      $region36: #{tpu_custom_call.1} parent=31 // pred_fallthru
        _
    $region32: #{tpu_custom_call.1} parent=5 // pred_fallthru
      _
    %p2983 = scmp.le.s32.totalorder 2, %s9
    // Predicated region
    $region37: #{tpu_custom_call.1} parent=5 // pred_check
      %p2984 = pneg %p2983
    $region38: #{tpu_custom_call.1} parent=5 // pred_check_branch
      %2986 = sbr.rel (%p2984) target = $region40
    $region39: #{tpu_custom_call.1} parent=5 // pred_region
      %s2987 = ssub.s32 %s9, 2
      // Predicated region
      $region41: #{tpu_custom_call.1} parent=39 // pred_check
        %p2988 = pneg %p120
      $region42: #{tpu_custom_call.1} parent=39 // pred_check_branch
        %2990 = sbr.rel (%p2988) target = $region44
      $region43: #{tpu_custom_call.1} parent=39 // pred_region
        %s2991 = smul.u32 16, %s21
        %p2992 = scmp.lt.s32.totalorder %s20, 1
        %s2993 = scalar_select %p2992, %s20, 1
        %p2994 = scmp.lt.s32.totalorder %s2991, 15
        %s2995 = scalar_select %p2994, %s2991, 15
        %s2996 = smul.addr %s2993, 16
        %s2997 = sadd.s32 %s2995, %s2996
        %s2998 = smul.addr %s2997, 8
        %s2999 = scalar_lea.vmem %s3, %s2998
      $region44: #{tpu_custom_call.1} parent=39 // pred_fallthru
        _
    $region40: #{tpu_custom_call.1} parent=5 // pred_fallthru
      _
  $region6: #{tpu_custom_call.1} parent=0 // loop_footer
    %s13 = sadd.s32 1, %s9
  $region7: #{tpu_custom_call.1} parent=0 // loop_footer_branch
    %8 = sbr.rel target = $region3
  $region8: #{tpu_custom_call.1} parent=0 // loop_exit
    _

</llo_original>
